<compile_context>
chip_gen: v7x
topology: tpu7x:2x2x1
jax: 0.10.0
libtpu: 0.0.40
codegen_flags: <defaults>
</compile_context>

<pallas_src>
import jax
import jax.numpy as jnp
from jax.experimental import pallas as pl
from jax.experimental.pallas import tpu as pltpu

HYP_EPS = 1e-5
_HAS_BUFFERED = hasattr(pl, "Buffered")


def _round_up(n, m):
    return ((n + m - 1) // m) * m


# ----------------------------------------------------------------------
# Hyperbolic math in f32 (shared by the kernel epilogue and the reference)
# ----------------------------------------------------------------------
def _mobius_add(x, y, c):
    xn = jnp.maximum(jnp.sum(x * x, axis=-1, keepdims=True), 0.0)
    yn = jnp.maximum(jnp.sum(y * y, axis=-1, keepdims=True), 0.0)
    ip = jnp.sum(x * y, axis=-1, keepdims=True)
    num = (1.0 + 2.0 * c * ip + c * yn) * x + (1.0 - c * xn) * y
    den = 1.0 + 2.0 * c * ip + c * c * xn * yn
    return num / (den + HYP_EPS)


def _expmap(x, v, c):
    # c is already clamped to >= HYP_EPS by the caller.
    sqrt_c = jnp.sqrt(c)
    v_norm = jnp.sqrt(jnp.sum(v * v, axis=-1, keepdims=True))
    safe_v_norm = v_norm + HYP_EPS
    x_norm_sq = jnp.maximum(jnp.sum(x * x, axis=-1, keepdims=True), 0.0)
    lam = 2.0 / (1.0 + c * x_norm_sq + HYP_EPS)                 # scaling_factor
    coeff = (1.0 / sqrt_c) * jnp.tanh(sqrt_c * lam * v_norm / 2.0)
    second = coeff * (v / safe_v_norm)
    second = jnp.where(jnp.isfinite(second), second, 0.0)       # == nan_to_num(nan/±inf -> 0)
    return _mobius_add(x, second, c)


# ----------------------------------------------------------------------
# Fused MLP kernel:  out = relu(x @ Wfc)^2 @ Wproj   [+ optional expmap epilogue]
# ----------------------------------------------------------------------
def _make_mlp_kernel(n_hchunks, th, fuse_expmap):
    def _mlp_math(x_ref, wfc_ref, wproj_ref):
        xb = x_ref[...].astype(wfc_ref.dtype)          # fold f32->bf16 cast into the kernel
        acc = None
        for k in range(n_hchunks):                     # static H chunks; hidden stays on-chip
            lo, hi = k * th, (k + 1) * th
            h = jnp.dot(xb, wfc_ref[:, lo:hi], preferred_element_type=jnp.float32)
            h = jnp.square(jnp.maximum(h, 0.0))        # relu().square() in f32 (VPU)
            p = jnp.dot(h.astype(wproj_ref.dtype), wproj_ref[lo:hi, :],
                        preferred_element_type=jnp.float32)
            acc = p if acc is None else acc + p
        return acc

    if fuse_expmap:
        def kernel(c_ref, x_ref, wfc_ref, wproj_ref, ref_ref, o_ref):
            out = _mlp_math(x_ref, wfc_ref, wproj_ref)
            c = jnp.maximum(c_ref[0], HYP_EPS)
            o_ref[...] = _expmap(ref_ref[...].astype(jnp.float32), out, c).astype(o_ref.dtype)
    else:
        def kernel(x_ref, wfc_ref, wproj_ref, o_ref):
            o_ref[...] = _mlp_math(x_ref, wfc_ref, wproj_ref).astype(o_ref.dtype)
    return kernel


def mlp_fused(x2d, w_fc_t, w_proj_t, *, c=None, ref_pt2d=None, tm=256, th=512,
              out_dtype=None, single_buffer_weights=True):
    """x2d: (M, C); w_fc_t: (C, H) bf16; w_proj_t: (H, C) bf16."""
    M, C = x2d.shape
    Cw, H = w_fc_t.shape
    assert C == Cw and w_proj_t.shape == (H, C)
    out_dtype = jnp.dtype(out_dtype if out_dtype is not None else x2d.dtype)
    fuse_expmap = ref_pt2d is not None

    # Row tiling: zero-pad ragged M so every (tm_eff, C) block is full.  Padded rows
    # produce zeros (expmap(0, 0, c) == 0) and are sliced off after the call.
    tm_eff = min(tm, _round_up(M, 8))
    M_pad = _round_up(M, tm_eff)
    if M_pad != M:
        x2d = jnp.pad(x2d, ((0, M_pad - M), (0, 0)))
        if fuse_expmap:
            ref_pt2d = jnp.pad(ref_pt2d, ((0, M_pad - M), (0, 0)))

    # Hidden-dimension chunk size (multiple of 128 that divides H; else a single chunk).
    th = min(th, H)
    if th % 128 != 0 or H % th != 0:
        th = H
    n_hchunks = H // th

    kernel = _make_mlp_kernel(n_hchunks, th, fuse_expmap)

    def _w_spec(shape):
        if single_buffer_weights and _HAS_BUFFERED:
            # Constant index_map -> weights resident across grid steps; single buffer
            # halves their VMEM footprint (double-buffering buys nothing here).
            return pl.BlockSpec(shape, lambda i: (0, 0), pipeline_mode=pl.Buffered(1))
        return pl.BlockSpec(shape, lambda i: (0, 0))

    in_specs, args = [], []
    if fuse_expmap:
        c_arr = jnp.reshape(jnp.asarray(c, jnp.float32), (1,))
        in_specs.append(pl.BlockSpec(memory_space=pltpu.MemorySpace.SMEM))  # curvature scalar
        args.append(c_arr)
    in_specs += [pl.BlockSpec((tm_eff, C), lambda i: (i, 0)),
                 _w_spec((C, H)),
                 _w_spec((H, C))]
    args += [x2d, w_fc_t, w_proj_t]
    if fuse_expmap:
        in_specs.append(pl.BlockSpec((tm_eff, C), lambda i: (i, 0)))
        args.append(ref_pt2d)

    # Explicit scoped-VMEM budget: weights (single/double buffered) + double-buffered
    # x / ref / out tiles + the f32 hidden chunk, with ~25% + 4 MiB headroom.
    w_bytes = C * H * w_fc_t.dtype.itemsize + H * C * w_proj_t.dtype.itemsize
    n_wbuf = 1 if (single_buffer_weights and _HAS_BUFFERED) else 2
    act_bytes = 2 * tm_eff * C * (x2d.dtype.itemsize + out_dtype.itemsize)
    if fuse_expmap:
        act_bytes += 2 * tm_eff * C * ref_pt2d.dtype.itemsize
    hid_bytes = 2 * tm_eff * th * 4
    vmem_limit = min(int(1.25 * (n_wbuf * w_bytes + act_bytes + hid_bytes)) + (4 << 20),
                     112 << 20)

    cost = pl.CostEstimate(
        flops=4 * M_pad * C * H,                               # two matmuls, 2*M*C*H each
        transcendentals=(M_pad if fuse_expmap else 0),         # tanh per row
        bytes_accessed=(w_bytes
                        + M_pad * C * (x2d.dtype.itemsize + out_dtype.itemsize)
                        + (M_pad * C * ref_pt2d.dtype.itemsize if fuse_expmap else 0)))

    out = pl.pallas_call(
        kernel,
        out_shape=jax.ShapeDtypeStruct((M_pad, C), out_dtype),
        grid_spec=pltpu.PrefetchScalarGridSpec(
            num_scalar_prefetch=0,
            grid=(M_pad // tm_eff,),
            in_specs=in_specs,
            out_specs=pl.BlockSpec((tm_eff, C), lambda i: (i, 0))),
        compiler_params=pltpu.CompilerParams(
            dimension_semantics=("parallel",),                 # v7x: shard row blocks over 2 TCs
            vmem_limit_bytes=vmem_limit),
        cost_estimate=cost,
    )(*args)
    return out[:M] if M_pad != M else out


# ----------------------------------------------------------------------
# Module-level forward (matches MLP.forward semantics)
# ----------------------------------------------------------------------
def mlp_forward(x, w_fc_t, w_proj_t, c=1.0, reference_point=None, *,
                map_back_after_attention=True, tm=256, th=512,
                out_dtype=None, single_buffer_weights=True):
    """x: (..., dim). Weights pre-transposed: w_fc_t (dim, 4*dim), w_proj_t (4*dim, dim)."""
    lead, C = x.shape[:-1], x.shape[-1]
    x2 = x.reshape(-1, C)                       # no wrapper-side astype: cast happens per tile
    ref2 = None
    if (not map_back_after_attention) and (reference_point is not None):
        ref2 = reference_point.reshape(-1, C)
    out = mlp_fused(x2, w_fc_t, w_proj_t, c=c, ref_pt2d=ref2, tm=tm, th=th,
                    out_dtype=out_dtype, single_buffer_weights=single_buffer_weights)
    return out.reshape(*lead, C)


# ---- pure-JAX reference (same precision policy) for validation ----
def mlp_reference(x, w_fc_t, w_proj_t, c, reference_point, map_back):
    lead, C = x.shape[:-1], x.shape[-1]
    xm = x.reshape(-1, C).astype(w_fc_t.dtype)
    h = jnp.dot(xm, w_fc_t, preferred_element_type=jnp.float32)
    h = jnp.square(jnp.maximum(h, 0.0))
    out = jnp.dot(h.astype(w_proj_t.dtype), w_proj_t, preferred_element_type=jnp.float32)
    if (not map_back) and (reference_point is not None):
        cc = jnp.maximum(jnp.asarray(c, jnp.float32), HYP_EPS)
        out = _expmap(reference_point.reshape(-1, C).astype(jnp.float32), out, cc)
    return out.reshape(*lead, C).astype(x.dtype)


if __name__ == "__main__":
    key = jax.random.PRNGKey(0)
    kx, kfc, kproj, kref, kx2, kfc2, kproj2, kref2 = jax.random.split(key, 8)

    fwd = jax.jit(mlp_forward,
                  static_argnames=("map_back_after_attention", "tm", "th",
                                   "out_dtype", "single_buffer_weights"))

    def check(out, ref, name):
        assert bool(jnp.all(jnp.isfinite(out))), f"{name}: non-finite output"
        assert bool(jnp.allclose(out, ref, rtol=2e-2, atol=1e-3)), f"{name}: mismatch"

    # --- config 1: dim=128, M=512 rows -> two parallel 256-row blocks, single H chunk ---
    DIM, HDIM, B, T = 128, 512, 2, 256
    x = 0.1 * jax.random.normal(kx, (B, T, DIM), jnp.float32)
    reference_point = 0.05 * jax.random.normal(kref, (B, T, DIM), jnp.float32)
    # CastedLinear init: uniform(-bound, bound), bound = sqrt(3)*0.5*dim^-0.5.
    bound = (3.0 ** 0.5) * 0.5 * DIM ** -0.5
    # Weights stored pre-transposed (in, out) in bf16 -> no per-call transpose/cast over HBM.
    w_fc_t = jax.random.uniform(kfc, (DIM, HDIM), jnp.float32, -bound, bound).astype(jnp.bfloat16)
    # Module zero-inits c_proj; use small nonzero values so the path is exercised.
    w_proj_t = (0.02 * jax.random.normal(kproj, (HDIM, DIM), jnp.float32)).astype(jnp.bfloat16)
    curvature = jnp.float32(1.0)

    try:
        sbw = True
        out_a = fwd(x, w_fc_t, w_proj_t, curvature, None,
                    map_back_after_attention=True, single_buffer_weights=sbw)
        jax.block_until_ready(out_a)
    except Exception:
        # Fallback if single-buffered (pl.Buffered(1)) weight pipelining is unsupported.
        sbw = False
        out_a = fwd(x, w_fc_t, w_proj_t, curvature, None,
                    map_back_after_attention=True, single_buffer_weights=sbw)
        jax.block_until_ready(out_a)
    check(out_a, mlp_reference(x, w_fc_t, w_proj_t, curvature, None, True), "mlp")

    # map_back_after_attention=False with a reference point -> expmap fused into the kernel.
    out_b = fwd(x, w_fc_t, w_proj_t, curvature, reference_point,
                map_back_after_attention=False, single_buffer_weights=sbw)
    check(out_b, mlp_reference(x, w_fc_t, w_proj_t, curvature, reference_point, False),
          "mlp+expmap")

    # --- config 2: dim=256 (two 512-wide H chunks), ragged M=400 rows -> padded to 512 ---
    DIM2, HDIM2, B2, T2 = 256, 1024, 2, 200
    x2 = 0.1 * jax.random.normal(kx2, (B2, T2, DIM2), jnp.float32)
    ref2 = 0.05 * jax.random.normal(kref2, (B2, T2, DIM2), jnp.float32)
    bound2 = (3.0 ** 0.5) * 0.5 * DIM2 ** -0.5
    w_fc_t2 = jax.random.uniform(kfc2, (DIM2, HDIM2), jnp.float32, -bound2, bound2).astype(jnp.bfloat16)
    w_proj_t2 = (0.02 * jax.random.normal(kproj2, (HDIM2, DIM2), jnp.float32)).astype(jnp.bfloat16)

    out_c = fwd(x2, w_fc_t2, w_proj_t2, curvature, ref2,
                map_back_after_attention=False, single_buffer_weights=sbw)
    check(out_c, mlp_reference(x2, w_fc_t2, w_proj_t2, curvature, ref2, False),
          "mlp+expmap ragged/multi-chunk")

    jax.block_until_ready((out_a, out_b, out_c))
    print("KERNEL_OK")
</pallas_src>

<mosaic_0001>
module attributes {stable_mosaic.version = 11 : i64} {
  func.func @kernel(%arg0: i32, %arg1: memref<256x128xf32, #tpu.memory_space<vmem>>, %arg2: memref<128x512xbf16, #tpu.memory_space<vmem>>, %arg3: memref<512x128xbf16, #tpu.memory_space<vmem>>, %arg4: memref<256x128xf32, #tpu.memory_space<vmem>>) attributes {dimension_semantics = [#tpu.dimension_semantics<parallel>], iteration_bounds = array<i64: 2>, scalar_prefetch = 0 : i64, scratch_operands = 0 : i64, tpu.core_type = #tpu.core_type<tc>, window_params = [{transform_indices = @transform_0, window_bounds = array<i64: 256, 128>}, {pipeline_mode = #tpu.pipeline_mode<synchronous>, transform_indices = @transform_1, window_bounds = array<i64: 128, 512>}, {pipeline_mode = #tpu.pipeline_mode<synchronous>, transform_indices = @transform_2, window_bounds = array<i64: 512, 128>}, {transform_indices = @transform_3, window_bounds = array<i64: 256, 128>}]} {
    %c0 = arith.constant 0 : index
    %c0_0 = arith.constant 0 : index
    %0 = vector.load %arg1[%c0, %c0_0] : memref<256x128xf32, #tpu.memory_space<vmem>>, vector<256x128xf32>
    %1 = arith.truncf %0 : vector<256x128xf32> to vector<256x128xbf16>
    %c0_1 = arith.constant 0 : index
    %c0_2 = arith.constant 0 : index
    %2 = vector.load %arg2[%c0_1, %c0_2] : memref<128x512xbf16, #tpu.memory_space<vmem>>, vector<128x512xbf16>
    %cst = arith.constant dense<0.000000e+00> : vector<256x512xf32>
    %3 = tpu.matmul %1, %2, %cst {dimension_numbers = #tpu.dot_dimension_numbers<[1], [0], [0], [1], [0, 0, 1, 1], [], []>} : vector<256x128xbf16>, vector<128x512xbf16>, vector<256x512xf32> -> vector<256x512xf32>
    %cst_3 = arith.constant 0.000000e+00 : f32
    %4 = vector.broadcast %cst_3 : f32 to vector<256x512xf32>
    %5 = arith.maximumf %3, %4 : vector<256x512xf32>
    %6 = arith.mulf %5, %5 : vector<256x512xf32>
    %7 = arith.truncf %6 : vector<256x512xf32> to vector<256x512xbf16>
    %c0_4 = arith.constant 0 : index
    %c0_5 = arith.constant 0 : index
    %8 = vector.load %arg3[%c0_4, %c0_5] : memref<512x128xbf16, #tpu.memory_space<vmem>>, vector<512x128xbf16>
    %cst_6 = arith.constant dense<0.000000e+00> : vector<256x128xf32>
    %9 = tpu.matmul %7, %8, %cst_6 {dimension_numbers = #tpu.dot_dimension_numbers<[1], [0], [0], [1], [0, 0, 1, 1], [], []>} : vector<256x512xbf16>, vector<512x128xbf16>, vector<256x128xf32> -> vector<256x128xf32>
    %c0_7 = arith.constant 0 : index
    %c0_8 = arith.constant 0 : index
    %10 = vector.load %arg4[%c0_7, %c0_8] : memref<256x128xf32, #tpu.memory_space<vmem>>, vector<256x128xf32>
    tpu.vector_store %arg4[%c0_7, %c0_8], %9 {strides = array<i32>} : memref<256x128xf32, #tpu.memory_space<vmem>>, vector<256x128xf32>,
    return
  }
  func.func @transform_0(%arg0: i32) -> (i32, i32) {
    %c0_i32 = arith.constant 0 : i32
    %c0_i32_0 = arith.constant 0 : i32
    return %arg0, %c0_i32 : i32, i32
  }
  func.func @transform_1(%arg0: i32) -> (i32, i32) {
    %c0_i32 = arith.constant 0 : i32
    %c0_i32_0 = arith.constant 0 : i32
    %c0_i32_1 = arith.constant 0 : i32
    return %c0_i32, %c0_i32_0 : i32, i32
  }
  func.func @transform_2(%arg0: i32) -> (i32, i32) {
    %c0_i32 = arith.constant 0 : i32
    %c0_i32_0 = arith.constant 0 : i32
    %c0_i32_1 = arith.constant 0 : i32
    return %c0_i32, %c0_i32_0 : i32, i32
  }
  func.func @transform_3(%arg0: i32) -> (i32, i32) {
    %c0_i32 = arith.constant 0 : i32
    %c0_i32_0 = arith.constant 0 : i32
    return %arg0, %c0_i32 : i32, i32
  }
}

module attributes {stable_mosaic.version = 11 : i64} {
  func.func @kernel(%arg0: i32, %arg1: memref<256x128xf32, #tpu.memory_space<vmem>>, %arg2: memref<128x512xbf16, #tpu.memory_space<vmem>>, %arg3: memref<512x128xbf16, #tpu.memory_space<vmem>>, %arg4: memref<256x128xf32, #tpu.memory_space<vmem>>) attributes {dimension_semantics = [#tpu.dimension_semantics<parallel>], iteration_bounds = array<i64: 2>, scalar_prefetch = 0 : i64, scratch_operands = 0 : i64, tpu.core_type = #tpu.core_type<tc>, window_params = [{transform_indices = @transform_0, window_bounds = array<i64: 256, 128>}, {pipeline_mode = #tpu.pipeline_mode<synchronous>, transform_indices = @transform_1, window_bounds = array<i64: 128, 512>}, {pipeline_mode = #tpu.pipeline_mode<synchronous>, transform_indices = @transform_2, window_bounds = array<i64: 512, 128>}, {transform_indices = @transform_3, window_bounds = array<i64: 256, 128>}]} {
    %c0 = arith.constant 0 : index
    %c0_0 = arith.constant 0 : index
    %0 = vector.load %arg1[%c0, %c0_0] : memref<256x128xf32, #tpu.memory_space<vmem>>, vector<256x128xf32>
    %1 = arith.truncf %0 : vector<256x128xf32> to vector<256x128xbf16>
    %c0_1 = arith.constant 0 : index
    %c0_2 = arith.constant 0 : index
    %2 = vector.load %arg2[%c0_1, %c0_2] : memref<128x512xbf16, #tpu.memory_space<vmem>>, vector<128x512xbf16>
    %cst = arith.constant dense<0.000000e+00> : vector<256x512xf32>
    %3 = tpu.matmul %1, %2, %cst {dimension_numbers = #tpu.dot_dimension_numbers<[1], [0], [0], [1], [0, 0, 1, 1], [], []>} : vector<256x128xbf16>, vector<128x512xbf16>, vector<256x512xf32> -> vector<256x512xf32>
    %cst_3 = arith.constant 0.000000e+00 : f32
    %4 = vector.broadcast %cst_3 : f32 to vector<256x512xf32>
    %5 = arith.maximumf %3, %4 : vector<256x512xf32>
    %6 = arith.mulf %5, %5 : vector<256x512xf32>
    %7 = arith.truncf %6 : vector<256x512xf32> to vector<256x512xbf16>
    %c0_4 = arith.constant 0 : index
    %c0_5 = arith.constant 0 : index
    %8 = vector.load %arg3[%c0_4, %c0_5] : memref<512x128xbf16, #tpu.memory_space<vmem>>, vector<512x128xbf16>
    %cst_6 = arith.constant dense<0.000000e+00> : vector<256x128xf32>
    %9 = tpu.matmul %7, %8, %cst_6 {dimension_numbers = #tpu.dot_dimension_numbers<[1], [0], [0], [1], [0, 0, 1, 1], [], []>} : vector<256x512xbf16>, vector<512x128xbf16>, vector<256x128xf32> -> vector<256x128xf32>
    %c0_7 = arith.constant 0 : index
    %c0_8 = arith.constant 0 : index
    %10 = vector.load %arg4[%c0_7, %c0_8] : memref<256x128xf32, #tpu.memory_space<vmem>>, vector<256x128xf32>
    tpu.vector_store %arg4[%c0_7, %c0_8], %9 {strides = array<i32>} : memref<256x128xf32, #tpu.memory_space<vmem>>, vector<256x128xf32>,
    return
  }
  func.func @transform_0(%arg0: i32) -> (i32, i32) {
    %c0_i32 = arith.constant 0 : i32
    %c0_i32_0 = arith.constant 0 : i32
    return %arg0, %c0_i32 : i32, i32
  }
  func.func @transform_1(%arg0: i32) -> (i32, i32) {
    %c0_i32 = arith.constant 0 : i32
    %c0_i32_0 = arith.constant 0 : i32
    %c0_i32_1 = arith.constant 0 : i32
    return %c0_i32, %c0_i32_0 : i32, i32
  }
  func.func @transform_2(%arg0: i32) -> (i32, i32) {
    %c0_i32 = arith.constant 0 : i32
    %c0_i32_0 = arith.constant 0 : i32
    %c0_i32_1 = arith.constant 0 : i32
    return %c0_i32, %c0_i32_0 : i32, i32
  }
  func.func @transform_3(%arg0: i32) -> (i32, i32) {
    %c0_i32 = arith.constant 0 : i32
    %c0_i32_0 = arith.constant 0 : i32
    return %arg0, %c0_i32 : i32, i32
  }
}

</mosaic_0001>

<llo_original>
// kernel: mlp_forward.1
$region0: #{mlp_forward.1}
  #allocation0 [shape = 'u32[]', space=smem, size = 0x4, offset = 0x4, fixed_abs, tag = 'smem constant byte address 0x4 - core index']
  #allocation1 [shape = 'u32[144,128]{1,0:T(1,128)}', space=vmem, size = 0x12000, scoped, tag = 'internal scratch']
  %s0 = inlined_call_operand.hbm [shape: f32[512,128], index: 0, kind: input, shape index: {}]
  %s1 = inlined_call_operand.hbm [shape: bf16[128,512], index: 1, kind: input, shape index: {}]
  %s2 = inlined_call_operand.hbm [shape: bf16[512,128], index: 2, kind: input, shape index: {}]
  %s3 = inlined_call_operand.hbm [shape: f32[512,128], index: 3, kind: output, shape index: {}]
  %s4 = sld [smem:[#allocation0]]
  $region57: #{mlp_forward.1} parent=0
    _
  %s6 = ssub.s32 1, %s4
  %s7 = scalar_select 0, %s6, %s4
  $region1: #{mlp_forward.1} parent=0
    #allocation2 [shape = 'u8[262144]{0}', space=vmem, size = 0x40000, scoped, tag = 'input window, operand 0']
    #allocation3 [shape = 's32[2]{0}', space=sflag, size = 0x8, scoped, tag = 'scoped memory for mlp_forward.1']
    #allocation4 [shape = 's32[2]{0}', space=sflag, size = 0x8, scoped, tag = 'scoped memory for mlp_forward.1']
    #allocation5 [shape = 'u8[131072]{0}', space=vmem, size = 0x20000, scoped, tag = 'input window, operand 1, single buffered']
    #allocation6 [shape = 's32[1]{0}', space=sflag, size = 0x4, scoped, tag = 'scoped memory for mlp_forward.1']
    #allocation7 [shape = 'u8[131072]{0}', space=vmem, size = 0x20000, scoped, tag = 'input window, operand 2, single buffered']
    #allocation8 [shape = 'u8[262144]{0}', space=vmem, size = 0x40000, scoped, tag = 'output window, operand 0']
    %8 = vsyncpa [#allocation3], 0
    %s9 = scalar_lea.sflag [#allocation3], 1
    %10 = vsyncpa %s9, 0
    %11 = vsyncpa [#allocation6], 0
    %12 = vsyncpa [#allocation4], 0
    %s13 = scalar_lea.sflag [#allocation4], 1
    %14 = vsyncpa %s13, 0
    loop: start=0, step=1, limit=4
    $region2: #{mlp_forward.1} parent=1 // loop_pre_header
      _
    $region3: #{mlp_forward.1} parent=1 // loop_header
      %s16 = sphi 0, %s20
      %p17 = scmp.ge.s32.totalorder %s16, 4
      %s26 = sphi 0, %s28
      %s29 = sphi 0, %s26
      %s30 = sphi 0, %s29
      %s46 = sphi 0, %s30
      %s50 = sphi 0, %s50
      %s52 = sphi 0, %s50
      %s53 = sphi 0, %s52
      %s67 = sphi 0, %s53
      %s71 = sphi 0, %s71
      %s73 = sphi 0, %s71
      %s74 = sphi 0, %s73
      %s88 = sphi 0, %s74
      %s94 = sphi 0, %s96
      %s97 = sphi 0, %s94
      %s98 = sphi 0, %s97
      %s114 = sphi 0, %s98
    $region4: #{mlp_forward.1} parent=1 // loop_header_branch
      %19 = sbr.rel (%p17) target = $region8
    $region5: #{mlp_forward.1} parent=1 // loop_body
      %s21 = ssub.s32 %s16, 1
      %s22 = ssub.s32 %s16, 2
      %s23 = sadd.s32 %s16, 1
      %s24 = ssub.s32 %s16, %s23
      %p25 = scmp.eq.s32.totalorder %s24, 0
      %s27 = sadd.s32 %s26, 1
      %s28 = scalar_select %p25, %s26, %s27
      %p31 = pneg %p25
      %p32 = scmp.eq.s32.totalorder %s16, 1
      %p33 = por %p31, %p32
      %p34 = scmp.ne.s32.totalorder %s26, %s29
      %p35 = scmp.eq.s32.totalorder %s16, 0
      %p36 = por %p34, %p35
      %p37 = scmp.ne.s32.totalorder %s26, %s29
      %p38 = scmp.eq.s32.totalorder %s21, 1
      %p39 = por %p37, %p38
      %p40 = scmp.ne.s32.totalorder %s29, %s30
      %p41 = scmp.eq.s32.totalorder %s21, 0
      %p42 = por %p40, %p41
      %p43 = scmp.ne.s32.totalorder %s29, %s30
      %p44 = scmp.eq.s32.totalorder %s22, 1
      %p45 = por %p43, %p44
      %p47 = scmp.ne.s32.totalorder %s30, %s46
      %p48 = scmp.eq.s32.totalorder %s22, 0
      %p49 = por %p47, %p48
      %s51 = sadd.s32 %s50, 1
      %p54 = scmp.eq.s32.totalorder %s16, 1
      %p55 = scmp.ne.s32.totalorder %s50, %s52
      %p56 = scmp.eq.s32.totalorder %s16, 0
      %p57 = por %p55, %p56
      %p58 = scmp.ne.s32.totalorder %s50, %s52
      %p59 = scmp.eq.s32.totalorder %s21, 1
      %p60 = por %p58, %p59
      %p61 = scmp.ne.s32.totalorder %s52, %s53
      %p62 = scmp.eq.s32.totalorder %s21, 0
      %p63 = por %p61, %p62
      %p64 = scmp.ne.s32.totalorder %s52, %s53
      %p65 = scmp.eq.s32.totalorder %s22, 1
      %p66 = por %p64, %p65
      %p68 = scmp.ne.s32.totalorder %s53, %s67
      %p69 = scmp.eq.s32.totalorder %s22, 0
      %p70 = por %p68, %p69
      %s72 = sadd.s32 %s71, 1
      %p75 = scmp.eq.s32.totalorder %s16, 1
      %p76 = scmp.ne.s32.totalorder %s71, %s73
      %p77 = scmp.eq.s32.totalorder %s16, 0
      %p78 = por %p76, %p77
      %p79 = scmp.ne.s32.totalorder %s71, %s73
      %p80 = scmp.eq.s32.totalorder %s21, 1
      %p81 = por %p79, %p80
      %p82 = scmp.ne.s32.totalorder %s73, %s74
      %p83 = scmp.eq.s32.totalorder %s21, 0
      %p84 = por %p82, %p83
      %p85 = scmp.ne.s32.totalorder %s73, %s74
      %p86 = scmp.eq.s32.totalorder %s22, 1
      %p87 = por %p85, %p86
      %p89 = scmp.ne.s32.totalorder %s74, %s88
      %p90 = scmp.eq.s32.totalorder %s22, 0
      %p91 = por %p89, %p90
      %s92 = ssub.s32 %s16, %s23
      %p93 = scmp.eq.s32.totalorder %s92, 0
      %s95 = sadd.s32 %s94, 1
      %s96 = scalar_select %p93, %s94, %s95
      %p99 = pneg %p93
      %p100 = scmp.eq.s32.totalorder %s16, 1
      %p101 = por %p99, %p100
      %p102 = scmp.ne.s32.totalorder %s94, %s97
      %p103 = scmp.eq.s32.totalorder %s16, 0
      %p104 = por %p102, %p103
      %p105 = scmp.ne.s32.totalorder %s94, %s97
      %p106 = scmp.eq.s32.totalorder %s21, 1
      %p107 = por %p105, %p106
      %p108 = scmp.ne.s32.totalorder %s97, %s98
      %p109 = scmp.eq.s32.totalorder %s21, 0
      %p110 = por %p108, %p109
      %p111 = scmp.ne.s32.totalorder %s97, %s98
      %p112 = scmp.eq.s32.totalorder %s22, 1
      %p113 = por %p111, %p112
      %p115 = scmp.ne.s32.totalorder %s98, %s114
      %p116 = scmp.eq.s32.totalorder %s22, 0
      %p117 = por %p115, %p116
      %p118 = scmp.le.s32.totalorder 1, %s16
      %p119 = scmp.lt.s32.totalorder %s16, 3
      %p120 = pnand %p118, %p119
      %p121 = pneg %p120
      // Predicated region
      $region9: #{mlp_forward.1} parent=5 // pred_check
        _
      $region10: #{mlp_forward.1} parent=5 // pred_check_branch
        %123 = sbr.rel (%p120) target = $region12
      $region11: #{mlp_forward.1} parent=5 // pred_region
        %s124 = ssub.s32 %s16, 1
        // Predicated region
        $region13: #{mlp_forward.1} parent=11 // pred_check
          %p125 = pneg %p63
        $region14: #{mlp_forward.1} parent=11 // pred_check_branch
          %127 = sbr.rel (%p125) target = $region16
        $region15: #{mlp_forward.1} parent=11 // pred_region
          %s129 = ssub.s32 4096, 4096
          %130 = vsyncadd [#allocation6], %s129
          %s131 = sshll.u32 [#allocation5], 4
          %s132 = int_to_ptr.vmem [resolvable:$true] %s131
          %137 = dma.hbm_to_vmem [thread:$0]  %s1, 4096, %s132, [#allocation6], 256, 256, 16
        $region16: #{mlp_forward.1} parent=11 // pred_fallthru
          _
        // Predicated region
        $region17: #{mlp_forward.1} parent=11 // pred_check
          %p138 = pneg %p84
        $region18: #{mlp_forward.1} parent=11 // pred_check_branch
          %140 = sbr.rel (%p138) target = $region20
        $region19: #{mlp_forward.1} parent=11 // pred_region
          %s142 = ssub.s32 4096, 4096
          %143 = vsyncadd [#allocation6], %s142
          %s144 = sshll.u32 [#allocation7], 4
          %s145 = int_to_ptr.vmem [resolvable:$true] %s144
          %150 = dma.hbm_to_vmem [thread:$0]  %s2, 4096, %s145, [#allocation6], 64, 64, 4
        $region20: #{mlp_forward.1} parent=11 // pred_fallthru
          _
      $region12: #{mlp_forward.1} parent=5 // pred_fallthru
        _
      %p151 = scmp.lt.s32.totalorder %s16, 2
      // Predicated region
      $region21: #{mlp_forward.1} parent=5 // pred_check
        %p152 = pneg %p151
      $region22: #{mlp_forward.1} parent=5 // pred_check_branch
        %154 = sbr.rel (%p152) target = $region24
      $region23: #{mlp_forward.1} parent=5 // pred_region
        // Predicated region
        $region25: #{mlp_forward.1} parent=23 // pred_check
          %p155 = pneg %p36
        $region26: #{mlp_forward.1} parent=23 // pred_check_branch
          %157 = sbr.rel (%p155) target = $region28
        $region27: #{mlp_forward.1} parent=23 // pred_region
          %s158 = sand.u32 %s26, 1
          %s159 = scalar_lea.sflag [#allocation3], %s158
          %s160 = sand.u32 %s26, 1
          %s161 = smul.addr %s160, 256
          %s162 = scalar_lea.vmem [#allocation2], %s161
          %s163 = smul.u32 32, %s16
          %s165 = ssub.s32 4096, 4096
          %166 = vsyncadd %s159, %s165
          %s167 = smul.addr %s163, 128
          %s168 = scalar_lea.hbm %s0, %s167
          %s169 = sshll.u32 %s162, 4
          %s170 = int_to_ptr.vmem [resolvable:$true] %s169
          %175 = dma.hbm_to_vmem [thread:$0]  %s168, 4096, %s170, %s159, 128, 128, 8
        $region28: #{mlp_forward.1} parent=23 // pred_fallthru
          _
      $region24: #{mlp_forward.1} parent=5 // pred_fallthru
        _
      %p176 = scmp.le.s32.totalorder 1, %s16
      %p177 = scmp.lt.s32.totalorder %s16, 3
      %p178 = pnand %p176, %p177
      %p179 = pneg %p178
      // Predicated region
      $region29: #{mlp_forward.1} parent=5 // pred_check
        _
      $region30: #{mlp_forward.1} parent=5 // pred_check_branch
        %181 = sbr.rel (%p178) target = $region32
      $region31: #{mlp_forward.1} parent=5 // pred_region
        %s182 = ssub.s32 %s16, 1
        %s183 = sand.u32 %s29, 1
        %s184 = scalar_lea.sflag [#allocation3], %s183
        %s185 = sand.u32 %s29, 1
        %s186 = smul.addr %s185, 256
        %s187 = scalar_lea.vmem [#allocation2], %s186
        // Predicated region
        $region33: #{mlp_forward.1} parent=31 // pred_check
          %p188 = pneg %p42
        $region34: #{mlp_forward.1} parent=31 // pred_check_branch
          %190 = sbr.rel (%p188) target = $region36
        $region35: #{mlp_forward.1} parent=31 // pred_region
          %191 = dma.done %s184, 4096
        $region36: #{mlp_forward.1} parent=31 // pred_fallthru
          _
        // Predicated region
        $region37: #{mlp_forward.1} parent=31 // pred_check
          %p192 = pneg %p63
        $region38: #{mlp_forward.1} parent=31 // pred_check_branch
          %194 = sbr.rel (%p192) target = $region40
        $region39: #{mlp_forward.1} parent=31 // pred_region
          %195 = dma.done [#allocation6], 4096
        $region40: #{mlp_forward.1} parent=31 // pred_fallthru
          _
        // Predicated region
        $region41: #{mlp_forward.1} parent=31 // pred_check
          %p196 = pneg %p84
        $region42: #{mlp_forward.1} parent=31 // pred_check_branch
          %198 = sbr.rel (%p196) target = $region44
        $region43: #{mlp_forward.1} parent=31 // pred_region
          %199 = dma.done [#allocation6], 4096
        $region44: #{mlp_forward.1} parent=31 // pred_fallthru
          _
        %s200 = sand.u32 %s29, 1
        %s201 = scalar_lea.sflag [#allocation3], %s200
        %s202 = sand.u32 %s29, 1
        %s203 = smul.addr %s202, 256
        %s204 = scalar_lea.vmem [#allocation2], %s203
        %p205 = pneg %p42
        %p206 = pneg %p39
        %p207 = pneg %p63
        %p208 = pneg %p60
        %p209 = pneg %p84
        %p210 = pneg %p81
        %p211 = pneg %p110
        %p212 = pneg %p107
        %s213 = sand.u32 %s97, 1
        %s214 = scalar_lea.sflag [#allocation4], %s213
        %s215 = sand.u32 %s97, 1
        %s216 = smul.addr %s215, 256
        %s217 = scalar_lea.vmem [#allocation8], %s216
        %s218 = smul.u32 32, %s21
        %s219 = smul.u32 32, %s21
        %v221 = vld [vmem:[%s187] sm:$0xff]
        %v222 = vld [vmem:[%s187 + $0x8] sm:$0xff]
        %v223 = vld [vmem:[%s187 + $0x10] sm:$0xff]
        %v224 = vld [vmem:[%s187 + $0x18] sm:$0xff]
        %v225 = vld [vmem:[%s187 + $0x20] sm:$0xff]
        %v226 = vld [vmem:[%s187 + $0x28] sm:$0xff]
        %v227 = vld [vmem:[%s187 + $0x30] sm:$0xff]
        %v228 = vld [vmem:[%s187 + $0x38] sm:$0xff]
        %v229 = vld [vmem:[%s187 + $0x40] sm:$0xff]
        %v230 = vld [vmem:[%s187 + $0x48] sm:$0xff]
        %v231 = vld [vmem:[%s187 + $0x50] sm:$0xff]
        %v232 = vld [vmem:[%s187 + $0x58] sm:$0xff]
        %v233 = vld [vmem:[%s187 + $0x60] sm:$0xff]
        %v234 = vld [vmem:[%s187 + $0x68] sm:$0xff]
        %v235 = vld [vmem:[%s187 + $0x70] sm:$0xff]
        %v236 = vld [vmem:[%s187 + $0x78] sm:$0xff]
        %v237 = vld [vmem:[%s187 + $0x80] sm:$0xff]
        %v238 = vld [vmem:[%s187 + $0x88] sm:$0xff]
        %v239 = vld [vmem:[%s187 + $0x90] sm:$0xff]
        %v240 = vld [vmem:[%s187 + $0x98] sm:$0xff]
        %v241 = vld [vmem:[%s187 + $0xa0] sm:$0xff]
        %v242 = vld [vmem:[%s187 + $0xa8] sm:$0xff]
        %v243 = vld [vmem:[%s187 + $0xb0] sm:$0xff]
        %v244 = vld [vmem:[%s187 + $0xb8] sm:$0xff]
        %v245 = vld [vmem:[%s187 + $0xc0] sm:$0xff]
        %v246 = vld [vmem:[%s187 + $0xc8] sm:$0xff]
        %v247 = vld [vmem:[%s187 + $0xd0] sm:$0xff]
        %v248 = vld [vmem:[%s187 + $0xd8] sm:$0xff]
        %v249 = vld [vmem:[%s187 + $0xe0] sm:$0xff]
        %v250 = vld [vmem:[%s187 + $0xe8] sm:$0xff]
        %v251 = vld [vmem:[%s187 + $0xf0] sm:$0xff]
        %v252 = vld [vmem:[%s187 + $0xf8] sm:$0xff]
        %v253 = vpack.c.bf16 %v222, %v221
        %v254 = vpack.c.bf16 %v224, %v223
        %v255 = vpack.c.bf16 %v226, %v225
        %v256 = vpack.c.bf16 %v228, %v227
        %v257 = vpack.c.bf16 %v230, %v229
        %v258 = vpack.c.bf16 %v232, %v231
        %v259 = vpack.c.bf16 %v234, %v233
        %v260 = vpack.c.bf16 %v236, %v235
        %v261 = vpack.c.bf16 %v238, %v237
        %v262 = vpack.c.bf16 %v240, %v239
        %v263 = vpack.c.bf16 %v242, %v241
        %v264 = vpack.c.bf16 %v244, %v243
        %v265 = vpack.c.bf16 %v246, %v245
        %v266 = vpack.c.bf16 %v248, %v247
        %v267 = vpack.c.bf16 %v250, %v249
        %v268 = vpack.c.bf16 %v252, %v251
        %v269 = vld [vmem:[#allocation5] sm:$0xff]
        %v270 = vld [vmem:[#allocation5 + $0x8] sm:$0xff]
        %v271 = vld [vmem:[#allocation5 + $0x10] sm:$0xff]
        %v272 = vld [vmem:[#allocation5 + $0x18] sm:$0xff]
        %v273 = vld [vmem:[#allocation5 + $0x20] sm:$0xff]
        %v274 = vld [vmem:[#allocation5 + $0x28] sm:$0xff]
        %v275 = vld [vmem:[#allocation5 + $0x30] sm:$0xff]
        %v276 = vld [vmem:[#allocation5 + $0x38] sm:$0xff]
        %v277 = vld [vmem:[#allocation5 + $0x40] sm:$0xff]
        %v278 = vld [vmem:[#allocation5 + $0x48] sm:$0xff]
        %v279 = vld [vmem:[#allocation5 + $0x50] sm:$0xff]
        %v280 = vld [vmem:[#allocation5 + $0x58] sm:$0xff]
        %v281 = vld [vmem:[#allocation5 + $0x60] sm:$0xff]
        %v282 = vld [vmem:[#allocation5 + $0x68] sm:$0xff]
        %v283 = vld [vmem:[#allocation5 + $0x70] sm:$0xff]
        %v284 = vld [vmem:[#allocation5 + $0x78] sm:$0xff]
        %v285 = vld [vmem:[#allocation5 + $0x80] sm:$0xff]
        %v286 = vld [vmem:[#allocation5 + $0x88] sm:$0xff]
        %v287 = vld [vmem:[#allocation5 + $0x90] sm:$0xff]
        %v288 = vld [vmem:[#allocation5 + $0x98] sm:$0xff]
        %v289 = vld [vmem:[#allocation5 + $0xa0] sm:$0xff]
        %v290 = vld [vmem:[#allocation5 + $0xa8] sm:$0xff]
        %v291 = vld [vmem:[#allocation5 + $0xb0] sm:$0xff]
        %v292 = vld [vmem:[#allocation5 + $0xb8] sm:$0xff]
        %v293 = vld [vmem:[#allocation5 + $0xc0] sm:$0xff]
        %v294 = vld [vmem:[#allocation5 + $0xc8] sm:$0xff]
        %v295 = vld [vmem:[#allocation5 + $0xd0] sm:$0xff]
        %v296 = vld [vmem:[#allocation5 + $0xd8] sm:$0xff]
        %v297 = vld [vmem:[#allocation5 + $0xe0] sm:$0xff]
        %v298 = vld [vmem:[#allocation5 + $0xe8] sm:$0xff]
        %v299 = vld [vmem:[#allocation5 + $0xf0] sm:$0xff]
        %v300 = vld [vmem:[#allocation5 + $0xf8] sm:$0xff]
        %v333 = vunpack.c.l.b16 %v269
        %v334 = vunpack.c.h.b16 %v269
        %v335 = vunpack.c.l.b16 %v270
        %v336 = vunpack.c.h.b16 %v270
        %v337 = vunpack.c.l.b16 %v271
        %v338 = vunpack.c.h.b16 %v271
        %v339 = vunpack.c.l.b16 %v272
        %v340 = vunpack.c.h.b16 %v272
        %v341 = vunpack.c.l.b16 %v273
        %v342 = vunpack.c.h.b16 %v273
        %v343 = vunpack.c.l.b16 %v274
        %v344 = vunpack.c.h.b16 %v274
        %v345 = vunpack.c.l.b16 %v275
        %v346 = vunpack.c.h.b16 %v275
        %v347 = vunpack.c.l.b16 %v276
        %v348 = vunpack.c.h.b16 %v276
        %v349 = vunpack.c.l.b16 %v277
        %v350 = vunpack.c.h.b16 %v277
        %v351 = vunpack.c.l.b16 %v278
        %v352 = vunpack.c.h.b16 %v278
        %v353 = vunpack.c.l.b16 %v279
        %v354 = vunpack.c.h.b16 %v279
        %v355 = vunpack.c.l.b16 %v280
        %v356 = vunpack.c.h.b16 %v280
        %v357 = vunpack.c.l.b16 %v281
        %v358 = vunpack.c.h.b16 %v281
        %v359 = vunpack.c.l.b16 %v282
        %v360 = vunpack.c.h.b16 %v282
        %v361 = vunpack.c.l.b16 %v283
        %v362 = vunpack.c.h.b16 %v283
        %v363 = vunpack.c.l.b16 %v284
        %v364 = vunpack.c.h.b16 %v284
        %v365 = vunpack.c.l.b16 %v285
        %v366 = vunpack.c.h.b16 %v285
        %v367 = vunpack.c.l.b16 %v286
        %v368 = vunpack.c.h.b16 %v286
        %v369 = vunpack.c.l.b16 %v287
        %v370 = vunpack.c.h.b16 %v287
        %v371 = vunpack.c.l.b16 %v288
        %v372 = vunpack.c.h.b16 %v288
        %v373 = vunpack.c.l.b16 %v289
        %v374 = vunpack.c.h.b16 %v289
        %v375 = vunpack.c.l.b16 %v290
        %v376 = vunpack.c.h.b16 %v290
        %v377 = vunpack.c.l.b16 %v291
        %v378 = vunpack.c.h.b16 %v291
        %v379 = vunpack.c.l.b16 %v292
        %v380 = vunpack.c.h.b16 %v292
        %v381 = vunpack.c.l.b16 %v293
        %v382 = vunpack.c.h.b16 %v293
        %v383 = vunpack.c.l.b16 %v294
        %v384 = vunpack.c.h.b16 %v294
        %v385 = vunpack.c.l.b16 %v295
        %v386 = vunpack.c.h.b16 %v295
        %v387 = vunpack.c.l.b16 %v296
        %v388 = vunpack.c.h.b16 %v296
        %v389 = vunpack.c.l.b16 %v297
        %v390 = vunpack.c.h.b16 %v297
        %v391 = vunpack.c.l.b16 %v298
        %v392 = vunpack.c.h.b16 %v298
        %v393 = vunpack.c.l.b16 %v299
        %v394 = vunpack.c.h.b16 %v299
        %v395 = vunpack.c.l.b16 %v300
        %v396 = vunpack.c.h.b16 %v300
        %v397 = vpack.c.b16 %v337, %v333
        %v398 = vpack.c.b16 %v338, %v334
        %v399 = vpack.c.b16 %v339, %v335
        %v400 = vpack.c.b16 %v340, %v336
        %v401 = vpack.c.b16 %v345, %v341
        %v402 = vpack.c.b16 %v346, %v342
        %v403 = vpack.c.b16 %v347, %v343
        %v404 = vpack.c.b16 %v348, %v344
        %v405 = vpack.c.b16 %v353, %v349
        %v406 = vpack.c.b16 %v354, %v350
        %v407 = vpack.c.b16 %v355, %v351
        %v408 = vpack.c.b16 %v356, %v352
        %v409 = vpack.c.b16 %v361, %v357
        %v410 = vpack.c.b16 %v362, %v358
        %v411 = vpack.c.b16 %v363, %v359
        %v412 = vpack.c.b16 %v364, %v360
        %v413 = vpack.c.b16 %v369, %v365
        %v414 = vpack.c.b16 %v370, %v366
        %v415 = vpack.c.b16 %v371, %v367
        %v416 = vpack.c.b16 %v372, %v368
        %v417 = vpack.c.b16 %v377, %v373
        %v418 = vpack.c.b16 %v378, %v374
        %v419 = vpack.c.b16 %v379, %v375
        %v420 = vpack.c.b16 %v380, %v376
        %v421 = vpack.c.b16 %v385, %v381
        %v422 = vpack.c.b16 %v386, %v382
        %v423 = vpack.c.b16 %v387, %v383
        %v424 = vpack.c.b16 %v388, %v384
        %v425 = vpack.c.b16 %v393, %v389
        %v426 = vpack.c.b16 %v394, %v390
        %v427 = vpack.c.b16 %v395, %v391
        %v428 = vpack.c.b16 %v396, %v392
        %461 = vmatprep.subr.bf16.mxu0 %v398
        %462 = vmatpush1.bf16.msra.mxu0 %v397
        %463 = vmatprep.subr.bf16.mxu0 %v402
        %464 = vmatpush1.bf16.msra.mxu0 %v401
        %465 = vmatprep.subr.bf16.mxu0 %v406
        %466 = vmatpush1.bf16.msra.mxu0 %v405
        %467 = vmatprep.subr.bf16.mxu0 %v410
        %468 = vmatpush1.bf16.msra.mxu0 %v409
        %469 = vmatprep.subr.bf16.mxu0 %v414
        %470 = vmatpush1.bf16.msra.mxu0 %v413
        %471 = vmatprep.subr.bf16.mxu0 %v418
        %472 = vmatpush1.bf16.msra.mxu0 %v417
        %473 = vmatprep.subr.bf16.mxu0 %v422
        %474 = vmatpush1.bf16.msra.mxu0 %v421
        %475 = vmatprep.subr.bf16.mxu0 %v426
        %476 = vmatpush1.bf16.msra.mxu0 %v425
        %477 = vmatprep.subr.bf16.mxu0 0
        %478 = vmatpush1.bf16.msra.mxu0 0
        %479 = vmatprep.subr.bf16.mxu0 0
        %480 = vmatpush1.bf16.msra.mxu0 0
        %481 = vmatprep.subr.bf16.mxu0 0
        %482 = vmatpush1.bf16.msra.mxu0 0
        %483 = vmatprep.subr.bf16.mxu0 0
        %484 = vmatpush1.bf16.msra.mxu0 0
        %485 = vmatprep.subr.bf16.mxu0 0
        %486 = vmatpush1.bf16.msra.mxu0 0
        %487 = vmatprep.subr.bf16.mxu0 0
        %488 = vmatpush1.bf16.msra.mxu0 0
        %489 = vmatprep.subr.bf16.mxu0 0
        %490 = vmatpush1.bf16.msra.mxu0 0
        %491 = vmatprep.subr.bf16.mxu0 0
        %492 = vmatpush1.bf16.msra.mxu0 0
        %493 = vmatprep.mubr.bf16.mxu0 0
        %494 = vmatmul.mubr.bf16.gmra.mrb[0].mxu0 %v253
        %v495 = vpop.f32.mrb[0].mxu0
        %v496 = vadd.f32 0.0, %v495
        %v497 = vpop.f32.mrb[0].mxu0
        %v498 = vadd.f32 0.0, %v497
        %v499 = vpop.f32.mrb[0].mxu0
        %v500 = vadd.f32 0.0, %v499
        %v501 = vpop.f32.mrb[0].mxu0
        %v502 = vadd.f32 0.0, %v501
        %503 = vmatprep.mubr.bf16.mxu0 0
        %504 = vmatmul.mubr.bf16.gmra.mrb[0].mxu0 %v254
        %v505 = vpop.f32.mrb[0].mxu0
        %v506 = vadd.f32 0.0, %v505
        %v507 = vpop.f32.mrb[0].mxu0
        %v508 = vadd.f32 0.0, %v507
        %v509 = vpop.f32.mrb[0].mxu0
        %v510 = vadd.f32 0.0, %v509
        %v511 = vpop.f32.mrb[0].mxu0
        %v512 = vadd.f32 0.0, %v511
        %513 = vmatprep.mubr.bf16.mxu0 0
        %514 = vmatmul.mubr.bf16.gmra.mrb[0].mxu0 %v255
        %v515 = vpop.f32.mrb[0].mxu0
        %v516 = vadd.f32 0.0, %v515
        %v517 = vpop.f32.mrb[0].mxu0
        %v518 = vadd.f32 0.0, %v517
        %v519 = vpop.f32.mrb[0].mxu0
        %v520 = vadd.f32 0.0, %v519
        %v521 = vpop.f32.mrb[0].mxu0
        %v522 = vadd.f32 0.0, %v521
        %523 = vmatprep.mubr.bf16.mxu0 0
        %524 = vmatmul.mubr.bf16.gmra.mrb[0].mxu0 %v256
        %v525 = vpop.f32.mrb[0].mxu0
        %v526 = vadd.f32 0.0, %v525
        %v527 = vpop.f32.mrb[0].mxu0
        %v528 = vadd.f32 0.0, %v527
        %v529 = vpop.f32.mrb[0].mxu0
        %v530 = vadd.f32 0.0, %v529
        %v531 = vpop.f32.mrb[0].mxu0
        %v532 = vadd.f32 0.0, %v531
        %533 = vmatprep.mubr.bf16.mxu0 0
        %534 = vmatmul.mubr.bf16.gmra.mrb[0].mxu0 %v257
        %v535 = vpop.f32.mrb[0].mxu0
        %v536 = vadd.f32 0.0, %v535
        %v537 = vpop.f32.mrb[0].mxu0
        %v538 = vadd.f32 0.0, %v537
        %v539 = vpop.f32.mrb[0].mxu0
        %v540 = vadd.f32 0.0, %v539
        %v541 = vpop.f32.mrb[0].mxu0
        %v542 = vadd.f32 0.0, %v541
        %543 = vmatprep.mubr.bf16.mxu0 0
        %544 = vmatmul.mubr.bf16.gmra.mrb[0].mxu0 %v258
        %v545 = vpop.f32.mrb[0].mxu0
        %v546 = vadd.f32 0.0, %v545
        %v547 = vpop.f32.mrb[0].mxu0
        %v548 = vadd.f32 0.0, %v547
        %v549 = vpop.f32.mrb[0].mxu0
        %v550 = vadd.f32 0.0, %v549
        %v551 = vpop.f32.mrb[0].mxu0
        %v552 = vadd.f32 0.0, %v551
        %553 = vmatprep.mubr.bf16.mxu0 0
        %554 = vmatmul.mubr.bf16.gmra.mrb[0].mxu0 %v259
        %v555 = vpop.f32.mrb[0].mxu0
        %v556 = vadd.f32 0.0, %v555
        %v557 = vpop.f32.mrb[0].mxu0
        %v558 = vadd.f32 0.0, %v557
        %v559 = vpop.f32.mrb[0].mxu0
        %v560 = vadd.f32 0.0, %v559
        %v561 = vpop.f32.mrb[0].mxu0
        %v562 = vadd.f32 0.0, %v561
        %563 = vmatprep.mubr.bf16.mxu0 0
        %564 = vmatmul.mubr.bf16.gmra.mrb[0].mxu0 %v260
        %v565 = vpop.f32.mrb[0].mxu0
        %v566 = vadd.f32 0.0, %v565
        %v567 = vpop.f32.mrb[0].mxu0
        %v568 = vadd.f32 0.0, %v567
        %v569 = vpop.f32.mrb[0].mxu0
        %v570 = vadd.f32 0.0, %v569
        %v571 = vpop.f32.mrb[0].mxu0
        %v572 = vadd.f32 0.0, %v571
        %573 = vmatprep.mubr.bf16.mxu0 0
        %574 = vmatmul.mubr.bf16.gmra.mrb[0].mxu0 %v261
        %v575 = vpop.f32.mrb[0].mxu0
        %v576 = vadd.f32 0.0, %v575
        %v577 = vpop.f32.mrb[0].mxu0
        %v578 = vadd.f32 0.0, %v577
        %v579 = vpop.f32.mrb[0].mxu0
        %v580 = vadd.f32 0.0, %v579
        %v581 = vpop.f32.mrb[0].mxu0
        %v582 = vadd.f32 0.0, %v581
        %583 = vmatprep.mubr.bf16.mxu0 0
        %584 = vmatmul.mubr.bf16.gmra.mrb[0].mxu0 %v262
        %v585 = vpop.f32.mrb[0].mxu0
        %v586 = vadd.f32 0.0, %v585
        %v587 = vpop.f32.mrb[0].mxu0
        %v588 = vadd.f32 0.0, %v587
        %v589 = vpop.f32.mrb[0].mxu0
        %v590 = vadd.f32 0.0, %v589
        %v591 = vpop.f32.mrb[0].mxu0
        %v592 = vadd.f32 0.0, %v591
        %593 = vmatprep.mubr.bf16.mxu0 0
        %594 = vmatmul.mubr.bf16.gmra.mrb[0].mxu0 %v263
        %v595 = vpop.f32.mrb[0].mxu0
        %v596 = vadd.f32 0.0, %v595
        %v597 = vpop.f32.mrb[0].mxu0
        %v598 = vadd.f32 0.0, %v597
        %v599 = vpop.f32.mrb[0].mxu0
        %v600 = vadd.f32 0.0, %v599
        %v601 = vpop.f32.mrb[0].mxu0
        %v602 = vadd.f32 0.0, %v601
        %603 = vmatprep.mubr.bf16.mxu0 0
        %604 = vmatmul.mubr.bf16.gmra.mrb[0].mxu0 %v264
        %v605 = vpop.f32.mrb[0].mxu0
        %v606 = vadd.f32 0.0, %v605
        %v607 = vpop.f32.mrb[0].mxu0
        %v608 = vadd.f32 0.0, %v607
        %v609 = vpop.f32.mrb[0].mxu0
        %v610 = vadd.f32 0.0, %v609
        %v611 = vpop.f32.mrb[0].mxu0
        %v612 = vadd.f32 0.0, %v611
        %613 = vmatprep.mubr.bf16.mxu0 0
        %614 = vmatmul.mubr.bf16.gmra.mrb[0].mxu0 %v265
        %v615 = vpop.f32.mrb[0].mxu0
        %v616 = vadd.f32 0.0, %v615
        %v617 = vpop.f32.mrb[0].mxu0
        %v618 = vadd.f32 0.0, %v617
        %v619 = vpop.f32.mrb[0].mxu0
        %v620 = vadd.f32 0.0, %v619
        %v621 = vpop.f32.mrb[0].mxu0
        %v622 = vadd.f32 0.0, %v621
        %623 = vmatprep.mubr.bf16.mxu0 0
        %624 = vmatmul.mubr.bf16.gmra.mrb[0].mxu0 %v266
        %v625 = vpop.f32.mrb[0].mxu0
        %v626 = vadd.f32 0.0, %v625
        %v627 = vpop.f32.mrb[0].mxu0
        %v628 = vadd.f32 0.0, %v627
        %v629 = vpop.f32.mrb[0].mxu0
        %v630 = vadd.f32 0.0, %v629
        %v631 = vpop.f32.mrb[0].mxu0
        %v632 = vadd.f32 0.0, %v631
        %633 = vmatprep.mubr.bf16.mxu0 0
        %634 = vmatmul.mubr.bf16.gmra.mrb[0].mxu0 %v267
        %v635 = vpop.f32.mrb[0].mxu0
        %v636 = vadd.f32 0.0, %v635
        %v637 = vpop.f32.mrb[0].mxu0
        %v638 = vadd.f32 0.0, %v637
        %v639 = vpop.f32.mrb[0].mxu0
        %v640 = vadd.f32 0.0, %v639
        %v641 = vpop.f32.mrb[0].mxu0
        %v642 = vadd.f32 0.0, %v641
        %643 = vmatprep.mubr.bf16.mxu0 0
        %644 = vmatmul.mubr.bf16.gmra.mrb[0].mxu0 %v268
        %v645 = vpop.f32.mrb[0].mxu0
        %v646 = vadd.f32 0.0, %v645
        %v647 = vpop.f32.mrb[0].mxu0
        %v648 = vadd.f32 0.0, %v647
        %v649 = vpop.f32.mrb[0].mxu0
        %v650 = vadd.f32 0.0, %v649
        %v651 = vpop.f32.mrb[0].mxu0
        %v652 = vadd.f32 0.0, %v651
        %653 = vdwg.mxu0
        %654 = vmatprep.subr.bf16.mxu0 %v400
        %655 = vmatpush1.bf16.msra.mxu0 %v399
        %656 = vmatprep.subr.bf16.mxu0 %v404
        %657 = vmatpush1.bf16.msra.mxu0 %v403
        %658 = vmatprep.subr.bf16.mxu0 %v408
        %659 = vmatpush1.bf16.msra.mxu0 %v407
        %660 = vmatprep.subr.bf16.mxu0 %v412
        %661 = vmatpush1.bf16.msra.mxu0 %v411
        %662 = vmatprep.subr.bf16.mxu0 %v416
        %663 = vmatpush1.bf16.msra.mxu0 %v415
        %664 = vmatprep.subr.bf16.mxu0 %v420
        %665 = vmatpush1.bf16.msra.mxu0 %v419
        %666 = vmatprep.subr.bf16.mxu0 %v424
        %667 = vmatpush1.bf16.msra.mxu0 %v423
        %668 = vmatprep.subr.bf16.mxu0 %v428
        %669 = vmatpush1.bf16.msra.mxu0 %v427
        %670 = vmatprep.subr.bf16.mxu0 0
        %671 = vmatpush1.bf16.msra.mxu0 0
        %672 = vmatprep.subr.bf16.mxu0 0
        %673 = vmatpush1.bf16.msra.mxu0 0
        %674 = vmatprep.subr.bf16.mxu0 0
        %675 = vmatpush1.bf16.msra.mxu0 0
        %676 = vmatprep.subr.bf16.mxu0 0
        %677 = vmatpush1.bf16.msra.mxu0 0
        %678 = vmatprep.subr.bf16.mxu0 0
        %679 = vmatpush1.bf16.msra.mxu0 0
        %680 = vmatprep.subr.bf16.mxu0 0
        %681 = vmatpush1.bf16.msra.mxu0 0
        %682 = vmatprep.subr.bf16.mxu0 0
        %683 = vmatpush1.bf16.msra.mxu0 0
        %684 = vmatprep.subr.bf16.mxu0 0
        %685 = vmatpush1.bf16.msra.mxu0 0
        %686 = vmatprep.mubr.bf16.mxu0 0
        %687 = vmatmul.mubr.bf16.gmra.mrb[0].mxu0 %v253
        %v688 = vpop.f32.mrb[0].mxu0
        %v689 = vadd.f32 0.0, %v688
        %v690 = vpop.f32.mrb[0].mxu0
        %v691 = vadd.f32 0.0, %v690
        %v692 = vpop.f32.mrb[0].mxu0
        %v693 = vadd.f32 0.0, %v692
        %v694 = vpop.f32.mrb[0].mxu0
        %v695 = vadd.f32 0.0, %v694
        %696 = vmatprep.mubr.bf16.mxu0 0
        %697 = vmatmul.mubr.bf16.gmra.mrb[0].mxu0 %v254
        %v698 = vpop.f32.mrb[0].mxu0
        %v699 = vadd.f32 0.0, %v698
        %v700 = vpop.f32.mrb[0].mxu0
        %v701 = vadd.f32 0.0, %v700
        %v702 = vpop.f32.mrb[0].mxu0
        %v703 = vadd.f32 0.0, %v702
        %v704 = vpop.f32.mrb[0].mxu0
        %v705 = vadd.f32 0.0, %v704
        %706 = vmatprep.mubr.bf16.mxu0 0
        %707 = vmatmul.mubr.bf16.gmra.mrb[0].mxu0 %v255
        %v708 = vpop.f32.mrb[0].mxu0
        %v709 = vadd.f32 0.0, %v708
        %v710 = vpop.f32.mrb[0].mxu0
        %v711 = vadd.f32 0.0, %v710
        %v712 = vpop.f32.mrb[0].mxu0
        %v713 = vadd.f32 0.0, %v712
        %v714 = vpop.f32.mrb[0].mxu0
        %v715 = vadd.f32 0.0, %v714
        %716 = vmatprep.mubr.bf16.mxu0 0
        %717 = vmatmul.mubr.bf16.gmra.mrb[0].mxu0 %v256
        %v718 = vpop.f32.mrb[0].mxu0
        %v719 = vadd.f32 0.0, %v718
        %v720 = vpop.f32.mrb[0].mxu0
        %v721 = vadd.f32 0.0, %v720
        %v722 = vpop.f32.mrb[0].mxu0
        %v723 = vadd.f32 0.0, %v722
        %v724 = vpop.f32.mrb[0].mxu0
        %v725 = vadd.f32 0.0, %v724
        %726 = vmatprep.mubr.bf16.mxu0 0
        %727 = vmatmul.mubr.bf16.gmra.mrb[0].mxu0 %v257
        %v728 = vpop.f32.mrb[0].mxu0
        %v729 = vadd.f32 0.0, %v728
        %v730 = vpop.f32.mrb[0].mxu0
        %v731 = vadd.f32 0.0, %v730
        %v732 = vpop.f32.mrb[0].mxu0
        %v733 = vadd.f32 0.0, %v732
        %v734 = vpop.f32.mrb[0].mxu0
        %v735 = vadd.f32 0.0, %v734
        %736 = vmatprep.mubr.bf16.mxu0 0
        %737 = vmatmul.mubr.bf16.gmra.mrb[0].mxu0 %v258
        %v738 = vpop.f32.mrb[0].mxu0
        %v739 = vadd.f32 0.0, %v738
        %v740 = vpop.f32.mrb[0].mxu0
        %v741 = vadd.f32 0.0, %v740
        %v742 = vpop.f32.mrb[0].mxu0
        %v743 = vadd.f32 0.0, %v742
        %v744 = vpop.f32.mrb[0].mxu0
        %v745 = vadd.f32 0.0, %v744
        %746 = vmatprep.mubr.bf16.mxu0 0
        %747 = vmatmul.mubr.bf16.gmra.mrb[0].mxu0 %v259
        %v748 = vpop.f32.mrb[0].mxu0
        %v749 = vadd.f32 0.0, %v748
        %v750 = vpop.f32.mrb[0].mxu0
        %v751 = vadd.f32 0.0, %v750
        %v752 = vpop.f32.mrb[0].mxu0
        %v753 = vadd.f32 0.0, %v752
        %v754 = vpop.f32.mrb[0].mxu0
        %v755 = vadd.f32 0.0, %v754
        %756 = vmatprep.mubr.bf16.mxu0 0
        %757 = vmatmul.mubr.bf16.gmra.mrb[0].mxu0 %v260
        %v758 = vpop.f32.mrb[0].mxu0
        %v759 = vadd.f32 0.0, %v758
        %v760 = vpop.f32.mrb[0].mxu0
        %v761 = vadd.f32 0.0, %v760
        %v762 = vpop.f32.mrb[0].mxu0
        %v763 = vadd.f32 0.0, %v762
        %v764 = vpop.f32.mrb[0].mxu0
        %v765 = vadd.f32 0.0, %v764
        %766 = vmatprep.mubr.bf16.mxu0 0
        %767 = vmatmul.mubr.bf16.gmra.mrb[0].mxu0 %v261
        %v768 = vpop.f32.mrb[0].mxu0
        %v769 = vadd.f32 0.0, %v768
        %v770 = vpop.f32.mrb[0].mxu0
        %v771 = vadd.f32 0.0, %v770
        %v772 = vpop.f32.mrb[0].mxu0
        %v773 = vadd.f32 0.0, %v772
        %v774 = vpop.f32.mrb[0].mxu0
        %v775 = vadd.f32 0.0, %v774
        %776 = vmatprep.mubr.bf16.mxu0 0
        %777 = vmatmul.mubr.bf16.gmra.mrb[0].mxu0 %v262
        %v778 = vpop.f32.mrb[0].mxu0
        %v779 = vadd.f32 0.0, %v778
        %v780 = vpop.f32.mrb[0].mxu0
        %v781 = vadd.f32 0.0, %v780
        %v782 = vpop.f32.mrb[0].mxu0
        %v783 = vadd.f32 0.0, %v782
        %v784 = vpop.f32.mrb[0].mxu0
        %v785 = vadd.f32 0.0, %v784
        %786 = vmatprep.mubr.bf16.mxu0 0
        %787 = vmatmul.mubr.bf16.gmra.mrb[0].mxu0 %v263
        %v788 = vpop.f32.mrb[0].mxu0
        %v789 = vadd.f32 0.0, %v788
        %v790 = vpop.f32.mrb[0].mxu0
        %v791 = vadd.f32 0.0, %v790
        %v792 = vpop.f32.mrb[0].mxu0
        %v793 = vadd.f32 0.0, %v792
        %v794 = vpop.f32.mrb[0].mxu0
        %v795 = vadd.f32 0.0, %v794
        %796 = vmatprep.mubr.bf16.mxu0 0
        %797 = vmatmul.mubr.bf16.gmra.mrb[0].mxu0 %v264
        %v798 = vpop.f32.mrb[0].mxu0
        %v799 = vadd.f32 0.0, %v798
        %v800 = vpop.f32.mrb[0].mxu0
        %v801 = vadd.f32 0.0, %v800
        %v802 = vpop.f32.mrb[0].mxu0
        %v803 = vadd.f32 0.0, %v802
        %v804 = vpop.f32.mrb[0].mxu0
        %v805 = vadd.f32 0.0, %v804
        %806 = vmatprep.mubr.bf16.mxu0 0
        %807 = vmatmul.mubr.bf16.gmra.mrb[0].mxu0 %v265
        %v808 = vpop.f32.mrb[0].mxu0
        %v809 = vadd.f32 0.0, %v808
        %v810 = vpop.f32.mrb[0].mxu0
        %v811 = vadd.f32 0.0, %v810
        %v812 = vpop.f32.mrb[0].mxu0
        %v813 = vadd.f32 0.0, %v812
        %v814 = vpop.f32.mrb[0].mxu0
        %v815 = vadd.f32 0.0, %v814
        %816 = vmatprep.mubr.bf16.mxu0 0
        %817 = vmatmul.mubr.bf16.gmra.mrb[0].mxu0 %v266
        %v818 = vpop.f32.mrb[0].mxu0
        %v819 = vadd.f32 0.0, %v818
        %v820 = vpop.f32.mrb[0].mxu0
        %v821 = vadd.f32 0.0, %v820
        %v822 = vpop.f32.mrb[0].mxu0
        %v823 = vadd.f32 0.0, %v822
        %v824 = vpop.f32.mrb[0].mxu0
        %v825 = vadd.f32 0.0, %v824
        %826 = vmatprep.mubr.bf16.mxu0 0
        %827 = vmatmul.mubr.bf16.gmra.mrb[0].mxu0 %v267
        %v828 = vpop.f32.mrb[0].mxu0
        %v829 = vadd.f32 0.0, %v828
        %v830 = vpop.f32.mrb[0].mxu0
        %v831 = vadd.f32 0.0, %v830
        %v832 = vpop.f32.mrb[0].mxu0
        %v833 = vadd.f32 0.0, %v832
        %v834 = vpop.f32.mrb[0].mxu0
        %v835 = vadd.f32 0.0, %v834
        %836 = vmatprep.mubr.bf16.mxu0 0
        %837 = vmatmul.mubr.bf16.gmra.mrb[0].mxu0 %v268
        %v838 = vpop.f32.mrb[0].mxu0
        %v839 = vadd.f32 0.0, %v838
        %v840 = vpop.f32.mrb[0].mxu0
        %v841 = vadd.f32 0.0, %v840
        %v842 = vpop.f32.mrb[0].mxu0
        %v843 = vadd.f32 0.0, %v842
        %v844 = vpop.f32.mrb[0].mxu0
        %v845 = vadd.f32 0.0, %v844
        %846 = vdwg.mxu0
        %v847 = vmax.f32 %v496, 0.0
        %v848 = vmax.f32 %v498, 0.0
        %v849 = vmax.f32 %v689, 0.0
        %v850 = vmax.f32 %v691, 0.0
        %v851 = vmax.f32 %v500, 0.0
        %v852 = vmax.f32 %v502, 0.0
        %v853 = vmax.f32 %v693, 0.0
        %v854 = vmax.f32 %v695, 0.0
        %v855 = vmax.f32 %v506, 0.0
        %v856 = vmax.f32 %v508, 0.0
        %v857 = vmax.f32 %v699, 0.0
        %v858 = vmax.f32 %v701, 0.0
        %v859 = vmax.f32 %v510, 0.0
        %v860 = vmax.f32 %v512, 0.0
        %v861 = vmax.f32 %v703, 0.0
        %v862 = vmax.f32 %v705, 0.0
        %v863 = vmax.f32 %v516, 0.0
        %v864 = vmax.f32 %v518, 0.0
        %v865 = vmax.f32 %v709, 0.0
        %v866 = vmax.f32 %v711, 0.0
        %v867 = vmax.f32 %v520, 0.0
        %v868 = vmax.f32 %v522, 0.0
        %v869 = vmax.f32 %v713, 0.0
        %v870 = vmax.f32 %v715, 0.0
        %v871 = vmax.f32 %v526, 0.0
        %v872 = vmax.f32 %v528, 0.0
        %v873 = vmax.f32 %v719, 0.0
        %v874 = vmax.f32 %v721, 0.0
        %v875 = vmax.f32 %v530, 0.0
        %v876 = vmax.f32 %v532, 0.0
        %v877 = vmax.f32 %v723, 0.0
        %v878 = vmax.f32 %v725, 0.0
        %v879 = vmax.f32 %v536, 0.0
        %v880 = vmax.f32 %v538, 0.0
        %v881 = vmax.f32 %v729, 0.0
        %v882 = vmax.f32 %v731, 0.0
        %v883 = vmax.f32 %v540, 0.0
        %v884 = vmax.f32 %v542, 0.0
        %v885 = vmax.f32 %v733, 0.0
        %v886 = vmax.f32 %v735, 0.0
        %v887 = vmax.f32 %v546, 0.0
        %v888 = vmax.f32 %v548, 0.0
        %v889 = vmax.f32 %v739, 0.0
        %v890 = vmax.f32 %v741, 0.0
        %v891 = vmax.f32 %v550, 0.0
        %v892 = vmax.f32 %v552, 0.0
        %v893 = vmax.f32 %v743, 0.0
        %v894 = vmax.f32 %v745, 0.0
        %v895 = vmax.f32 %v556, 0.0
        %v896 = vmax.f32 %v558, 0.0
        %v897 = vmax.f32 %v749, 0.0
        %v898 = vmax.f32 %v751, 0.0
        %v899 = vmax.f32 %v560, 0.0
        %v900 = vmax.f32 %v562, 0.0
        %v901 = vmax.f32 %v753, 0.0
        %v902 = vmax.f32 %v755, 0.0
        %v903 = vmax.f32 %v566, 0.0
        %v904 = vmax.f32 %v568, 0.0
        %v905 = vmax.f32 %v759, 0.0
        %v906 = vmax.f32 %v761, 0.0
        %v907 = vmax.f32 %v570, 0.0
        %v908 = vmax.f32 %v572, 0.0
        %v909 = vmax.f32 %v763, 0.0
        %v910 = vmax.f32 %v765, 0.0
        %v911 = vmax.f32 %v576, 0.0
        %v912 = vmax.f32 %v578, 0.0
        %v913 = vmax.f32 %v769, 0.0
        %v914 = vmax.f32 %v771, 0.0
        %v915 = vmax.f32 %v580, 0.0
        %v916 = vmax.f32 %v582, 0.0
        %v917 = vmax.f32 %v773, 0.0
        %v918 = vmax.f32 %v775, 0.0
        %v919 = vmax.f32 %v586, 0.0
        %v920 = vmax.f32 %v588, 0.0
        %v921 = vmax.f32 %v779, 0.0
        %v922 = vmax.f32 %v781, 0.0
        %v923 = vmax.f32 %v590, 0.0
        %v924 = vmax.f32 %v592, 0.0
        %v925 = vmax.f32 %v783, 0.0
        %v926 = vmax.f32 %v785, 0.0
        %v927 = vmax.f32 %v596, 0.0
        %v928 = vmax.f32 %v598, 0.0
        %v929 = vmax.f32 %v789, 0.0
        %v930 = vmax.f32 %v791, 0.0
        %v931 = vmax.f32 %v600, 0.0
        %v932 = vmax.f32 %v602, 0.0
        %v933 = vmax.f32 %v793, 0.0
        %v934 = vmax.f32 %v795, 0.0
        %v935 = vmax.f32 %v606, 0.0
        %v936 = vmax.f32 %v608, 0.0
        %v937 = vmax.f32 %v799, 0.0
        %v938 = vmax.f32 %v801, 0.0
        %v939 = vmax.f32 %v610, 0.0
        %v940 = vmax.f32 %v612, 0.0
        %v941 = vmax.f32 %v803, 0.0
        %v942 = vmax.f32 %v805, 0.0
        %v943 = vmax.f32 %v616, 0.0
        %v944 = vmax.f32 %v618, 0.0
        %v945 = vmax.f32 %v809, 0.0
        %v946 = vmax.f32 %v811, 0.0
        %v947 = vmax.f32 %v620, 0.0
        %v948 = vmax.f32 %v622, 0.0
        %v949 = vmax.f32 %v813, 0.0
        %v950 = vmax.f32 %v815, 0.0
        %v951 = vmax.f32 %v626, 0.0
        %v952 = vmax.f32 %v628, 0.0
        %v953 = vmax.f32 %v819, 0.0
        %v954 = vmax.f32 %v821, 0.0
        %v955 = vmax.f32 %v630, 0.0
        %v956 = vmax.f32 %v632, 0.0
        %v957 = vmax.f32 %v823, 0.0
        %v958 = vmax.f32 %v825, 0.0
        %v959 = vmax.f32 %v636, 0.0
        %v960 = vmax.f32 %v638, 0.0
        %v961 = vmax.f32 %v829, 0.0
        %v962 = vmax.f32 %v831, 0.0
        %v963 = vmax.f32 %v640, 0.0
        %v964 = vmax.f32 %v642, 0.0
        %v965 = vmax.f32 %v833, 0.0
        %v966 = vmax.f32 %v835, 0.0
        %v967 = vmax.f32 %v646, 0.0
        %v968 = vmax.f32 %v648, 0.0
        %v969 = vmax.f32 %v839, 0.0
        %v970 = vmax.f32 %v841, 0.0
        %v971 = vmax.f32 %v650, 0.0
        %v972 = vmax.f32 %v652, 0.0
        %v973 = vmax.f32 %v843, 0.0
        %v974 = vmax.f32 %v845, 0.0
        %v975 = vmul.f32 %v847, %v847
        %v976 = vmul.f32 %v848, %v848
        %v977 = vmul.f32 %v849, %v849
        %v978 = vmul.f32 %v850, %v850
        %v979 = vmul.f32 %v851, %v851
        %v980 = vmul.f32 %v852, %v852
        %v981 = vmul.f32 %v853, %v853
        %v982 = vmul.f32 %v854, %v854
        %v983 = vmul.f32 %v855, %v855
        %v984 = vmul.f32 %v856, %v856
        %v985 = vmul.f32 %v857, %v857
        %v986 = vmul.f32 %v858, %v858
        %v987 = vmul.f32 %v859, %v859
        %v988 = vmul.f32 %v860, %v860
        %v989 = vmul.f32 %v861, %v861
        %v990 = vmul.f32 %v862, %v862
        %v991 = vmul.f32 %v863, %v863
        %v992 = vmul.f32 %v864, %v864
        %v993 = vmul.f32 %v865, %v865
        %v994 = vmul.f32 %v866, %v866
        %v995 = vmul.f32 %v867, %v867
        %v996 = vmul.f32 %v868, %v868
        %v997 = vmul.f32 %v869, %v869
        %v998 = vmul.f32 %v870, %v870
        %v999 = vmul.f32 %v871, %v871
        %v1000 = vmul.f32 %v872, %v872
        %v1001 = vmul.f32 %v873, %v873
        %v1002 = vmul.f32 %v874, %v874
        %v1003 = vmul.f32 %v875, %v875
        %v1004 = vmul.f32 %v876, %v876
        %v1005 = vmul.f32 %v877, %v877
        %v1006 = vmul.f32 %v878, %v878
        %v1007 = vmul.f32 %v879, %v879
        %v1008 = vmul.f32 %v880, %v880
        %v1009 = vmul.f32 %v881, %v881
        %v1010 = vmul.f32 %v882, %v882
        %v1011 = vmul.f32 %v883, %v883
        %v1012 = vmul.f32 %v884, %v884
        %v1013 = vmul.f32 %v885, %v885
        %v1014 = vmul.f32 %v886, %v886
        %v1015 = vmul.f32 %v887, %v887
        %v1016 = vmul.f32 %v888, %v888
        %v1017 = vmul.f32 %v889, %v889
        %v1018 = vmul.f32 %v890, %v890
        %v1019 = vmul.f32 %v891, %v891
        %v1020 = vmul.f32 %v892, %v892
        %v1021 = vmul.f32 %v893, %v893
        %v1022 = vmul.f32 %v894, %v894
        %v1023 = vmul.f32 %v895, %v895
        %v1024 = vmul.f32 %v896, %v896
        %v1025 = vmul.f32 %v897, %v897
        %v1026 = vmul.f32 %v898, %v898
        %v1027 = vmul.f32 %v899, %v899
        %v1028 = vmul.f32 %v900, %v900
        %v1029 = vmul.f32 %v901, %v901
        %v1030 = vmul.f32 %v902, %v902
        %v1031 = vmul.f32 %v903, %v903
        %v1032 = vmul.f32 %v904, %v904
        %v1033 = vmul.f32 %v905, %v905
        %v1034 = vmul.f32 %v906, %v906
        %v1035 = vmul.f32 %v907, %v907
        %v1036 = vmul.f32 %v908, %v908
        %v1037 = vmul.f32 %v909, %v909
        %v1038 = vmul.f32 %v910, %v910
        %v1039 = vmul.f32 %v911, %v911
        %v1040 = vmul.f32 %v912, %v912
        %v1041 = vmul.f32 %v913, %v913
        %v1042 = vmul.f32 %v914, %v914
        %v1043 = vmul.f32 %v915, %v915
        %v1044 = vmul.f32 %v916, %v916
        %v1045 = vmul.f32 %v917, %v917
        %v1046 = vmul.f32 %v918, %v918
        %v1047 = vmul.f32 %v919, %v919
        %v1048 = vmul.f32 %v920, %v920
        %v1049 = vmul.f32 %v921, %v921
        %v1050 = vmul.f32 %v922, %v922
        %v1051 = vmul.f32 %v923, %v923
        %v1052 = vmul.f32 %v924, %v924
        %v1053 = vmul.f32 %v925, %v925
        %v1054 = vmul.f32 %v926, %v926
        %v1055 = vmul.f32 %v927, %v927
        %v1056 = vmul.f32 %v928, %v928
        %v1057 = vmul.f32 %v929, %v929
        %v1058 = vmul.f32 %v930, %v930
        %v1059 = vmul.f32 %v931, %v931
        %v1060 = vmul.f32 %v932, %v932
        %v1061 = vmul.f32 %v933, %v933
        %v1062 = vmul.f32 %v934, %v934
        %v1063 = vmul.f32 %v935, %v935
        %v1064 = vmul.f32 %v936, %v936
        %v1065 = vmul.f32 %v937, %v937
        %v1066 = vmul.f32 %v938, %v938
        %v1067 = vmul.f32 %v939, %v939
        %v1068 = vmul.f32 %v940, %v940
        %v1069 = vmul.f32 %v941, %v941
        %v1070 = vmul.f32 %v942, %v942
        %v1071 = vmul.f32 %v943, %v943
        %v1072 = vmul.f32 %v944, %v944
        %v1073 = vmul.f32 %v945, %v945
        %v1074 = vmul.f32 %v946, %v946
        %v1075 = vmul.f32 %v947, %v947
        %v1076 = vmul.f32 %v948, %v948
        %v1077 = vmul.f32 %v949, %v949
        %v1078 = vmul.f32 %v950, %v950
        %v1079 = vmul.f32 %v951, %v951
        %v1080 = vmul.f32 %v952, %v952
        %v1081 = vmul.f32 %v953, %v953
        %v1082 = vmul.f32 %v954, %v954
        %v1083 = vmul.f32 %v955, %v955
        %v1084 = vmul.f32 %v956, %v956
        %v1085 = vmul.f32 %v957, %v957
        %v1086 = vmul.f32 %v958, %v958
        %v1087 = vmul.f32 %v959, %v959
        %v1088 = vmul.f32 %v960, %v960
        %v1089 = vmul.f32 %v961, %v961
        %v1090 = vmul.f32 %v962, %v962
        %v1091 = vmul.f32 %v963, %v963
        %v1092 = vmul.f32 %v964, %v964
        %v1093 = vmul.f32 %v965, %v965
        %v1094 = vmul.f32 %v966, %v966
        %v1095 = vmul.f32 %v967, %v967
        %v1096 = vmul.f32 %v968, %v968
        %v1097 = vmul.f32 %v969, %v969
        %v1098 = vmul.f32 %v970, %v970
        %v1099 = vmul.f32 %v971, %v971
        %v1100 = vmul.f32 %v972, %v972
        %v1101 = vmul.f32 %v973, %v973
        %v1102 = vmul.f32 %v974, %v974
        %v1103 = vpack.c.bf16 %v979, %v975
        %v1104 = vpack.c.bf16 %v980, %v976
        %v1105 = vpack.c.bf16 %v981, %v977
        %v1106 = vpack.c.bf16 %v982, %v978
        %v1107 = vpack.c.bf16 %v987, %v983
        %v1108 = vpack.c.bf16 %v988, %v984
        %v1109 = vpack.c.bf16 %v989, %v985
        %v1110 = vpack.c.bf16 %v990, %v986
        %v1111 = vpack.c.bf16 %v995, %v991
        %v1112 = vpack.c.bf16 %v996, %v992
        %v1113 = vpack.c.bf16 %v997, %v993
        %v1114 = vpack.c.bf16 %v998, %v994
        %v1115 = vpack.c.bf16 %v1003, %v999
        %v1116 = vpack.c.bf16 %v1004, %v1000
        %v1117 = vpack.c.bf16 %v1005, %v1001
        %v1118 = vpack.c.bf16 %v1006, %v1002
        %v1119 = vpack.c.bf16 %v1011, %v1007
        %v1120 = vpack.c.bf16 %v1012, %v1008
        %v1121 = vpack.c.bf16 %v1013, %v1009
        %v1122 = vpack.c.bf16 %v1014, %v1010
        %v1123 = vpack.c.bf16 %v1019, %v1015
        %v1124 = vpack.c.bf16 %v1020, %v1016
        %v1125 = vpack.c.bf16 %v1021, %v1017
        %v1126 = vpack.c.bf16 %v1022, %v1018
        %v1127 = vpack.c.bf16 %v1027, %v1023
        %v1128 = vpack.c.bf16 %v1028, %v1024
        %v1129 = vpack.c.bf16 %v1029, %v1025
        %v1130 = vpack.c.bf16 %v1030, %v1026
        %v1131 = vpack.c.bf16 %v1035, %v1031
        %v1132 = vpack.c.bf16 %v1036, %v1032
        %v1133 = vpack.c.bf16 %v1037, %v1033
        %v1134 = vpack.c.bf16 %v1038, %v1034
        %v1135 = vpack.c.bf16 %v1043, %v1039
        %v1136 = vpack.c.bf16 %v1044, %v1040
        %v1137 = vpack.c.bf16 %v1045, %v1041
        %v1138 = vpack.c.bf16 %v1046, %v1042
        %v1139 = vpack.c.bf16 %v1051, %v1047
        %v1140 = vpack.c.bf16 %v1052, %v1048
        %v1141 = vpack.c.bf16 %v1053, %v1049
        %v1142 = vpack.c.bf16 %v1054, %v1050
        %v1143 = vpack.c.bf16 %v1059, %v1055
        %v1144 = vpack.c.bf16 %v1060, %v1056
        %v1145 = vpack.c.bf16 %v1061, %v1057
        %v1146 = vpack.c.bf16 %v1062, %v1058
        %v1147 = vpack.c.bf16 %v1067, %v1063
        %v1148 = vpack.c.bf16 %v1068, %v1064
        %v1149 = vpack.c.bf16 %v1069, %v1065
        %v1150 = vpack.c.bf16 %v1070, %v1066
        %v1151 = vpack.c.bf16 %v1075, %v1071
        %v1152 = vpack.c.bf16 %v1076, %v1072
        %v1153 = vpack.c.bf16 %v1077, %v1073
        %v1154 = vpack.c.bf16 %v1078, %v1074
        %v1155 = vpack.c.bf16 %v1083, %v1079
        %v1156 = vpack.c.bf16 %v1084, %v1080
        %v1157 = vpack.c.bf16 %v1085, %v1081
        %v1158 = vpack.c.bf16 %v1086, %v1082
        %v1159 = vpack.c.bf16 %v1091, %v1087
        %v1160 = vpack.c.bf16 %v1092, %v1088
        %v1161 = vpack.c.bf16 %v1093, %v1089
        %v1162 = vpack.c.bf16 %v1094, %v1090
        %v1163 = vpack.c.bf16 %v1099, %v1095
        %v1164 = vpack.c.bf16 %v1100, %v1096
        %v1165 = vpack.c.bf16 %v1101, %v1097
        %v1166 = vpack.c.bf16 %v1102, %v1098
        %v1167 = vld [vmem:[#allocation7] sm:$0xf]
        %v1168 = vld [vmem:[#allocation7 + $0x4] sm:$0xf]
        %v1169 = vld [vmem:[#allocation7 + $0x8] sm:$0xf]
        %v1170 = vld [vmem:[#allocation7 + $0xc] sm:$0xf]
        %v1171 = vld [vmem:[#allocation7 + $0x10] sm:$0xf]
        %v1172 = vld [vmem:[#allocation7 + $0x14] sm:$0xf]
        %v1173 = vld [vmem:[#allocation7 + $0x18] sm:$0xf]
        %v1174 = vld [vmem:[#allocation7 + $0x1c] sm:$0xf]
        %v1175 = vld [vmem:[#allocation7 + $0x20] sm:$0xf]
        %v1176 = vld [vmem:[#allocation7 + $0x24] sm:$0xf]
        %v1177 = vld [vmem:[#allocation7 + $0x28] sm:$0xf]
        %v1178 = vld [vmem:[#allocation7 + $0x2c] sm:$0xf]
        %v1179 = vld [vmem:[#allocation7 + $0x30] sm:$0xf]
        %v1180 = vld [vmem:[#allocation7 + $0x34] sm:$0xf]
        %v1181 = vld [vmem:[#allocation7 + $0x38] sm:$0xf]
        %v1182 = vld [vmem:[#allocation7 + $0x3c] sm:$0xf]
        %v1183 = vld [vmem:[#allocation7 + $0x40] sm:$0xf]
        %v1184 = vld [vmem:[#allocation7 + $0x44] sm:$0xf]
        %v1185 = vld [vmem:[#allocation7 + $0x48] sm:$0xf]
        %v1186 = vld [vmem:[#allocation7 + $0x4c] sm:$0xf]
        %v1187 = vld [vmem:[#allocation7 + $0x50] sm:$0xf]
        %v1188 = vld [vmem:[#allocation7 + $0x54] sm:$0xf]
        %v1189 = vld [vmem:[#allocation7 + $0x58] sm:$0xf]
        %v1190 = vld [vmem:[#allocation7 + $0x5c] sm:$0xf]
        %v1191 = vld [vmem:[#allocation7 + $0x60] sm:$0xf]
        %v1192 = vld [vmem:[#allocation7 + $0x64] sm:$0xf]
        %v1193 = vld [vmem:[#allocation7 + $0x68] sm:$0xf]
        %v1194 = vld [vmem:[#allocation7 + $0x6c] sm:$0xf]
        %v1195 = vld [vmem:[#allocation7 + $0x70] sm:$0xf]
        %v1196 = vld [vmem:[#allocation7 + $0x74] sm:$0xf]
        %v1197 = vld [vmem:[#allocation7 + $0x78] sm:$0xf]
        %v1198 = vld [vmem:[#allocation7 + $0x7c] sm:$0xf]
        %v1199 = vld [vmem:[#allocation7 + $0x80] sm:$0xf]
        %v1200 = vld [vmem:[#allocation7 + $0x84] sm:$0xf]
        %v1201 = vld [vmem:[#allocation7 + $0x88] sm:$0xf]
        %v1202 = vld [vmem:[#allocation7 + $0x8c] sm:$0xf]
        %v1203 = vld [vmem:[#allocation7 + $0x90] sm:$0xf]
        %v1204 = vld [vmem:[#allocation7 + $0x94] sm:$0xf]
        %v1205 = vld [vmem:[#allocation7 + $0x98] sm:$0xf]
        %v1206 = vld [vmem:[#allocation7 + $0x9c] sm:$0xf]
        %v1207 = vld [vmem:[#allocation7 + $0xa0] sm:$0xf]
        %v1208 = vld [vmem:[#allocation7 + $0xa4] sm:$0xf]
        %v1209 = vld [vmem:[#allocation7 + $0xa8] sm:$0xf]
        %v1210 = vld [vmem:[#allocation7 + $0xac] sm:$0xf]
        %v1211 = vld [vmem:[#allocation7 + $0xb0] sm:$0xf]
        %v1212 = vld [vmem:[#allocation7 + $0xb4] sm:$0xf]
        %v1213 = vld [vmem:[#allocation7 + $0xb8] sm:$0xf]
        %v1214 = vld [vmem:[#allocation7 + $0xbc] sm:$0xf]
        %v1215 = vld [vmem:[#allocation7 + $0xc0] sm:$0xf]
        %v1216 = vld [vmem:[#allocation7 + $0xc4] sm:$0xf]
        %v1217 = vld [vmem:[#allocation7 + $0xc8] sm:$0xf]
        %v1218 = vld [vmem:[#allocation7 + $0xcc] sm:$0xf]
        %v1219 = vld [vmem:[#allocation7 + $0xd0] sm:$0xf]
        %v1220 = vld [vmem:[#allocation7 + $0xd4] sm:$0xf]
        %v1221 = vld [vmem:[#allocation7 + $0xd8] sm:$0xf]
        %v1222 = vld [vmem:[#allocation7 + $0xdc] sm:$0xf]
        %v1223 = vld [vmem:[#allocation7 + $0xe0] sm:$0xf]
        %v1224 = vld [vmem:[#allocation7 + $0xe4] sm:$0xf]
        %v1225 = vld [vmem:[#allocation7 + $0xe8] sm:$0xf]
        %v1226 = vld [vmem:[#allocation7 + $0xec] sm:$0xf]
        %v1227 = vld [vmem:[#allocation7 + $0xf0] sm:$0xf]
        %v1228 = vld [vmem:[#allocation7 + $0xf4] sm:$0xf]
        %v1229 = vld [vmem:[#allocation7 + $0xf8] sm:$0xf]
        %v1230 = vld [vmem:[#allocation7 + $0xfc] sm:$0xf]
        %v1295 = vunpack.c.l.b16 %v1167
        %v1296 = vunpack.c.l.b16 %v1168
        %v1297 = vunpack.c.l.b16 %v1169
        %v1298 = vunpack.c.l.b16 %v1170
        %v1299 = vunpack.c.l.b16 %v1171
        %v1300 = vunpack.c.l.b16 %v1172
        %v1301 = vunpack.c.l.b16 %v1173
        %v1302 = vunpack.c.l.b16 %v1174
        %v1303 = vunpack.c.l.b16 %v1175
        %v1304 = vunpack.c.l.b16 %v1176
        %v1305 = vunpack.c.l.b16 %v1177
        %v1306 = vunpack.c.l.b16 %v1178
        %v1307 = vunpack.c.l.b16 %v1179
        %v1308 = vunpack.c.l.b16 %v1180
        %v1309 = vunpack.c.l.b16 %v1181
        %v1310 = vunpack.c.l.b16 %v1182
        %v1311 = vunpack.c.l.b16 %v1183
        %v1312 = vunpack.c.l.b16 %v1184
        %v1313 = vunpack.c.l.b16 %v1185
        %v1314 = vunpack.c.l.b16 %v1186
        %v1315 = vunpack.c.l.b16 %v1187
        %v1316 = vunpack.c.l.b16 %v1188
        %v1317 = vunpack.c.l.b16 %v1189
        %v1318 = vunpack.c.l.b16 %v1190
        %v1319 = vunpack.c.l.b16 %v1191
        %v1320 = vunpack.c.l.b16 %v1192
        %v1321 = vunpack.c.l.b16 %v1193
        %v1322 = vunpack.c.l.b16 %v1194
        %v1323 = vunpack.c.l.b16 %v1195
        %v1324 = vunpack.c.l.b16 %v1196
        %v1325 = vunpack.c.l.b16 %v1197
        %v1326 = vunpack.c.l.b16 %v1198
        %v1327 = vunpack.c.l.b16 %v1199
        %v1328 = vunpack.c.l.b16 %v1200
        %v1329 = vunpack.c.l.b16 %v1201
        %v1330 = vunpack.c.l.b16 %v1202
        %v1331 = vunpack.c.l.b16 %v1203
        %v1332 = vunpack.c.l.b16 %v1204
        %v1333 = vunpack.c.l.b16 %v1205
        %v1334 = vunpack.c.l.b16 %v1206
        %v1335 = vunpack.c.l.b16 %v1207
        %v1336 = vunpack.c.l.b16 %v1208
        %v1337 = vunpack.c.l.b16 %v1209
        %v1338 = vunpack.c.l.b16 %v1210
        %v1339 = vunpack.c.l.b16 %v1211
        %v1340 = vunpack.c.l.b16 %v1212
        %v1341 = vunpack.c.l.b16 %v1213
        %v1342 = vunpack.c.l.b16 %v1214
        %v1343 = vunpack.c.l.b16 %v1215
        %v1344 = vunpack.c.l.b16 %v1216
        %v1345 = vunpack.c.l.b16 %v1217
        %v1346 = vunpack.c.l.b16 %v1218
        %v1347 = vunpack.c.l.b16 %v1219
        %v1348 = vunpack.c.l.b16 %v1220
        %v1349 = vunpack.c.l.b16 %v1221
        %v1350 = vunpack.c.l.b16 %v1222
        %v1351 = vunpack.c.l.b16 %v1223
        %v1352 = vunpack.c.l.b16 %v1224
        %v1353 = vunpack.c.l.b16 %v1225
        %v1354 = vunpack.c.l.b16 %v1226
        %v1355 = vunpack.c.l.b16 %v1227
        %v1356 = vunpack.c.l.b16 %v1228
        %v1357 = vunpack.c.l.b16 %v1229
        %v1358 = vunpack.c.l.b16 %v1230
        %v1359 = vpack.c.b16 %v1296, %v1295
        %v1360 = vpack.c.b16 %v1298, %v1297
        %v1361 = vpack.c.b16 %v1300, %v1299
        %v1362 = vpack.c.b16 %v1302, %v1301
        %v1363 = vpack.c.b16 %v1304, %v1303
        %v1364 = vpack.c.b16 %v1306, %v1305
        %v1365 = vpack.c.b16 %v1308, %v1307
        %v1366 = vpack.c.b16 %v1310, %v1309
        %v1367 = vpack.c.b16 %v1312, %v1311
        %v1368 = vpack.c.b16 %v1314, %v1313
        %v1369 = vpack.c.b16 %v1316, %v1315
        %v1370 = vpack.c.b16 %v1318, %v1317
        %v1371 = vpack.c.b16 %v1320, %v1319
        %v1372 = vpack.c.b16 %v1322, %v1321
        %v1373 = vpack.c.b16 %v1324, %v1323
        %v1374 = vpack.c.b16 %v1326, %v1325
        %v1375 = vpack.c.b16 %v1328, %v1327
        %v1376 = vpack.c.b16 %v1330, %v1329
        %v1377 = vpack.c.b16 %v1332, %v1331
        %v1378 = vpack.c.b16 %v1334, %v1333
        %v1379 = vpack.c.b16 %v1336, %v1335
        %v1380 = vpack.c.b16 %v1338, %v1337
        %v1381 = vpack.c.b16 %v1340, %v1339
        %v1382 = vpack.c.b16 %v1342, %v1341
        %v1383 = vpack.c.b16 %v1344, %v1343
        %v1384 = vpack.c.b16 %v1346, %v1345
        %v1385 = vpack.c.b16 %v1348, %v1347
        %v1386 = vpack.c.b16 %v1350, %v1349
        %v1387 = vpack.c.b16 %v1352, %v1351
        %v1388 = vpack.c.b16 %v1354, %v1353
        %v1389 = vpack.c.b16 %v1356, %v1355
        %v1390 = vpack.c.b16 %v1358, %v1357
        %1423 = vmatprep.subr.bf16.mxu0 0
        %1424 = vmatpush1.bf16.msra.mxu0 %v1359
        %1425 = vmatprep.subr.bf16.mxu0 0
        %1426 = vmatpush1.bf16.msra.mxu0 %v1360
        %1427 = vmatprep.subr.bf16.mxu0 0
        %1428 = vmatpush1.bf16.msra.mxu0 %v1361
        %1429 = vmatprep.subr.bf16.mxu0 0
        %1430 = vmatpush1.bf16.msra.mxu0 %v1362
        %1431 = vmatprep.subr.bf16.mxu0 0
        %1432 = vmatpush1.bf16.msra.mxu0 %v1363
        %1433 = vmatprep.subr.bf16.mxu0 0
        %1434 = vmatpush1.bf16.msra.mxu0 %v1364
        %1435 = vmatprep.subr.bf16.mxu0 0
        %1436 = vmatpush1.bf16.msra.mxu0 %v1365
        %1437 = vmatprep.subr.bf16.mxu0 0
        %1438 = vmatpush1.bf16.msra.mxu0 %v1366
        %1439 = vmatprep.subr.bf16.mxu0 0
        %1440 = vmatpush1.bf16.msra.mxu0 %v1367
        %1441 = vmatprep.subr.bf16.mxu0 0
        %1442 = vmatpush1.bf16.msra.mxu0 %v1368
        %1443 = vmatprep.subr.bf16.mxu0 0
        %1444 = vmatpush1.bf16.msra.mxu0 %v1369
        %1445 = vmatprep.subr.bf16.mxu0 0
        %1446 = vmatpush1.bf16.msra.mxu0 %v1370
        %1447 = vmatprep.subr.bf16.mxu0 0
        %1448 = vmatpush1.bf16.msra.mxu0 %v1371
        %1449 = vmatprep.subr.bf16.mxu0 0
        %1450 = vmatpush1.bf16.msra.mxu0 %v1372
        %1451 = vmatprep.subr.bf16.mxu0 0
        %1452 = vmatpush1.bf16.msra.mxu0 %v1373
        %1453 = vmatprep.subr.bf16.mxu0 0
        %1454 = vmatpush1.bf16.msra.mxu0 %v1374
        %1455 = vmatprep.mubr.bf16.mxu0 %v1104
        %1456 = vmatmul.mubr.bf16.gmra.mrb[0].mxu0 %v1103
        %v1457 = vpop.f32.mrb[0].mxu0
        %v1458 = vadd.f32 0.0, %v1457
        %v1459 = vpop.f32.mrb[0].mxu0
        %v1460 = vpop.f32.mrb[0].mxu0
        %v1461 = vadd.f32 0.0, %v1460
        %v1462 = vpop.f32.mrb[0].mxu0
        %1463 = vmatprep.mubr.bf16.mxu0 %v1108
        %1464 = vmatmul.mubr.bf16.gmra.mrb[0].mxu0 %v1107
        %v1465 = vpop.f32.mrb[0].mxu0
        %v1466 = vadd.f32 0.0, %v1465
        %v1467 = vpop.f32.mrb[0].mxu0
        %v1468 = vpop.f32.mrb[0].mxu0
        %v1469 = vadd.f32 0.0, %v1468
        %v1470 = vpop.f32.mrb[0].mxu0
        %1471 = vmatprep.mubr.bf16.mxu0 %v1112
        %1472 = vmatmul.mubr.bf16.gmra.mrb[0].mxu0 %v1111
        %v1473 = vpop.f32.mrb[0].mxu0
        %v1474 = vadd.f32 0.0, %v1473
        %v1475 = vpop.f32.mrb[0].mxu0
        %v1476 = vpop.f32.mrb[0].mxu0
        %v1477 = vadd.f32 0.0, %v1476
        %v1478 = vpop.f32.mrb[0].mxu0
        %1479 = vmatprep.mubr.bf16.mxu0 %v1116
        %1480 = vmatmul.mubr.bf16.gmra.mrb[0].mxu0 %v1115
        %v1481 = vpop.f32.mrb[0].mxu0
        %v1482 = vadd.f32 0.0, %v1481
        %v1483 = vpop.f32.mrb[0].mxu0
        %v1484 = vpop.f32.mrb[0].mxu0
        %v1485 = vadd.f32 0.0, %v1484
        %v1486 = vpop.f32.mrb[0].mxu0
        %1487 = vmatprep.mubr.bf16.mxu0 %v1120
        %1488 = vmatmul.mubr.bf16.gmra.mrb[0].mxu0 %v1119
        %v1489 = vpop.f32.mrb[0].mxu0
        %v1490 = vadd.f32 0.0, %v1489
        %v1491 = vpop.f32.mrb[0].mxu0
        %v1492 = vpop.f32.mrb[0].mxu0
        %v1493 = vadd.f32 0.0, %v1492
        %v1494 = vpop.f32.mrb[0].mxu0
        %1495 = vmatprep.mubr.bf16.mxu0 %v1124
        %1496 = vmatmul.mubr.bf16.gmra.mrb[0].mxu0 %v1123
        %v1497 = vpop.f32.mrb[0].mxu0
        %v1498 = vadd.f32 0.0, %v1497
        %v1499 = vpop.f32.mrb[0].mxu0
        %v1500 = vpop.f32.mrb[0].mxu0
        %v1501 = vadd.f32 0.0, %v1500
        %v1502 = vpop.f32.mrb[0].mxu0
        %1503 = vmatprep.mubr.bf16.mxu0 %v1128
        %1504 = vmatmul.mubr.bf16.gmra.mrb[0].mxu0 %v1127
        %v1505 = vpop.f32.mrb[0].mxu0
        %v1506 = vadd.f32 0.0, %v1505
        %v1507 = vpop.f32.mrb[0].mxu0
        %v1508 = vpop.f32.mrb[0].mxu0
        %v1509 = vadd.f32 0.0, %v1508
        %v1510 = vpop.f32.mrb[0].mxu0
        %1511 = vmatprep.mubr.bf16.mxu0 %v1132
        %1512 = vmatmul.mubr.bf16.gmra.mrb[0].mxu0 %v1131
        %v1513 = vpop.f32.mrb[0].mxu0
        %v1514 = vadd.f32 0.0, %v1513
        %v1515 = vpop.f32.mrb[0].mxu0
        %v1516 = vpop.f32.mrb[0].mxu0
        %v1517 = vadd.f32 0.0, %v1516
        %v1518 = vpop.f32.mrb[0].mxu0
        %1519 = vmatprep.mubr.bf16.mxu0 %v1136
        %1520 = vmatmul.mubr.bf16.gmra.mrb[0].mxu0 %v1135
        %v1521 = vpop.f32.mrb[0].mxu0
        %v1522 = vadd.f32 0.0, %v1521
        %v1523 = vpop.f32.mrb[0].mxu0
        %v1524 = vpop.f32.mrb[0].mxu0
        %v1525 = vadd.f32 0.0, %v1524
        %v1526 = vpop.f32.mrb[0].mxu0
        %1527 = vmatprep.mubr.bf16.mxu0 %v1140
        %1528 = vmatmul.mubr.bf16.gmra.mrb[0].mxu0 %v1139
        %v1529 = vpop.f32.mrb[0].mxu0
        %v1530 = vadd.f32 0.0, %v1529
        %v1531 = vpop.f32.mrb[0].mxu0
        %v1532 = vpop.f32.mrb[0].mxu0
        %v1533 = vadd.f32 0.0, %v1532
        %v1534 = vpop.f32.mrb[0].mxu0
        %1535 = vmatprep.mubr.bf16.mxu0 %v1144
        %1536 = vmatmul.mubr.bf16.gmra.mrb[0].mxu0 %v1143
        %v1537 = vpop.f32.mrb[0].mxu0
        %v1538 = vadd.f32 0.0, %v1537
        %v1539 = vpop.f32.mrb[0].mxu0
        %v1540 = vpop.f32.mrb[0].mxu0
        %v1541 = vadd.f32 0.0, %v1540
        %v1542 = vpop.f32.mrb[0].mxu0
        %1543 = vmatprep.mubr.bf16.mxu0 %v1148
        %1544 = vmatmul.mubr.bf16.gmra.mrb[0].mxu0 %v1147
        %v1545 = vpop.f32.mrb[0].mxu0
        %v1546 = vadd.f32 0.0, %v1545
        %v1547 = vpop.f32.mrb[0].mxu0
        %v1548 = vpop.f32.mrb[0].mxu0
        %v1549 = vadd.f32 0.0, %v1548
        %v1550 = vpop.f32.mrb[0].mxu0
        %1551 = vmatprep.mubr.bf16.mxu0 %v1152
        %1552 = vmatmul.mubr.bf16.gmra.mrb[0].mxu0 %v1151
        %v1553 = vpop.f32.mrb[0].mxu0
        %v1554 = vadd.f32 0.0, %v1553
        %v1555 = vpop.f32.mrb[0].mxu0
        %v1556 = vpop.f32.mrb[0].mxu0
        %v1557 = vadd.f32 0.0, %v1556
        %v1558 = vpop.f32.mrb[0].mxu0
        %1559 = vmatprep.mubr.bf16.mxu0 %v1156
        %1560 = vmatmul.mubr.bf16.gmra.mrb[0].mxu0 %v1155
        %v1561 = vpop.f32.mrb[0].mxu0
        %v1562 = vadd.f32 0.0, %v1561
        %v1563 = vpop.f32.mrb[0].mxu0
        %v1564 = vpop.f32.mrb[0].mxu0
        %v1565 = vadd.f32 0.0, %v1564
        %v1566 = vpop.f32.mrb[0].mxu0
        %1567 = vmatprep.mubr.bf16.mxu0 %v1160
        %1568 = vmatmul.mubr.bf16.gmra.mrb[0].mxu0 %v1159
        %v1569 = vpop.f32.mrb[0].mxu0
        %v1570 = vadd.f32 0.0, %v1569
        %v1571 = vpop.f32.mrb[0].mxu0
        %v1572 = vpop.f32.mrb[0].mxu0
        %v1573 = vadd.f32 0.0, %v1572
        %v1574 = vpop.f32.mrb[0].mxu0
        %1575 = vmatprep.mubr.bf16.mxu0 %v1164
        %1576 = vmatmul.mubr.bf16.gmra.mrb[0].mxu0 %v1163
        %v1577 = vpop.f32.mrb[0].mxu0
        %v1578 = vadd.f32 0.0, %v1577
        %v1579 = vpop.f32.mrb[0].mxu0
        %v1580 = vpop.f32.mrb[0].mxu0
        %v1581 = vadd.f32 0.0, %v1580
        %v1582 = vpop.f32.mrb[0].mxu0
        %1583 = vdwg.mxu0
        %1584 = vmatprep.subr.bf16.mxu0 0
        %1585 = vmatpush1.bf16.msra.mxu0 %v1375
        %1586 = vmatprep.subr.bf16.mxu0 0
        %1587 = vmatpush1.bf16.msra.mxu0 %v1376
        %1588 = vmatprep.subr.bf16.mxu0 0
        %1589 = vmatpush1.bf16.msra.mxu0 %v1377
        %1590 = vmatprep.subr.bf16.mxu0 0
        %1591 = vmatpush1.bf16.msra.mxu0 %v1378
        %1592 = vmatprep.subr.bf16.mxu0 0
        %1593 = vmatpush1.bf16.msra.mxu0 %v1379
        %1594 = vmatprep.subr.bf16.mxu0 0
        %1595 = vmatpush1.bf16.msra.mxu0 %v1380
        %1596 = vmatprep.subr.bf16.mxu0 0
        %1597 = vmatpush1.bf16.msra.mxu0 %v1381
        %1598 = vmatprep.subr.bf16.mxu0 0
        %1599 = vmatpush1.bf16.msra.mxu0 %v1382
        %1600 = vmatprep.subr.bf16.mxu0 0
        %1601 = vmatpush1.bf16.msra.mxu0 %v1383
        %1602 = vmatprep.subr.bf16.mxu0 0
        %1603 = vmatpush1.bf16.msra.mxu0 %v1384
        %1604 = vmatprep.subr.bf16.mxu0 0
        %1605 = vmatpush1.bf16.msra.mxu0 %v1385
        %1606 = vmatprep.subr.bf16.mxu0 0
        %1607 = vmatpush1.bf16.msra.mxu0 %v1386
        %1608 = vmatprep.subr.bf16.mxu0 0
        %1609 = vmatpush1.bf16.msra.mxu0 %v1387
        %1610 = vmatprep.subr.bf16.mxu0 0
        %1611 = vmatpush1.bf16.msra.mxu0 %v1388
        %1612 = vmatprep.subr.bf16.mxu0 0
        %1613 = vmatpush1.bf16.msra.mxu0 %v1389
        %1614 = vmatprep.subr.bf16.mxu0 0
        %1615 = vmatpush1.bf16.msra.mxu0 %v1390
        %1616 = vmatprep.mubr.bf16.mxu0 %v1106
        %1617 = vmatmul.mubr.bf16.gmra.mrb[0].mxu0 %v1105
        %v1618 = vpop.f32.mrb[0].mxu0
        %v1619 = vadd.f32 %v1458, %v1618
        %v1620 = vpop.f32.mrb[0].mxu0
        %v1621 = vpop.f32.mrb[0].mxu0
        %v1622 = vadd.f32 %v1461, %v1621
        %v1623 = vpop.f32.mrb[0].mxu0
        %1624 = vmatprep.mubr.bf16.mxu0 %v1110
        %1625 = vmatmul.mubr.bf16.gmra.mrb[0].mxu0 %v1109
        %v1626 = vpop.f32.mrb[0].mxu0
        %v1627 = vadd.f32 %v1466, %v1626
        %v1628 = vpop.f32.mrb[0].mxu0
        %v1629 = vpop.f32.mrb[0].mxu0
        %v1630 = vadd.f32 %v1469, %v1629
        %v1631 = vpop.f32.mrb[0].mxu0
        %1632 = vmatprep.mubr.bf16.mxu0 %v1114
        %1633 = vmatmul.mubr.bf16.gmra.mrb[0].mxu0 %v1113
        %v1634 = vpop.f32.mrb[0].mxu0
        %v1635 = vadd.f32 %v1474, %v1634
        %v1636 = vpop.f32.mrb[0].mxu0
        %v1637 = vpop.f32.mrb[0].mxu0
        %v1638 = vadd.f32 %v1477, %v1637
        %v1639 = vpop.f32.mrb[0].mxu0
        %1640 = vmatprep.mubr.bf16.mxu0 %v1118
        %1641 = vmatmul.mubr.bf16.gmra.mrb[0].mxu0 %v1117
        %v1642 = vpop.f32.mrb[0].mxu0
        %v1643 = vadd.f32 %v1482, %v1642
        %v1644 = vpop.f32.mrb[0].mxu0
        %v1645 = vpop.f32.mrb[0].mxu0
        %v1646 = vadd.f32 %v1485, %v1645
        %v1647 = vpop.f32.mrb[0].mxu0
        %1648 = vmatprep.mubr.bf16.mxu0 %v1122
        %1649 = vmatmul.mubr.bf16.gmra.mrb[0].mxu0 %v1121
        %v1650 = vpop.f32.mrb[0].mxu0
        %v1651 = vadd.f32 %v1490, %v1650
        %v1652 = vpop.f32.mrb[0].mxu0
        %v1653 = vpop.f32.mrb[0].mxu0
        %v1654 = vadd.f32 %v1493, %v1653
        %v1655 = vpop.f32.mrb[0].mxu0
        %1656 = vmatprep.mubr.bf16.mxu0 %v1126
        %1657 = vmatmul.mubr.bf16.gmra.mrb[0].mxu0 %v1125
        %v1658 = vpop.f32.mrb[0].mxu0
        %v1659 = vadd.f32 %v1498, %v1658
        %v1660 = vpop.f32.mrb[0].mxu0
        %v1661 = vpop.f32.mrb[0].mxu0
        %v1662 = vadd.f32 %v1501, %v1661
        %v1663 = vpop.f32.mrb[0].mxu0
        %1664 = vmatprep.mubr.bf16.mxu0 %v1130
        %1665 = vmatmul.mubr.bf16.gmra.mrb[0].mxu0 %v1129
        %v1666 = vpop.f32.mrb[0].mxu0
        %v1667 = vadd.f32 %v1506, %v1666
        %v1668 = vpop.f32.mrb[0].mxu0
        %v1669 = vpop.f32.mrb[0].mxu0
        %v1670 = vadd.f32 %v1509, %v1669
        %v1671 = vpop.f32.mrb[0].mxu0
        %1672 = vmatprep.mubr.bf16.mxu0 %v1134
        %1673 = vmatmul.mubr.bf16.gmra.mrb[0].mxu0 %v1133
        %v1674 = vpop.f32.mrb[0].mxu0
        %v1675 = vadd.f32 %v1514, %v1674
        %v1676 = vpop.f32.mrb[0].mxu0
        %v1677 = vpop.f32.mrb[0].mxu0
        %v1678 = vadd.f32 %v1517, %v1677
        %v1679 = vpop.f32.mrb[0].mxu0
        %1680 = vmatprep.mubr.bf16.mxu0 %v1138
        %1681 = vmatmul.mubr.bf16.gmra.mrb[0].mxu0 %v1137
        %v1682 = vpop.f32.mrb[0].mxu0
        %v1683 = vadd.f32 %v1522, %v1682
        %v1684 = vpop.f32.mrb[0].mxu0
        %v1685 = vpop.f32.mrb[0].mxu0
        %v1686 = vadd.f32 %v1525, %v1685
        %v1687 = vpop.f32.mrb[0].mxu0
        %1688 = vmatprep.mubr.bf16.mxu0 %v1142
        %1689 = vmatmul.mubr.bf16.gmra.mrb[0].mxu0 %v1141
        %v1690 = vpop.f32.mrb[0].mxu0
        %v1691 = vadd.f32 %v1530, %v1690
        %v1692 = vpop.f32.mrb[0].mxu0
        %v1693 = vpop.f32.mrb[0].mxu0
        %v1694 = vadd.f32 %v1533, %v1693
        %v1695 = vpop.f32.mrb[0].mxu0
        %1696 = vmatprep.mubr.bf16.mxu0 %v1146
        %1697 = vmatmul.mubr.bf16.gmra.mrb[0].mxu0 %v1145
        %v1698 = vpop.f32.mrb[0].mxu0
        %v1699 = vadd.f32 %v1538, %v1698
        %v1700 = vpop.f32.mrb[0].mxu0
        %v1701 = vpop.f32.mrb[0].mxu0
        %v1702 = vadd.f32 %v1541, %v1701
        %v1703 = vpop.f32.mrb[0].mxu0
        %1704 = vmatprep.mubr.bf16.mxu0 %v1150
        %1705 = vmatmul.mubr.bf16.gmra.mrb[0].mxu0 %v1149
        %v1706 = vpop.f32.mrb[0].mxu0
        %v1707 = vadd.f32 %v1546, %v1706
        %v1708 = vpop.f32.mrb[0].mxu0
        %v1709 = vpop.f32.mrb[0].mxu0
        %v1710 = vadd.f32 %v1549, %v1709
        %v1711 = vpop.f32.mrb[0].mxu0
        %1712 = vmatprep.mubr.bf16.mxu0 %v1154
        %1713 = vmatmul.mubr.bf16.gmra.mrb[0].mxu0 %v1153
        %v1714 = vpop.f32.mrb[0].mxu0
        %v1715 = vadd.f32 %v1554, %v1714
        %v1716 = vpop.f32.mrb[0].mxu0
        %v1717 = vpop.f32.mrb[0].mxu0
        %v1718 = vadd.f32 %v1557, %v1717
        %v1719 = vpop.f32.mrb[0].mxu0
        %1720 = vmatprep.mubr.bf16.mxu0 %v1158
        %1721 = vmatmul.mubr.bf16.gmra.mrb[0].mxu0 %v1157
        %v1722 = vpop.f32.mrb[0].mxu0
        %v1723 = vadd.f32 %v1562, %v1722
        %v1724 = vpop.f32.mrb[0].mxu0
        %v1725 = vpop.f32.mrb[0].mxu0
        %v1726 = vadd.f32 %v1565, %v1725
        %v1727 = vpop.f32.mrb[0].mxu0
        %1728 = vmatprep.mubr.bf16.mxu0 %v1162
        %1729 = vmatmul.mubr.bf16.gmra.mrb[0].mxu0 %v1161
        %v1730 = vpop.f32.mrb[0].mxu0
        %v1731 = vadd.f32 %v1570, %v1730
        %v1732 = vpop.f32.mrb[0].mxu0
        %v1733 = vpop.f32.mrb[0].mxu0
        %v1734 = vadd.f32 %v1573, %v1733
        %v1735 = vpop.f32.mrb[0].mxu0
        %1736 = vmatprep.mubr.bf16.mxu0 %v1166
        %1737 = vmatmul.mubr.bf16.gmra.mrb[0].mxu0 %v1165
        %v1738 = vpop.f32.mrb[0].mxu0
        %v1739 = vadd.f32 %v1578, %v1738
        %v1740 = vpop.f32.mrb[0].mxu0
        %v1741 = vpop.f32.mrb[0].mxu0
        %v1742 = vadd.f32 %v1581, %v1741
        %v1743 = vpop.f32.mrb[0].mxu0
        %1744 = vdwg.mxu0
        %1745 = vst [vmem:[%s217] sm:$0xff] %v1619
        %1746 = vst [vmem:[%s217 + $0x8] sm:$0xff] %v1622
        %1747 = vst [vmem:[%s217 + $0x10] sm:$0xff] %v1627
        %1748 = vst [vmem:[%s217 + $0x18] sm:$0xff] %v1630
        %1749 = vst [vmem:[%s217 + $0x20] sm:$0xff] %v1635
        %1750 = vst [vmem:[%s217 + $0x28] sm:$0xff] %v1638
        %1751 = vst [vmem:[%s217 + $0x30] sm:$0xff] %v1643
        %1752 = vst [vmem:[%s217 + $0x38] sm:$0xff] %v1646
        %1753 = vst [vmem:[%s217 + $0x40] sm:$0xff] %v1651
        %1754 = vst [vmem:[%s217 + $0x48] sm:$0xff] %v1654
        %1755 = vst [vmem:[%s217 + $0x50] sm:$0xff] %v1659
        %1756 = vst [vmem:[%s217 + $0x58] sm:$0xff] %v1662
        %1757 = vst [vmem:[%s217 + $0x60] sm:$0xff] %v1667
        %1758 = vst [vmem:[%s217 + $0x68] sm:$0xff] %v1670
        %1759 = vst [vmem:[%s217 + $0x70] sm:$0xff] %v1675
        %1760 = vst [vmem:[%s217 + $0x78] sm:$0xff] %v1678
        %1761 = vst [vmem:[%s217 + $0x80] sm:$0xff] %v1683
        %1762 = vst [vmem:[%s217 + $0x88] sm:$0xff] %v1686
        %1763 = vst [vmem:[%s217 + $0x90] sm:$0xff] %v1691
        %1764 = vst [vmem:[%s217 + $0x98] sm:$0xff] %v1694
        %1765 = vst [vmem:[%s217 + $0xa0] sm:$0xff] %v1699
        %1766 = vst [vmem:[%s217 + $0xa8] sm:$0xff] %v1702
        %1767 = vst [vmem:[%s217 + $0xb0] sm:$0xff] %v1707
        %1768 = vst [vmem:[%s217 + $0xb8] sm:$0xff] %v1710
        %1769 = vst [vmem:[%s217 + $0xc0] sm:$0xff] %v1715
        %1770 = vst [vmem:[%s217 + $0xc8] sm:$0xff] %v1718
        %1771 = vst [vmem:[%s217 + $0xd0] sm:$0xff] %v1723
        %1772 = vst [vmem:[%s217 + $0xd8] sm:$0xff] %v1726
        %1773 = vst [vmem:[%s217 + $0xe0] sm:$0xff] %v1731
        %1774 = vst [vmem:[%s217 + $0xe8] sm:$0xff] %v1734
        %1775 = vst [vmem:[%s217 + $0xf0] sm:$0xff] %v1739
        %1776 = vst [vmem:[%s217 + $0xf8] sm:$0xff] %v1742
        %s1777 = sand.u32 %s97, 1
        %s1778 = scalar_lea.sflag [#allocation4], %s1777
        %s1779 = sand.u32 %s97, 1
        %s1780 = smul.addr %s1779, 256
        %s1781 = scalar_lea.vmem [#allocation8], %s1780
        // Predicated region
        $region45: #{mlp_forward.1} parent=31 // pred_check
          %p1782 = pneg %p107
        $region46: #{mlp_forward.1} parent=31 // pred_check_branch
          %1784 = sbr.rel (%p1782) target = $region48
        $region47: #{mlp_forward.1} parent=31 // pred_region
          %s1785 = smul.u32 32, %s21
          %s1787 = ssub.s32 4096, 4096
          %1788 = vsyncadd %s1778, %s1787
          %s1789 = smul.addr %s1785, 128
          %s1790 = scalar_lea.hbm %s3, %s1789
          %s1791 = sshll.u32 %s1781, 4
          %s1792 = int_to_ptr.vmem [resolvable:$true] %s1791
          %1797 = dma.vmem_to_hbm [thread:$0]  %s1792, 4096, %s1790, %s1778, 128, 128, 8
        $region48: #{mlp_forward.1} parent=31 // pred_fallthru
          _
      $region32: #{mlp_forward.1} parent=5 // pred_fallthru
        _
      %p1798 = scmp.le.s32.totalorder 2, %s16
      // Predicated region
      $region49: #{mlp_forward.1} parent=5 // pred_check
        %p1799 = pneg %p1798
      $region50: #{mlp_forward.1} parent=5 // pred_check_branch
        %1801 = sbr.rel (%p1799) target = $region52
      $region51: #{mlp_forward.1} parent=5 // pred_region
        %s1802 = ssub.s32 %s16, 2
        // Predicated region
        $region53: #{mlp_forward.1} parent=51 // pred_check
          %p1803 = pneg %p113
        $region54: #{mlp_forward.1} parent=51 // pred_check_branch
          %1805 = sbr.rel (%p1803) target = $region56
        $region55: #{mlp_forward.1} parent=51 // pred_region
          %s1806 = sand.u32 %s98, 1
          %s1807 = scalar_lea.sflag [#allocation4], %s1806
          %s1808 = sand.u32 %s98, 1
          %s1809 = smul.addr %s1808, 256
          %s1810 = scalar_lea.vmem [#allocation8], %s1809
          %1811 = dma.done %s1807, 4096
        $region56: #{mlp_forward.1} parent=51 // pred_fallthru
          _
      $region52: #{mlp_forward.1} parent=5 // pred_fallthru
        _
    $region6: #{mlp_forward.1} parent=1 // loop_footer
      %s20 = sadd.s32 1, %s16
    $region7: #{mlp_forward.1} parent=1 // loop_footer_branch
      %15 = sbr.rel target = $region3
    $region8: #{mlp_forward.1} parent=1 // loop_exit
      _
    %1812 = vsyncpa [#allocation3], 1
    %s1813 = scalar_lea.sflag [#allocation3], 1
    %1814 = vsyncpa %s1813, 1
    %1815 = vsyncpa [#allocation6], 1
    %1816 = vsyncpa [#allocation4], 1
    %s1817 = scalar_lea.sflag [#allocation4], 1
    %1818 = vsyncpa %s1817, 1

// kernel: mlp_forward.1
$region0: #{mlp_forward.1}
  #allocation0 [shape = 'u32[]', space=smem, size = 0x4, offset = 0x4, fixed_abs, tag = 'smem constant byte address 0x4 - core index']
  #allocation1 [shape = 'u32[144,128]{1,0:T(1,128)}', space=vmem, size = 0x12000, scoped, tag = 'internal scratch']
  %s0 = inlined_call_operand.hbm [shape: f32[512,128], index: 0, kind: input, shape index: {}]
  %s1 = inlined_call_operand.hbm [shape: bf16[128,512], index: 1, kind: input, shape index: {}]
  %s2 = inlined_call_operand.hbm [shape: bf16[512,128], index: 2, kind: input, shape index: {}]
  %s3 = inlined_call_operand.hbm [shape: f32[512,128], index: 3, kind: output, shape index: {}]
  %s4 = sld [smem:[#allocation0]]
  $region57: #{mlp_forward.1} parent=0
    _
  %s6 = ssub.s32 1, %s4
  %s7 = scalar_select 0, %s6, %s4
  $region1: #{mlp_forward.1} parent=0
    #allocation2 [shape = 'u8[262144]{0}', space=vmem, size = 0x40000, scoped, tag = 'input window, operand 0']
    #allocation3 [shape = 's32[2]{0}', space=sflag, size = 0x8, scoped, tag = 'scoped memory for mlp_forward.1']
    #allocation4 [shape = 's32[2]{0}', space=sflag, size = 0x8, scoped, tag = 'scoped memory for mlp_forward.1']
    #allocation5 [shape = 'u8[131072]{0}', space=vmem, size = 0x20000, scoped, tag = 'input window, operand 1, single buffered']
    #allocation6 [shape = 's32[1]{0}', space=sflag, size = 0x4, scoped, tag = 'scoped memory for mlp_forward.1']
    #allocation7 [shape = 'u8[131072]{0}', space=vmem, size = 0x20000, scoped, tag = 'input window, operand 2, single buffered']
    #allocation8 [shape = 'u8[262144]{0}', space=vmem, size = 0x40000, scoped, tag = 'output window, operand 0']
    %8 = vsyncpa [#allocation3], 0
    %s9 = scalar_lea.sflag [#allocation3], 1
    %10 = vsyncpa %s9, 0
    %11 = vsyncpa [#allocation6], 0
    %12 = vsyncpa [#allocation4], 0
    %s13 = scalar_lea.sflag [#allocation4], 1
    %14 = vsyncpa %s13, 0
    loop: start=0, step=1, limit=4
    $region2: #{mlp_forward.1} parent=1 // loop_pre_header
      _
    $region3: #{mlp_forward.1} parent=1 // loop_header
      %s16 = sphi 0, %s20
      %p17 = scmp.ge.s32.totalorder %s16, 4
      %s26 = sphi 0, %s28
      %s29 = sphi 0, %s26
      %s30 = sphi 0, %s29
      %s46 = sphi 0, %s30
      %s50 = sphi 0, %s50
      %s52 = sphi 0, %s50
      %s53 = sphi 0, %s52
      %s67 = sphi 0, %s53
      %s71 = sphi 0, %s71
      %s73 = sphi 0, %s71
      %s74 = sphi 0, %s73
      %s88 = sphi 0, %s74
      %s94 = sphi 0, %s96
      %s97 = sphi 0, %s94
      %s98 = sphi 0, %s97
      %s114 = sphi 0, %s98
    $region4: #{mlp_forward.1} parent=1 // loop_header_branch
      %19 = sbr.rel (%p17) target = $region8
    $region5: #{mlp_forward.1} parent=1 // loop_body
      %s21 = ssub.s32 %s16, 1
      %s22 = ssub.s32 %s16, 2
      %s23 = sadd.s32 %s16, 1
      %s24 = ssub.s32 %s16, %s23
      %p25 = scmp.eq.s32.totalorder %s24, 0
      %s27 = sadd.s32 %s26, 1
      %s28 = scalar_select %p25, %s26, %s27
      %p31 = pneg %p25
      %p32 = scmp.eq.s32.totalorder %s16, 1
      %p33 = por %p31, %p32
      %p34 = scmp.ne.s32.totalorder %s26, %s29
      %p35 = scmp.eq.s32.totalorder %s16, 0
      %p36 = por %p34, %p35
      %p37 = scmp.ne.s32.totalorder %s26, %s29
      %p38 = scmp.eq.s32.totalorder %s21, 1
      %p39 = por %p37, %p38
      %p40 = scmp.ne.s32.totalorder %s29, %s30
      %p41 = scmp.eq.s32.totalorder %s21, 0
      %p42 = por %p40, %p41
      %p43 = scmp.ne.s32.totalorder %s29, %s30
      %p44 = scmp.eq.s32.totalorder %s22, 1
      %p45 = por %p43, %p44
      %p47 = scmp.ne.s32.totalorder %s30, %s46
      %p48 = scmp.eq.s32.totalorder %s22, 0
      %p49 = por %p47, %p48
      %s51 = sadd.s32 %s50, 1
      %p54 = scmp.eq.s32.totalorder %s16, 1
      %p55 = scmp.ne.s32.totalorder %s50, %s52
      %p56 = scmp.eq.s32.totalorder %s16, 0
      %p57 = por %p55, %p56
      %p58 = scmp.ne.s32.totalorder %s50, %s52
      %p59 = scmp.eq.s32.totalorder %s21, 1
      %p60 = por %p58, %p59
      %p61 = scmp.ne.s32.totalorder %s52, %s53
      %p62 = scmp.eq.s32.totalorder %s21, 0
      %p63 = por %p61, %p62
      %p64 = scmp.ne.s32.totalorder %s52, %s53
      %p65 = scmp.eq.s32.totalorder %s22, 1
      %p66 = por %p64, %p65
      %p68 = scmp.ne.s32.totalorder %s53, %s67
      %p69 = scmp.eq.s32.totalorder %s22, 0
      %p70 = por %p68, %p69
      %s72 = sadd.s32 %s71, 1
      %p75 = scmp.eq.s32.totalorder %s16, 1
      %p76 = scmp.ne.s32.totalorder %s71, %s73
      %p77 = scmp.eq.s32.totalorder %s16, 0
      %p78 = por %p76, %p77
      %p79 = scmp.ne.s32.totalorder %s71, %s73
      %p80 = scmp.eq.s32.totalorder %s21, 1
      %p81 = por %p79, %p80
      %p82 = scmp.ne.s32.totalorder %s73, %s74
      %p83 = scmp.eq.s32.totalorder %s21, 0
      %p84 = por %p82, %p83
      %p85 = scmp.ne.s32.totalorder %s73, %s74
      %p86 = scmp.eq.s32.totalorder %s22, 1
      %p87 = por %p85, %p86
      %p89 = scmp.ne.s32.totalorder %s74, %s88
      %p90 = scmp.eq.s32.totalorder %s22, 0
      %p91 = por %p89, %p90
      %s92 = ssub.s32 %s16, %s23
      %p93 = scmp.eq.s32.totalorder %s92, 0
      %s95 = sadd.s32 %s94, 1
      %s96 = scalar_select %p93, %s94, %s95
      %p99 = pneg %p93
      %p100 = scmp.eq.s32.totalorder %s16, 1
      %p101 = por %p99, %p100
      %p102 = scmp.ne.s32.totalorder %s94, %s97
      %p103 = scmp.eq.s32.totalorder %s16, 0
      %p104 = por %p102, %p103
      %p105 = scmp.ne.s32.totalorder %s94, %s97
      %p106 = scmp.eq.s32.totalorder %s21, 1
      %p107 = por %p105, %p106
      %p108 = scmp.ne.s32.totalorder %s97, %s98
      %p109 = scmp.eq.s32.totalorder %s21, 0
      %p110 = por %p108, %p109
      %p111 = scmp.ne.s32.totalorder %s97, %s98
      %p112 = scmp.eq.s32.totalorder %s22, 1
      %p113 = por %p111, %p112
      %p115 = scmp.ne.s32.totalorder %s98, %s114
      %p116 = scmp.eq.s32.totalorder %s22, 0
      %p117 = por %p115, %p116
      %p118 = scmp.le.s32.totalorder 1, %s16
      %p119 = scmp.lt.s32.totalorder %s16, 3
      %p120 = pnand %p118, %p119
      %p121 = pneg %p120
      // Predicated region
      $region9: #{mlp_forward.1} parent=5 // pred_check
        _
      $region10: #{mlp_forward.1} parent=5 // pred_check_branch
        %123 = sbr.rel (%p120) target = $region12
      $region11: #{mlp_forward.1} parent=5 // pred_region
        %s124 = ssub.s32 %s16, 1
        // Predicated region
        $region13: #{mlp_forward.1} parent=11 // pred_check
          %p125 = pneg %p63
        $region14: #{mlp_forward.1} parent=11 // pred_check_branch
          %127 = sbr.rel (%p125) target = $region16
        $region15: #{mlp_forward.1} parent=11 // pred_region
          %s129 = ssub.s32 4096, 4096
          %130 = vsyncadd [#allocation6], %s129
          %s131 = sshll.u32 [#allocation5], 4
          %s132 = int_to_ptr.vmem [resolvable:$true] %s131
          %137 = dma.hbm_to_vmem [thread:$0]  %s1, 4096, %s132, [#allocation6], 256, 256, 16
        $region16: #{mlp_forward.1} parent=11 // pred_fallthru
          _
        // Predicated region
        $region17: #{mlp_forward.1} parent=11 // pred_check
          %p138 = pneg %p84
        $region18: #{mlp_forward.1} parent=11 // pred_check_branch
          %140 = sbr.rel (%p138) target = $region20
        $region19: #{mlp_forward.1} parent=11 // pred_region
          %s142 = ssub.s32 4096, 4096
          %143 = vsyncadd [#allocation6], %s142
          %s144 = sshll.u32 [#allocation7], 4
          %s145 = int_to_ptr.vmem [resolvable:$true] %s144
          %150 = dma.hbm_to_vmem [thread:$0]  %s2, 4096, %s145, [#allocation6], 64, 64, 4
        $region20: #{mlp_forward.1} parent=11 // pred_fallthru
          _
      $region12: #{mlp_forward.1} parent=5 // pred_fallthru
        _
      %p151 = scmp.lt.s32.totalorder %s16, 2
      // Predicated region
      $region21: #{mlp_forward.1} parent=5 // pred_check
        %p152 = pneg %p151
      $region22: #{mlp_forward.1} parent=5 // pred_check_branch
        %154 = sbr.rel (%p152) target = $region24
      $region23: #{mlp_forward.1} parent=5 // pred_region
        // Predicated region
        $region25: #{mlp_forward.1} parent=23 // pred_check
          %p155 = pneg %p36
        $region26: #{mlp_forward.1} parent=23 // pred_check_branch
          %157 = sbr.rel (%p155) target = $region28
        $region27: #{mlp_forward.1} parent=23 // pred_region
          %s158 = sand.u32 %s26, 1
          %s159 = scalar_lea.sflag [#allocation3], %s158
          %s160 = sand.u32 %s26, 1
          %s161 = smul.addr %s160, 256
          %s162 = scalar_lea.vmem [#allocation2], %s161
          %s163 = smul.u32 32, %s16
          %s165 = ssub.s32 4096, 4096
          %166 = vsyncadd %s159, %s165
          %s167 = smul.addr %s163, 128
          %s168 = scalar_lea.hbm %s0, %s167
          %s169 = sshll.u32 %s162, 4
          %s170 = int_to_ptr.vmem [resolvable:$true] %s169
          %175 = dma.hbm_to_vmem [thread:$0]  %s168, 4096, %s170, %s159, 128, 128, 8
        $region28: #{mlp_forward.1} parent=23 // pred_fallthru
          _
      $region24: #{mlp_forward.1} parent=5 // pred_fallthru
        _
      %p176 = scmp.le.s32.totalorder 1, %s16
      %p177 = scmp.lt.s32.totalorder %s16, 3
      %p178 = pnand %p176, %p177
      %p179 = pneg %p178
      // Predicated region
      $region29: #{mlp_forward.1} parent=5 // pred_check
        _
      $region30: #{mlp_forward.1} parent=5 // pred_check_branch
        %181 = sbr.rel (%p178) target = $region32
      $region31: #{mlp_forward.1} parent=5 // pred_region
        %s182 = ssub.s32 %s16, 1
        %s183 = sand.u32 %s29, 1
        %s184 = scalar_lea.sflag [#allocation3], %s183
        %s185 = sand.u32 %s29, 1
        %s186 = smul.addr %s185, 256
        %s187 = scalar_lea.vmem [#allocation2], %s186
        // Predicated region
        $region33: #{mlp_forward.1} parent=31 // pred_check
          %p188 = pneg %p42
        $region34: #{mlp_forward.1} parent=31 // pred_check_branch
          %190 = sbr.rel (%p188) target = $region36
        $region35: #{mlp_forward.1} parent=31 // pred_region
          %191 = dma.done %s184, 4096
        $region36: #{mlp_forward.1} parent=31 // pred_fallthru
          _
        // Predicated region
        $region37: #{mlp_forward.1} parent=31 // pred_check
          %p192 = pneg %p63
        $region38: #{mlp_forward.1} parent=31 // pred_check_branch
          %194 = sbr.rel (%p192) target = $region40
        $region39: #{mlp_forward.1} parent=31 // pred_region
          %195 = dma.done [#allocation6], 4096
        $region40: #{mlp_forward.1} parent=31 // pred_fallthru
          _
        // Predicated region
        $region41: #{mlp_forward.1} parent=31 // pred_check
          %p196 = pneg %p84
        $region42: #{mlp_forward.1} parent=31 // pred_check_branch
          %198 = sbr.rel (%p196) target = $region44
        $region43: #{mlp_forward.1} parent=31 // pred_region
          %199 = dma.done [#allocation6], 4096
        $region44: #{mlp_forward.1} parent=31 // pred_fallthru
          _
        %s200 = sand.u32 %s29, 1
        %s201 = scalar_lea.sflag [#allocation3], %s200
        %s202 = sand.u32 %s29, 1
        %s203 = smul.addr %s202, 256
        %s204 = scalar_lea.vmem [#allocation2], %s203
        %p205 = pneg %p42
        %p206 = pneg %p39
        %p207 = pneg %p63
        %p208 = pneg %p60
        %p209 = pneg %p84
        %p210 = pneg %p81
        %p211 = pneg %p110
        %p212 = pneg %p107
        %s213 = sand.u32 %s97, 1
        %s214 = scalar_lea.sflag [#allocation4], %s213
        %s215 = sand.u32 %s97, 1
        %s216 = smul.addr %s215, 256
        %s217 = scalar_lea.vmem [#allocation8], %s216
        %s218 = smul.u32 32, %s21
        %s219 = smul.u32 32, %s21
        %v221 = vld [vmem:[%s187] sm:$0xff]
        %v222 = vld [vmem:[%s187 + $0x8] sm:$0xff]
        %v223 = vld [vmem:[%s187 + $0x10] sm:$0xff]
        %v224 = vld [vmem:[%s187 + $0x18] sm:$0xff]
        %v225 = vld [vmem:[%s187 + $0x20] sm:$0xff]
        %v226 = vld [vmem:[%s187 + $0x28] sm:$0xff]
        %v227 = vld [vmem:[%s187 + $0x30] sm:$0xff]
        %v228 = vld [vmem:[%s187 + $0x38] sm:$0xff]
        %v229 = vld [vmem:[%s187 + $0x40] sm:$0xff]
        %v230 = vld [vmem:[%s187 + $0x48] sm:$0xff]
        %v231 = vld [vmem:[%s187 + $0x50] sm:$0xff]
        %v232 = vld [vmem:[%s187 + $0x58] sm:$0xff]
        %v233 = vld [vmem:[%s187 + $0x60] sm:$0xff]
        %v234 = vld [vmem:[%s187 + $0x68] sm:$0xff]
        %v235 = vld [vmem:[%s187 + $0x70] sm:$0xff]
        %v236 = vld [vmem:[%s187 + $0x78] sm:$0xff]
        %v237 = vld [vmem:[%s187 + $0x80] sm:$0xff]
        %v238 = vld [vmem:[%s187 + $0x88] sm:$0xff]
        %v239 = vld [vmem:[%s187 + $0x90] sm:$0xff]
        %v240 = vld [vmem:[%s187 + $0x98] sm:$0xff]
        %v241 = vld [vmem:[%s187 + $0xa0] sm:$0xff]
        %v242 = vld [vmem:[%s187 + $0xa8] sm:$0xff]
        %v243 = vld [vmem:[%s187 + $0xb0] sm:$0xff]
        %v244 = vld [vmem:[%s187 + $0xb8] sm:$0xff]
        %v245 = vld [vmem:[%s187 + $0xc0] sm:$0xff]
        %v246 = vld [vmem:[%s187 + $0xc8] sm:$0xff]
        %v247 = vld [vmem:[%s187 + $0xd0] sm:$0xff]
        %v248 = vld [vmem:[%s187 + $0xd8] sm:$0xff]
        %v249 = vld [vmem:[%s187 + $0xe0] sm:$0xff]
        %v250 = vld [vmem:[%s187 + $0xe8] sm:$0xff]
        %v251 = vld [vmem:[%s187 + $0xf0] sm:$0xff]
        %v252 = vld [vmem:[%s187 + $0xf8] sm:$0xff]
        %v253 = vpack.c.bf16 %v222, %v221
        %v254 = vpack.c.bf16 %v224, %v223
        %v255 = vpack.c.bf16 %v226, %v225
        %v256 = vpack.c.bf16 %v228, %v227
        %v257 = vpack.c.bf16 %v230, %v229
        %v258 = vpack.c.bf16 %v232, %v231
        %v259 = vpack.c.bf16 %v234, %v233
        %v260 = vpack.c.bf16 %v236, %v235
        %v261 = vpack.c.bf16 %v238, %v237
        %v262 = vpack.c.bf16 %v240, %v239
        %v263 = vpack.c.bf16 %v242, %v241
        %v264 = vpack.c.bf16 %v244, %v243
        %v265 = vpack.c.bf16 %v246, %v245
        %v266 = vpack.c.bf16 %v248, %v247
        %v267 = vpack.c.bf16 %v250, %v249
        %v268 = vpack.c.bf16 %v252, %v251
        %v269 = vld [vmem:[#allocation5] sm:$0xff]
        %v270 = vld [vmem:[#allocation5 + $0x8] sm:$0xff]
        %v271 = vld [vmem:[#allocation5 + $0x10] sm:$0xff]
        %v272 = vld [vmem:[#allocation5 + $0x18] sm:$0xff]
        %v273 = vld [vmem:[#allocation5 + $0x20] sm:$0xff]
        %v274 = vld [vmem:[#allocation5 + $0x28] sm:$0xff]
        %v275 = vld [vmem:[#allocation5 + $0x30] sm:$0xff]
        %v276 = vld [vmem:[#allocation5 + $0x38] sm:$0xff]
        %v277 = vld [vmem:[#allocation5 + $0x40] sm:$0xff]
        %v278 = vld [vmem:[#allocation5 + $0x48] sm:$0xff]
        %v279 = vld [vmem:[#allocation5 + $0x50] sm:$0xff]
        %v280 = vld [vmem:[#allocation5 + $0x58] sm:$0xff]
        %v281 = vld [vmem:[#allocation5 + $0x60] sm:$0xff]
        %v282 = vld [vmem:[#allocation5 + $0x68] sm:$0xff]
        %v283 = vld [vmem:[#allocation5 + $0x70] sm:$0xff]
        %v284 = vld [vmem:[#allocation5 + $0x78] sm:$0xff]
        %v285 = vld [vmem:[#allocation5 + $0x80] sm:$0xff]
        %v286 = vld [vmem:[#allocation5 + $0x88] sm:$0xff]
        %v287 = vld [vmem:[#allocation5 + $0x90] sm:$0xff]
        %v288 = vld [vmem:[#allocation5 + $0x98] sm:$0xff]
        %v289 = vld [vmem:[#allocation5 + $0xa0] sm:$0xff]
        %v290 = vld [vmem:[#allocation5 + $0xa8] sm:$0xff]
        %v291 = vld [vmem:[#allocation5 + $0xb0] sm:$0xff]
        %v292 = vld [vmem:[#allocation5 + $0xb8] sm:$0xff]
        %v293 = vld [vmem:[#allocation5 + $0xc0] sm:$0xff]
        %v294 = vld [vmem:[#allocation5 + $0xc8] sm:$0xff]
        %v295 = vld [vmem:[#allocation5 + $0xd0] sm:$0xff]
        %v296 = vld [vmem:[#allocation5 + $0xd8] sm:$0xff]
        %v297 = vld [vmem:[#allocation5 + $0xe0] sm:$0xff]
        %v298 = vld [vmem:[#allocation5 + $0xe8] sm:$0xff]
        %v299 = vld [vmem:[#allocation5 + $0xf0] sm:$0xff]
        %v300 = vld [vmem:[#allocation5 + $0xf8] sm:$0xff]
        %v333 = vunpack.c.l.b16 %v269
        %v334 = vunpack.c.h.b16 %v269
        %v335 = vunpack.c.l.b16 %v270
        %v336 = vunpack.c.h.b16 %v270
        %v337 = vunpack.c.l.b16 %v271
        %v338 = vunpack.c.h.b16 %v271
        %v339 = vunpack.c.l.b16 %v272
        %v340 = vunpack.c.h.b16 %v272
        %v341 = vunpack.c.l.b16 %v273
        %v342 = vunpack.c.h.b16 %v273
        %v343 = vunpack.c.l.b16 %v274
        %v344 = vunpack.c.h.b16 %v274
        %v345 = vunpack.c.l.b16 %v275
        %v346 = vunpack.c.h.b16 %v275
        %v347 = vunpack.c.l.b16 %v276
        %v348 = vunpack.c.h.b16 %v276
        %v349 = vunpack.c.l.b16 %v277
        %v350 = vunpack.c.h.b16 %v277
        %v351 = vunpack.c.l.b16 %v278
        %v352 = vunpack.c.h.b16 %v278
        %v353 = vunpack.c.l.b16 %v279
        %v354 = vunpack.c.h.b16 %v279
        %v355 = vunpack.c.l.b16 %v280
        %v356 = vunpack.c.h.b16 %v280
        %v357 = vunpack.c.l.b16 %v281
        %v358 = vunpack.c.h.b16 %v281
        %v359 = vunpack.c.l.b16 %v282
        %v360 = vunpack.c.h.b16 %v282
        %v361 = vunpack.c.l.b16 %v283
        %v362 = vunpack.c.h.b16 %v283
        %v363 = vunpack.c.l.b16 %v284
        %v364 = vunpack.c.h.b16 %v284
        %v365 = vunpack.c.l.b16 %v285
        %v366 = vunpack.c.h.b16 %v285
        %v367 = vunpack.c.l.b16 %v286
        %v368 = vunpack.c.h.b16 %v286
        %v369 = vunpack.c.l.b16 %v287
        %v370 = vunpack.c.h.b16 %v287
        %v371 = vunpack.c.l.b16 %v288
        %v372 = vunpack.c.h.b16 %v288
        %v373 = vunpack.c.l.b16 %v289
        %v374 = vunpack.c.h.b16 %v289
        %v375 = vunpack.c.l.b16 %v290
        %v376 = vunpack.c.h.b16 %v290
        %v377 = vunpack.c.l.b16 %v291
        %v378 = vunpack.c.h.b16 %v291
        %v379 = vunpack.c.l.b16 %v292
        %v380 = vunpack.c.h.b16 %v292
        %v381 = vunpack.c.l.b16 %v293
        %v382 = vunpack.c.h.b16 %v293
        %v383 = vunpack.c.l.b16 %v294
        %v384 = vunpack.c.h.b16 %v294
        %v385 = vunpack.c.l.b16 %v295
        %v386 = vunpack.c.h.b16 %v295
        %v387 = vunpack.c.l.b16 %v296
        %v388 = vunpack.c.h.b16 %v296
        %v389 = vunpack.c.l.b16 %v297
        %v390 = vunpack.c.h.b16 %v297
        %v391 = vunpack.c.l.b16 %v298
        %v392 = vunpack.c.h.b16 %v298
        %v393 = vunpack.c.l.b16 %v299
        %v394 = vunpack.c.h.b16 %v299
        %v395 = vunpack.c.l.b16 %v300
        %v396 = vunpack.c.h.b16 %v300
        %v397 = vpack.c.b16 %v337, %v333
        %v398 = vpack.c.b16 %v338, %v334
        %v399 = vpack.c.b16 %v339, %v335
        %v400 = vpack.c.b16 %v340, %v336
        %v401 = vpack.c.b16 %v345, %v341
        %v402 = vpack.c.b16 %v346, %v342
        %v403 = vpack.c.b16 %v347, %v343
        %v404 = vpack.c.b16 %v348, %v344
        %v405 = vpack.c.b16 %v353, %v349
        %v406 = vpack.c.b16 %v354, %v350
        %v407 = vpack.c.b16 %v355, %v351
        %v408 = vpack.c.b16 %v356, %v352
        %v409 = vpack.c.b16 %v361, %v357
        %v410 = vpack.c.b16 %v362, %v358
        %v411 = vpack.c.b16 %v363, %v359
        %v412 = vpack.c.b16 %v364, %v360
        %v413 = vpack.c.b16 %v369, %v365
        %v414 = vpack.c.b16 %v370, %v366
        %v415 = vpack.c.b16 %v371, %v367
        %v416 = vpack.c.b16 %v372, %v368
        %v417 = vpack.c.b16 %v377, %v373
        %v418 = vpack.c.b16 %v378, %v374
        %v419 = vpack.c.b16 %v379, %v375
        %v420 = vpack.c.b16 %v380, %v376
        %v421 = vpack.c.b16 %v385, %v381
        %v422 = vpack.c.b16 %v386, %v382
        %v423 = vpack.c.b16 %v387, %v383
        %v424 = vpack.c.b16 %v388, %v384
        %v425 = vpack.c.b16 %v393, %v389
        %v426 = vpack.c.b16 %v394, %v390
        %v427 = vpack.c.b16 %v395, %v391
        %v428 = vpack.c.b16 %v396, %v392
        %461 = vmatprep.subr.bf16.mxu0 %v398
        %462 = vmatpush1.bf16.msra.mxu0 %v397
        %463 = vmatprep.subr.bf16.mxu0 %v402
        %464 = vmatpush1.bf16.msra.mxu0 %v401
        %465 = vmatprep.subr.bf16.mxu0 %v406
        %466 = vmatpush1.bf16.msra.mxu0 %v405
        %467 = vmatprep.subr.bf16.mxu0 %v410
        %468 = vmatpush1.bf16.msra.mxu0 %v409
        %469 = vmatprep.subr.bf16.mxu0 %v414
        %470 = vmatpush1.bf16.msra.mxu0 %v413
        %471 = vmatprep.subr.bf16.mxu0 %v418
        %472 = vmatpush1.bf16.msra.mxu0 %v417
        %473 = vmatprep.subr.bf16.mxu0 %v422
        %474 = vmatpush1.bf16.msra.mxu0 %v421
        %475 = vmatprep.subr.bf16.mxu0 %v426
        %476 = vmatpush1.bf16.msra.mxu0 %v425
        %477 = vmatprep.subr.bf16.mxu0 0
        %478 = vmatpush1.bf16.msra.mxu0 0
        %479 = vmatprep.subr.bf16.mxu0 0
        %480 = vmatpush1.bf16.msra.mxu0 0
        %481 = vmatprep.subr.bf16.mxu0 0
        %482 = vmatpush1.bf16.msra.mxu0 0
        %483 = vmatprep.subr.bf16.mxu0 0
        %484 = vmatpush1.bf16.msra.mxu0 0
        %485 = vmatprep.subr.bf16.mxu0 0
        %486 = vmatpush1.bf16.msra.mxu0 0
        %487 = vmatprep.subr.bf16.mxu0 0
        %488 = vmatpush1.bf16.msra.mxu0 0
        %489 = vmatprep.subr.bf16.mxu0 0
        %490 = vmatpush1.bf16.msra.mxu0 0
        %491 = vmatprep.subr.bf16.mxu0 0
        %492 = vmatpush1.bf16.msra.mxu0 0
        %493 = vmatprep.mubr.bf16.mxu0 0
        %494 = vmatmul.mubr.bf16.gmra.mrb[0].mxu0 %v253
        %v495 = vpop.f32.mrb[0].mxu0
        %v496 = vadd.f32 0.0, %v495
        %v497 = vpop.f32.mrb[0].mxu0
        %v498 = vadd.f32 0.0, %v497
        %v499 = vpop.f32.mrb[0].mxu0
        %v500 = vadd.f32 0.0, %v499
        %v501 = vpop.f32.mrb[0].mxu0
        %v502 = vadd.f32 0.0, %v501
        %503 = vmatprep.mubr.bf16.mxu0 0
        %504 = vmatmul.mubr.bf16.gmra.mrb[0].mxu0 %v254
        %v505 = vpop.f32.mrb[0].mxu0
        %v506 = vadd.f32 0.0, %v505
        %v507 = vpop.f32.mrb[0].mxu0
        %v508 = vadd.f32 0.0, %v507
        %v509 = vpop.f32.mrb[0].mxu0
        %v510 = vadd.f32 0.0, %v509
        %v511 = vpop.f32.mrb[0].mxu0
        %v512 = vadd.f32 0.0, %v511
        %513 = vmatprep.mubr.bf16.mxu0 0
        %514 = vmatmul.mubr.bf16.gmra.mrb[0].mxu0 %v255
        %v515 = vpop.f32.mrb[0].mxu0
        %v516 = vadd.f32 0.0, %v515
        %v517 = vpop.f32.mrb[0].mxu0
        %v518 = vadd.f32 0.0, %v517
        %v519 = vpop.f32.mrb[0].mxu0
        %v520 = vadd.f32 0.0, %v519
        %v521 = vpop.f32.mrb[0].mxu0
        %v522 = vadd.f32 0.0, %v521
        %523 = vmatprep.mubr.bf16.mxu0 0
        %524 = vmatmul.mubr.bf16.gmra.mrb[0].mxu0 %v256
        %v525 = vpop.f32.mrb[0].mxu0
        %v526 = vadd.f32 0.0, %v525
        %v527 = vpop.f32.mrb[0].mxu0
        %v528 = vadd.f32 0.0, %v527
        %v529 = vpop.f32.mrb[0].mxu0
        %v530 = vadd.f32 0.0, %v529
        %v531 = vpop.f32.mrb[0].mxu0
        %v532 = vadd.f32 0.0, %v531
        %533 = vmatprep.mubr.bf16.mxu0 0
        %534 = vmatmul.mubr.bf16.gmra.mrb[0].mxu0 %v257
        %v535 = vpop.f32.mrb[0].mxu0
        %v536 = vadd.f32 0.0, %v535
        %v537 = vpop.f32.mrb[0].mxu0
        %v538 = vadd.f32 0.0, %v537
        %v539 = vpop.f32.mrb[0].mxu0
        %v540 = vadd.f32 0.0, %v539
        %v541 = vpop.f32.mrb[0].mxu0
        %v542 = vadd.f32 0.0, %v541
        %543 = vmatprep.mubr.bf16.mxu0 0
        %544 = vmatmul.mubr.bf16.gmra.mrb[0].mxu0 %v258
        %v545 = vpop.f32.mrb[0].mxu0
        %v546 = vadd.f32 0.0, %v545
        %v547 = vpop.f32.mrb[0].mxu0
        %v548 = vadd.f32 0.0, %v547
        %v549 = vpop.f32.mrb[0].mxu0
        %v550 = vadd.f32 0.0, %v549
        %v551 = vpop.f32.mrb[0].mxu0
        %v552 = vadd.f32 0.0, %v551
        %553 = vmatprep.mubr.bf16.mxu0 0
        %554 = vmatmul.mubr.bf16.gmra.mrb[0].mxu0 %v259
        %v555 = vpop.f32.mrb[0].mxu0
        %v556 = vadd.f32 0.0, %v555
        %v557 = vpop.f32.mrb[0].mxu0
        %v558 = vadd.f32 0.0, %v557
        %v559 = vpop.f32.mrb[0].mxu0
        %v560 = vadd.f32 0.0, %v559
        %v561 = vpop.f32.mrb[0].mxu0
        %v562 = vadd.f32 0.0, %v561
        %563 = vmatprep.mubr.bf16.mxu0 0
        %564 = vmatmul.mubr.bf16.gmra.mrb[0].mxu0 %v260
        %v565 = vpop.f32.mrb[0].mxu0
        %v566 = vadd.f32 0.0, %v565
        %v567 = vpop.f32.mrb[0].mxu0
        %v568 = vadd.f32 0.0, %v567
        %v569 = vpop.f32.mrb[0].mxu0
        %v570 = vadd.f32 0.0, %v569
        %v571 = vpop.f32.mrb[0].mxu0
        %v572 = vadd.f32 0.0, %v571
        %573 = vmatprep.mubr.bf16.mxu0 0
        %574 = vmatmul.mubr.bf16.gmra.mrb[0].mxu0 %v261
        %v575 = vpop.f32.mrb[0].mxu0
        %v576 = vadd.f32 0.0, %v575
        %v577 = vpop.f32.mrb[0].mxu0
        %v578 = vadd.f32 0.0, %v577
        %v579 = vpop.f32.mrb[0].mxu0
        %v580 = vadd.f32 0.0, %v579
        %v581 = vpop.f32.mrb[0].mxu0
        %v582 = vadd.f32 0.0, %v581
        %583 = vmatprep.mubr.bf16.mxu0 0
        %584 = vmatmul.mubr.bf16.gmra.mrb[0].mxu0 %v262
        %v585 = vpop.f32.mrb[0].mxu0
        %v586 = vadd.f32 0.0, %v585
        %v587 = vpop.f32.mrb[0].mxu0
        %v588 = vadd.f32 0.0, %v587
        %v589 = vpop.f32.mrb[0].mxu0
        %v590 = vadd.f32 0.0, %v589
        %v591 = vpop.f32.mrb[0].mxu0
        %v592 = vadd.f32 0.0, %v591
        %593 = vmatprep.mubr.bf16.mxu0 0
        %594 = vmatmul.mubr.bf16.gmra.mrb[0].mxu0 %v263
        %v595 = vpop.f32.mrb[0].mxu0
        %v596 = vadd.f32 0.0, %v595
        %v597 = vpop.f32.mrb[0].mxu0
        %v598 = vadd.f32 0.0, %v597
        %v599 = vpop.f32.mrb[0].mxu0
        %v600 = vadd.f32 0.0, %v599
        %v601 = vpop.f32.mrb[0].mxu0
        %v602 = vadd.f32 0.0, %v601
        %603 = vmatprep.mubr.bf16.mxu0 0
        %604 = vmatmul.mubr.bf16.gmra.mrb[0].mxu0 %v264
        %v605 = vpop.f32.mrb[0].mxu0
        %v606 = vadd.f32 0.0, %v605
        %v607 = vpop.f32.mrb[0].mxu0
        %v608 = vadd.f32 0.0, %v607
        %v609 = vpop.f32.mrb[0].mxu0
        %v610 = vadd.f32 0.0, %v609
        %v611 = vpop.f32.mrb[0].mxu0
        %v612 = vadd.f32 0.0, %v611
        %613 = vmatprep.mubr.bf16.mxu0 0
        %614 = vmatmul.mubr.bf16.gmra.mrb[0].mxu0 %v265
        %v615 = vpop.f32.mrb[0].mxu0
        %v616 = vadd.f32 0.0, %v615
        %v617 = vpop.f32.mrb[0].mxu0
        %v618 = vadd.f32 0.0, %v617
        %v619 = vpop.f32.mrb[0].mxu0
        %v620 = vadd.f32 0.0, %v619
        %v621 = vpop.f32.mrb[0].mxu0
        %v622 = vadd.f32 0.0, %v621
        %623 = vmatprep.mubr.bf16.mxu0 0
        %624 = vmatmul.mubr.bf16.gmra.mrb[0].mxu0 %v266
        %v625 = vpop.f32.mrb[0].mxu0
        %v626 = vadd.f32 0.0, %v625
        %v627 = vpop.f32.mrb[0].mxu0
        %v628 = vadd.f32 0.0, %v627
        %v629 = vpop.f32.mrb[0].mxu0
        %v630 = vadd.f32 0.0, %v629
        %v631 = vpop.f32.mrb[0].mxu0
        %v632 = vadd.f32 0.0, %v631
        %633 = vmatprep.mubr.bf16.mxu0 0
        %634 = vmatmul.mubr.bf16.gmra.mrb[0].mxu0 %v267
        %v635 = vpop.f32.mrb[0].mxu0
        %v636 = vadd.f32 0.0, %v635
        %v637 = vpop.f32.mrb[0].mxu0
        %v638 = vadd.f32 0.0, %v637
        %v639 = vpop.f32.mrb[0].mxu0
        %v640 = vadd.f32 0.0, %v639
        %v641 = vpop.f32.mrb[0].mxu0
        %v642 = vadd.f32 0.0, %v641
        %643 = vmatprep.mubr.bf16.mxu0 0
        %644 = vmatmul.mubr.bf16.gmra.mrb[0].mxu0 %v268
        %v645 = vpop.f32.mrb[0].mxu0
        %v646 = vadd.f32 0.0, %v645
        %v647 = vpop.f32.mrb[0].mxu0
        %v648 = vadd.f32 0.0, %v647
        %v649 = vpop.f32.mrb[0].mxu0
        %v650 = vadd.f32 0.0, %v649
        %v651 = vpop.f32.mrb[0].mxu0
        %v652 = vadd.f32 0.0, %v651
        %653 = vdwg.mxu0
        %654 = vmatprep.subr.bf16.mxu0 %v400
        %655 = vmatpush1.bf16.msra.mxu0 %v399
        %656 = vmatprep.subr.bf16.mxu0 %v404
        %657 = vmatpush1.bf16.msra.mxu0 %v403
        %658 = vmatprep.subr.bf16.mxu0 %v408
        %659 = vmatpush1.bf16.msra.mxu0 %v407
        %660 = vmatprep.subr.bf16.mxu0 %v412
        %661 = vmatpush1.bf16.msra.mxu0 %v411
        %662 = vmatprep.subr.bf16.mxu0 %v416
        %663 = vmatpush1.bf16.msra.mxu0 %v415
        %664 = vmatprep.subr.bf16.mxu0 %v420
        %665 = vmatpush1.bf16.msra.mxu0 %v419
        %666 = vmatprep.subr.bf16.mxu0 %v424
        %667 = vmatpush1.bf16.msra.mxu0 %v423
        %668 = vmatprep.subr.bf16.mxu0 %v428
        %669 = vmatpush1.bf16.msra.mxu0 %v427
        %670 = vmatprep.subr.bf16.mxu0 0
        %671 = vmatpush1.bf16.msra.mxu0 0
        %672 = vmatprep.subr.bf16.mxu0 0
        %673 = vmatpush1.bf16.msra.mxu0 0
        %674 = vmatprep.subr.bf16.mxu0 0
        %675 = vmatpush1.bf16.msra.mxu0 0
        %676 = vmatprep.subr.bf16.mxu0 0
        %677 = vmatpush1.bf16.msra.mxu0 0
        %678 = vmatprep.subr.bf16.mxu0 0
        %679 = vmatpush1.bf16.msra.mxu0 0
        %680 = vmatprep.subr.bf16.mxu0 0
        %681 = vmatpush1.bf16.msra.mxu0 0
        %682 = vmatprep.subr.bf16.mxu0 0
        %683 = vmatpush1.bf16.msra.mxu0 0
        %684 = vmatprep.subr.bf16.mxu0 0
        %685 = vmatpush1.bf16.msra.mxu0 0
        %686 = vmatprep.mubr.bf16.mxu0 0
        %687 = vmatmul.mubr.bf16.gmra.mrb[0].mxu0 %v253
        %v688 = vpop.f32.mrb[0].mxu0
        %v689 = vadd.f32 0.0, %v688
        %v690 = vpop.f32.mrb[0].mxu0
        %v691 = vadd.f32 0.0, %v690
        %v692 = vpop.f32.mrb[0].mxu0
        %v693 = vadd.f32 0.0, %v692
        %v694 = vpop.f32.mrb[0].mxu0
        %v695 = vadd.f32 0.0, %v694
        %696 = vmatprep.mubr.bf16.mxu0 0
        %697 = vmatmul.mubr.bf16.gmra.mrb[0].mxu0 %v254
        %v698 = vpop.f32.mrb[0].mxu0
        %v699 = vadd.f32 0.0, %v698
        %v700 = vpop.f32.mrb[0].mxu0
        %v701 = vadd.f32 0.0, %v700
        %v702 = vpop.f32.mrb[0].mxu0
        %v703 = vadd.f32 0.0, %v702
        %v704 = vpop.f32.mrb[0].mxu0
        %v705 = vadd.f32 0.0, %v704
        %706 = vmatprep.mubr.bf16.mxu0 0
        %707 = vmatmul.mubr.bf16.gmra.mrb[0].mxu0 %v255
        %v708 = vpop.f32.mrb[0].mxu0
        %v709 = vadd.f32 0.0, %v708
        %v710 = vpop.f32.mrb[0].mxu0
        %v711 = vadd.f32 0.0, %v710
        %v712 = vpop.f32.mrb[0].mxu0
        %v713 = vadd.f32 0.0, %v712
        %v714 = vpop.f32.mrb[0].mxu0
        %v715 = vadd.f32 0.0, %v714
        %716 = vmatprep.mubr.bf16.mxu0 0
        %717 = vmatmul.mubr.bf16.gmra.mrb[0].mxu0 %v256
        %v718 = vpop.f32.mrb[0].mxu0
        %v719 = vadd.f32 0.0, %v718
        %v720 = vpop.f32.mrb[0].mxu0
        %v721 = vadd.f32 0.0, %v720
        %v722 = vpop.f32.mrb[0].mxu0
        %v723 = vadd.f32 0.0, %v722
        %v724 = vpop.f32.mrb[0].mxu0
        %v725 = vadd.f32 0.0, %v724
        %726 = vmatprep.mubr.bf16.mxu0 0
        %727 = vmatmul.mubr.bf16.gmra.mrb[0].mxu0 %v257
        %v728 = vpop.f32.mrb[0].mxu0
        %v729 = vadd.f32 0.0, %v728
        %v730 = vpop.f32.mrb[0].mxu0
        %v731 = vadd.f32 0.0, %v730
        %v732 = vpop.f32.mrb[0].mxu0
        %v733 = vadd.f32 0.0, %v732
        %v734 = vpop.f32.mrb[0].mxu0
        %v735 = vadd.f32 0.0, %v734
        %736 = vmatprep.mubr.bf16.mxu0 0
        %737 = vmatmul.mubr.bf16.gmra.mrb[0].mxu0 %v258
        %v738 = vpop.f32.mrb[0].mxu0
        %v739 = vadd.f32 0.0, %v738
        %v740 = vpop.f32.mrb[0].mxu0
        %v741 = vadd.f32 0.0, %v740
        %v742 = vpop.f32.mrb[0].mxu0
        %v743 = vadd.f32 0.0, %v742
        %v744 = vpop.f32.mrb[0].mxu0
        %v745 = vadd.f32 0.0, %v744
        %746 = vmatprep.mubr.bf16.mxu0 0
        %747 = vmatmul.mubr.bf16.gmra.mrb[0].mxu0 %v259
        %v748 = vpop.f32.mrb[0].mxu0
        %v749 = vadd.f32 0.0, %v748
        %v750 = vpop.f32.mrb[0].mxu0
        %v751 = vadd.f32 0.0, %v750
        %v752 = vpop.f32.mrb[0].mxu0
        %v753 = vadd.f32 0.0, %v752
        %v754 = vpop.f32.mrb[0].mxu0
        %v755 = vadd.f32 0.0, %v754
        %756 = vmatprep.mubr.bf16.mxu0 0
        %757 = vmatmul.mubr.bf16.gmra.mrb[0].mxu0 %v260
        %v758 = vpop.f32.mrb[0].mxu0
        %v759 = vadd.f32 0.0, %v758
        %v760 = vpop.f32.mrb[0].mxu0
        %v761 = vadd.f32 0.0, %v760
        %v762 = vpop.f32.mrb[0].mxu0
        %v763 = vadd.f32 0.0, %v762
        %v764 = vpop.f32.mrb[0].mxu0
        %v765 = vadd.f32 0.0, %v764
        %766 = vmatprep.mubr.bf16.mxu0 0
        %767 = vmatmul.mubr.bf16.gmra.mrb[0].mxu0 %v261
        %v768 = vpop.f32.mrb[0].mxu0
        %v769 = vadd.f32 0.0, %v768
        %v770 = vpop.f32.mrb[0].mxu0
        %v771 = vadd.f32 0.0, %v770
        %v772 = vpop.f32.mrb[0].mxu0
        %v773 = vadd.f32 0.0, %v772
        %v774 = vpop.f32.mrb[0].mxu0
        %v775 = vadd.f32 0.0, %v774
        %776 = vmatprep.mubr.bf16.mxu0 0
        %777 = vmatmul.mubr.bf16.gmra.mrb[0].mxu0 %v262
        %v778 = vpop.f32.mrb[0].mxu0
        %v779 = vadd.f32 0.0, %v778
        %v780 = vpop.f32.mrb[0].mxu0
        %v781 = vadd.f32 0.0, %v780
        %v782 = vpop.f32.mrb[0].mxu0
        %v783 = vadd.f32 0.0, %v782
        %v784 = vpop.f32.mrb[0].mxu0
        %v785 = vadd.f32 0.0, %v784
        %786 = vmatprep.mubr.bf16.mxu0 0
        %787 = vmatmul.mubr.bf16.gmra.mrb[0].mxu0 %v263
        %v788 = vpop.f32.mrb[0].mxu0
        %v789 = vadd.f32 0.0, %v788
        %v790 = vpop.f32.mrb[0].mxu0
        %v791 = vadd.f32 0.0, %v790
        %v792 = vpop.f32.mrb[0].mxu0
        %v793 = vadd.f32 0.0, %v792
        %v794 = vpop.f32.mrb[0].mxu0
        %v795 = vadd.f32 0.0, %v794
        %796 = vmatprep.mubr.bf16.mxu0 0
        %797 = vmatmul.mubr.bf16.gmra.mrb[0].mxu0 %v264
        %v798 = vpop.f32.mrb[0].mxu0
        %v799 = vadd.f32 0.0, %v798
        %v800 = vpop.f32.mrb[0].mxu0
        %v801 = vadd.f32 0.0, %v800
        %v802 = vpop.f32.mrb[0].mxu0
        %v803 = vadd.f32 0.0, %v802
        %v804 = vpop.f32.mrb[0].mxu0
        %v805 = vadd.f32 0.0, %v804
        %806 = vmatprep.mubr.bf16.mxu0 0
        %807 = vmatmul.mubr.bf16.gmra.mrb[0].mxu0 %v265
        %v808 = vpop.f32.mrb[0].mxu0
        %v809 = vadd.f32 0.0, %v808
        %v810 = vpop.f32.mrb[0].mxu0
        %v811 = vadd.f32 0.0, %v810
        %v812 = vpop.f32.mrb[0].mxu0
        %v813 = vadd.f32 0.0, %v812
        %v814 = vpop.f32.mrb[0].mxu0
        %v815 = vadd.f32 0.0, %v814
        %816 = vmatprep.mubr.bf16.mxu0 0
        %817 = vmatmul.mubr.bf16.gmra.mrb[0].mxu0 %v266
        %v818 = vpop.f32.mrb[0].mxu0
        %v819 = vadd.f32 0.0, %v818
        %v820 = vpop.f32.mrb[0].mxu0
        %v821 = vadd.f32 0.0, %v820
        %v822 = vpop.f32.mrb[0].mxu0
        %v823 = vadd.f32 0.0, %v822
        %v824 = vpop.f32.mrb[0].mxu0
        %v825 = vadd.f32 0.0, %v824
        %826 = vmatprep.mubr.bf16.mxu0 0
        %827 = vmatmul.mubr.bf16.gmra.mrb[0].mxu0 %v267
        %v828 = vpop.f32.mrb[0].mxu0
        %v829 = vadd.f32 0.0, %v828
        %v830 = vpop.f32.mrb[0].mxu0
        %v831 = vadd.f32 0.0, %v830
        %v832 = vpop.f32.mrb[0].mxu0
        %v833 = vadd.f32 0.0, %v832
        %v834 = vpop.f32.mrb[0].mxu0
        %v835 = vadd.f32 0.0, %v834
        %836 = vmatprep.mubr.bf16.mxu0 0
        %837 = vmatmul.mubr.bf16.gmra.mrb[0].mxu0 %v268
        %v838 = vpop.f32.mrb[0].mxu0
        %v839 = vadd.f32 0.0, %v838
        %v840 = vpop.f32.mrb[0].mxu0
        %v841 = vadd.f32 0.0, %v840
        %v842 = vpop.f32.mrb[0].mxu0
        %v843 = vadd.f32 0.0, %v842
        %v844 = vpop.f32.mrb[0].mxu0
        %v845 = vadd.f32 0.0, %v844
        %846 = vdwg.mxu0
        %v847 = vmax.f32 %v496, 0.0
        %v848 = vmax.f32 %v498, 0.0
        %v849 = vmax.f32 %v689, 0.0
        %v850 = vmax.f32 %v691, 0.0
        %v851 = vmax.f32 %v500, 0.0
        %v852 = vmax.f32 %v502, 0.0
        %v853 = vmax.f32 %v693, 0.0
        %v854 = vmax.f32 %v695, 0.0
        %v855 = vmax.f32 %v506, 0.0
        %v856 = vmax.f32 %v508, 0.0
        %v857 = vmax.f32 %v699, 0.0
        %v858 = vmax.f32 %v701, 0.0
        %v859 = vmax.f32 %v510, 0.0
        %v860 = vmax.f32 %v512, 0.0
        %v861 = vmax.f32 %v703, 0.0
        %v862 = vmax.f32 %v705, 0.0
        %v863 = vmax.f32 %v516, 0.0
        %v864 = vmax.f32 %v518, 0.0
        %v865 = vmax.f32 %v709, 0.0
        %v866 = vmax.f32 %v711, 0.0
        %v867 = vmax.f32 %v520, 0.0
        %v868 = vmax.f32 %v522, 0.0
        %v869 = vmax.f32 %v713, 0.0
        %v870 = vmax.f32 %v715, 0.0
        %v871 = vmax.f32 %v526, 0.0
        %v872 = vmax.f32 %v528, 0.0
        %v873 = vmax.f32 %v719, 0.0
        %v874 = vmax.f32 %v721, 0.0
        %v875 = vmax.f32 %v530, 0.0
        %v876 = vmax.f32 %v532, 0.0
        %v877 = vmax.f32 %v723, 0.0
        %v878 = vmax.f32 %v725, 0.0
        %v879 = vmax.f32 %v536, 0.0
        %v880 = vmax.f32 %v538, 0.0
        %v881 = vmax.f32 %v729, 0.0
        %v882 = vmax.f32 %v731, 0.0
        %v883 = vmax.f32 %v540, 0.0
        %v884 = vmax.f32 %v542, 0.0
        %v885 = vmax.f32 %v733, 0.0
        %v886 = vmax.f32 %v735, 0.0
        %v887 = vmax.f32 %v546, 0.0
        %v888 = vmax.f32 %v548, 0.0
        %v889 = vmax.f32 %v739, 0.0
        %v890 = vmax.f32 %v741, 0.0
        %v891 = vmax.f32 %v550, 0.0
        %v892 = vmax.f32 %v552, 0.0
        %v893 = vmax.f32 %v743, 0.0
        %v894 = vmax.f32 %v745, 0.0
        %v895 = vmax.f32 %v556, 0.0
        %v896 = vmax.f32 %v558, 0.0
        %v897 = vmax.f32 %v749, 0.0
        %v898 = vmax.f32 %v751, 0.0
        %v899 = vmax.f32 %v560, 0.0
        %v900 = vmax.f32 %v562, 0.0
        %v901 = vmax.f32 %v753, 0.0
        %v902 = vmax.f32 %v755, 0.0
        %v903 = vmax.f32 %v566, 0.0
        %v904 = vmax.f32 %v568, 0.0
        %v905 = vmax.f32 %v759, 0.0
        %v906 = vmax.f32 %v761, 0.0
        %v907 = vmax.f32 %v570, 0.0
        %v908 = vmax.f32 %v572, 0.0
        %v909 = vmax.f32 %v763, 0.0
        %v910 = vmax.f32 %v765, 0.0
        %v911 = vmax.f32 %v576, 0.0
        %v912 = vmax.f32 %v578, 0.0
        %v913 = vmax.f32 %v769, 0.0
        %v914 = vmax.f32 %v771, 0.0
        %v915 = vmax.f32 %v580, 0.0
        %v916 = vmax.f32 %v582, 0.0
        %v917 = vmax.f32 %v773, 0.0
        %v918 = vmax.f32 %v775, 0.0
        %v919 = vmax.f32 %v586, 0.0
        %v920 = vmax.f32 %v588, 0.0
        %v921 = vmax.f32 %v779, 0.0
        %v922 = vmax.f32 %v781, 0.0
        %v923 = vmax.f32 %v590, 0.0
        %v924 = vmax.f32 %v592, 0.0
        %v925 = vmax.f32 %v783, 0.0
        %v926 = vmax.f32 %v785, 0.0
        %v927 = vmax.f32 %v596, 0.0
        %v928 = vmax.f32 %v598, 0.0
        %v929 = vmax.f32 %v789, 0.0
        %v930 = vmax.f32 %v791, 0.0
        %v931 = vmax.f32 %v600, 0.0
        %v932 = vmax.f32 %v602, 0.0
        %v933 = vmax.f32 %v793, 0.0
        %v934 = vmax.f32 %v795, 0.0
        %v935 = vmax.f32 %v606, 0.0
        %v936 = vmax.f32 %v608, 0.0
        %v937 = vmax.f32 %v799, 0.0
        %v938 = vmax.f32 %v801, 0.0
        %v939 = vmax.f32 %v610, 0.0
        %v940 = vmax.f32 %v612, 0.0
        %v941 = vmax.f32 %v803, 0.0
        %v942 = vmax.f32 %v805, 0.0
        %v943 = vmax.f32 %v616, 0.0
        %v944 = vmax.f32 %v618, 0.0
        %v945 = vmax.f32 %v809, 0.0
        %v946 = vmax.f32 %v811, 0.0
        %v947 = vmax.f32 %v620, 0.0
        %v948 = vmax.f32 %v622, 0.0
        %v949 = vmax.f32 %v813, 0.0
        %v950 = vmax.f32 %v815, 0.0
        %v951 = vmax.f32 %v626, 0.0
        %v952 = vmax.f32 %v628, 0.0
        %v953 = vmax.f32 %v819, 0.0
        %v954 = vmax.f32 %v821, 0.0
        %v955 = vmax.f32 %v630, 0.0
        %v956 = vmax.f32 %v632, 0.0
        %v957 = vmax.f32 %v823, 0.0
        %v958 = vmax.f32 %v825, 0.0
        %v959 = vmax.f32 %v636, 0.0
        %v960 = vmax.f32 %v638, 0.0
        %v961 = vmax.f32 %v829, 0.0
        %v962 = vmax.f32 %v831, 0.0
        %v963 = vmax.f32 %v640, 0.0
        %v964 = vmax.f32 %v642, 0.0
        %v965 = vmax.f32 %v833, 0.0
        %v966 = vmax.f32 %v835, 0.0
        %v967 = vmax.f32 %v646, 0.0
        %v968 = vmax.f32 %v648, 0.0
        %v969 = vmax.f32 %v839, 0.0
        %v970 = vmax.f32 %v841, 0.0
        %v971 = vmax.f32 %v650, 0.0
        %v972 = vmax.f32 %v652, 0.0
        %v973 = vmax.f32 %v843, 0.0
        %v974 = vmax.f32 %v845, 0.0
        %v975 = vmul.f32 %v847, %v847
        %v976 = vmul.f32 %v848, %v848
        %v977 = vmul.f32 %v849, %v849
        %v978 = vmul.f32 %v850, %v850
        %v979 = vmul.f32 %v851, %v851
        %v980 = vmul.f32 %v852, %v852
        %v981 = vmul.f32 %v853, %v853
        %v982 = vmul.f32 %v854, %v854
        %v983 = vmul.f32 %v855, %v855
        %v984 = vmul.f32 %v856, %v856
        %v985 = vmul.f32 %v857, %v857
        %v986 = vmul.f32 %v858, %v858
        %v987 = vmul.f32 %v859, %v859
        %v988 = vmul.f32 %v860, %v860
        %v989 = vmul.f32 %v861, %v861
        %v990 = vmul.f32 %v862, %v862
        %v991 = vmul.f32 %v863, %v863
        %v992 = vmul.f32 %v864, %v864
        %v993 = vmul.f32 %v865, %v865
        %v994 = vmul.f32 %v866, %v866
        %v995 = vmul.f32 %v867, %v867
        %v996 = vmul.f32 %v868, %v868
        %v997 = vmul.f32 %v869, %v869
        %v998 = vmul.f32 %v870, %v870
        %v999 = vmul.f32 %v871, %v871
        %v1000 = vmul.f32 %v872, %v872
        %v1001 = vmul.f32 %v873, %v873
        %v1002 = vmul.f32 %v874, %v874
        %v1003 = vmul.f32 %v875, %v875
        %v1004 = vmul.f32 %v876, %v876
        %v1005 = vmul.f32 %v877, %v877
        %v1006 = vmul.f32 %v878, %v878
        %v1007 = vmul.f32 %v879, %v879
        %v1008 = vmul.f32 %v880, %v880
        %v1009 = vmul.f32 %v881, %v881
        %v1010 = vmul.f32 %v882, %v882
        %v1011 = vmul.f32 %v883, %v883
        %v1012 = vmul.f32 %v884, %v884
        %v1013 = vmul.f32 %v885, %v885
        %v1014 = vmul.f32 %v886, %v886
        %v1015 = vmul.f32 %v887, %v887
        %v1016 = vmul.f32 %v888, %v888
        %v1017 = vmul.f32 %v889, %v889
        %v1018 = vmul.f32 %v890, %v890
        %v1019 = vmul.f32 %v891, %v891
        %v1020 = vmul.f32 %v892, %v892
        %v1021 = vmul.f32 %v893, %v893
        %v1022 = vmul.f32 %v894, %v894
        %v1023 = vmul.f32 %v895, %v895
        %v1024 = vmul.f32 %v896, %v896
        %v1025 = vmul.f32 %v897, %v897
        %v1026 = vmul.f32 %v898, %v898
        %v1027 = vmul.f32 %v899, %v899
        %v1028 = vmul.f32 %v900, %v900
        %v1029 = vmul.f32 %v901, %v901
        %v1030 = vmul.f32 %v902, %v902
        %v1031 = vmul.f32 %v903, %v903
        %v1032 = vmul.f32 %v904, %v904
        %v1033 = vmul.f32 %v905, %v905
        %v1034 = vmul.f32 %v906, %v906
        %v1035 = vmul.f32 %v907, %v907
        %v1036 = vmul.f32 %v908, %v908
        %v1037 = vmul.f32 %v909, %v909
        %v1038 = vmul.f32 %v910, %v910
        %v1039 = vmul.f32 %v911, %v911
        %v1040 = vmul.f32 %v912, %v912
        %v1041 = vmul.f32 %v913, %v913
        %v1042 = vmul.f32 %v914, %v914
        %v1043 = vmul.f32 %v915, %v915
        %v1044 = vmul.f32 %v916, %v916
        %v1045 = vmul.f32 %v917, %v917
        %v1046 = vmul.f32 %v918, %v918
        %v1047 = vmul.f32 %v919, %v919
        %v1048 = vmul.f32 %v920, %v920
        %v1049 = vmul.f32 %v921, %v921
        %v1050 = vmul.f32 %v922, %v922
        %v1051 = vmul.f32 %v923, %v923
        %v1052 = vmul.f32 %v924, %v924
        %v1053 = vmul.f32 %v925, %v925
        %v1054 = vmul.f32 %v926, %v926
        %v1055 = vmul.f32 %v927, %v927
        %v1056 = vmul.f32 %v928, %v928
        %v1057 = vmul.f32 %v929, %v929
        %v1058 = vmul.f32 %v930, %v930
        %v1059 = vmul.f32 %v931, %v931
        %v1060 = vmul.f32 %v932, %v932
        %v1061 = vmul.f32 %v933, %v933
        %v1062 = vmul.f32 %v934, %v934
        %v1063 = vmul.f32 %v935, %v935
        %v1064 = vmul.f32 %v936, %v936
        %v1065 = vmul.f32 %v937, %v937
        %v1066 = vmul.f32 %v938, %v938
        %v1067 = vmul.f32 %v939, %v939
        %v1068 = vmul.f32 %v940, %v940
        %v1069 = vmul.f32 %v941, %v941
        %v1070 = vmul.f32 %v942, %v942
        %v1071 = vmul.f32 %v943, %v943
        %v1072 = vmul.f32 %v944, %v944
        %v1073 = vmul.f32 %v945, %v945
        %v1074 = vmul.f32 %v946, %v946
        %v1075 = vmul.f32 %v947, %v947
        %v1076 = vmul.f32 %v948, %v948
        %v1077 = vmul.f32 %v949, %v949
        %v1078 = vmul.f32 %v950, %v950
        %v1079 = vmul.f32 %v951, %v951
        %v1080 = vmul.f32 %v952, %v952
        %v1081 = vmul.f32 %v953, %v953
        %v1082 = vmul.f32 %v954, %v954
        %v1083 = vmul.f32 %v955, %v955
        %v1084 = vmul.f32 %v956, %v956
        %v1085 = vmul.f32 %v957, %v957
        %v1086 = vmul.f32 %v958, %v958
        %v1087 = vmul.f32 %v959, %v959
        %v1088 = vmul.f32 %v960, %v960
        %v1089 = vmul.f32 %v961, %v961
        %v1090 = vmul.f32 %v962, %v962
        %v1091 = vmul.f32 %v963, %v963
        %v1092 = vmul.f32 %v964, %v964
        %v1093 = vmul.f32 %v965, %v965
        %v1094 = vmul.f32 %v966, %v966
        %v1095 = vmul.f32 %v967, %v967
        %v1096 = vmul.f32 %v968, %v968
        %v1097 = vmul.f32 %v969, %v969
        %v1098 = vmul.f32 %v970, %v970
        %v1099 = vmul.f32 %v971, %v971
        %v1100 = vmul.f32 %v972, %v972
        %v1101 = vmul.f32 %v973, %v973
        %v1102 = vmul.f32 %v974, %v974
        %v1103 = vpack.c.bf16 %v979, %v975
        %v1104 = vpack.c.bf16 %v980, %v976
        %v1105 = vpack.c.bf16 %v981, %v977
        %v1106 = vpack.c.bf16 %v982, %v978
        %v1107 = vpack.c.bf16 %v987, %v983
        %v1108 = vpack.c.bf16 %v988, %v984
        %v1109 = vpack.c.bf16 %v989, %v985
        %v1110 = vpack.c.bf16 %v990, %v986
        %v1111 = vpack.c.bf16 %v995, %v991
        %v1112 = vpack.c.bf16 %v996, %v992
        %v1113 = vpack.c.bf16 %v997, %v993
        %v1114 = vpack.c.bf16 %v998, %v994
        %v1115 = vpack.c.bf16 %v1003, %v999
        %v1116 = vpack.c.bf16 %v1004, %v1000
        %v1117 = vpack.c.bf16 %v1005, %v1001
        %v1118 = vpack.c.bf16 %v1006, %v1002
        %v1119 = vpack.c.bf16 %v1011, %v1007
        %v1120 = vpack.c.bf16 %v1012, %v1008
        %v1121 = vpack.c.bf16 %v1013, %v1009
        %v1122 = vpack.c.bf16 %v1014, %v1010
        %v1123 = vpack.c.bf16 %v1019, %v1015
        %v1124 = vpack.c.bf16 %v1020, %v1016
        %v1125 = vpack.c.bf16 %v1021, %v1017
        %v1126 = vpack.c.bf16 %v1022, %v1018
        %v1127 = vpack.c.bf16 %v1027, %v1023
        %v1128 = vpack.c.bf16 %v1028, %v1024
        %v1129 = vpack.c.bf16 %v1029, %v1025
        %v1130 = vpack.c.bf16 %v1030, %v1026
        %v1131 = vpack.c.bf16 %v1035, %v1031
        %v1132 = vpack.c.bf16 %v1036, %v1032
        %v1133 = vpack.c.bf16 %v1037, %v1033
        %v1134 = vpack.c.bf16 %v1038, %v1034
        %v1135 = vpack.c.bf16 %v1043, %v1039
        %v1136 = vpack.c.bf16 %v1044, %v1040
        %v1137 = vpack.c.bf16 %v1045, %v1041
        %v1138 = vpack.c.bf16 %v1046, %v1042
        %v1139 = vpack.c.bf16 %v1051, %v1047
        %v1140 = vpack.c.bf16 %v1052, %v1048
        %v1141 = vpack.c.bf16 %v1053, %v1049
        %v1142 = vpack.c.bf16 %v1054, %v1050
        %v1143 = vpack.c.bf16 %v1059, %v1055
        %v1144 = vpack.c.bf16 %v1060, %v1056
        %v1145 = vpack.c.bf16 %v1061, %v1057
        %v1146 = vpack.c.bf16 %v1062, %v1058
        %v1147 = vpack.c.bf16 %v1067, %v1063
        %v1148 = vpack.c.bf16 %v1068, %v1064
        %v1149 = vpack.c.bf16 %v1069, %v1065
        %v1150 = vpack.c.bf16 %v1070, %v1066
        %v1151 = vpack.c.bf16 %v1075, %v1071
        %v1152 = vpack.c.bf16 %v1076, %v1072
        %v1153 = vpack.c.bf16 %v1077, %v1073
        %v1154 = vpack.c.bf16 %v1078, %v1074
        %v1155 = vpack.c.bf16 %v1083, %v1079
        %v1156 = vpack.c.bf16 %v1084, %v1080
        %v1157 = vpack.c.bf16 %v1085, %v1081
        %v1158 = vpack.c.bf16 %v1086, %v1082
        %v1159 = vpack.c.bf16 %v1091, %v1087
        %v1160 = vpack.c.bf16 %v1092, %v1088
        %v1161 = vpack.c.bf16 %v1093, %v1089
        %v1162 = vpack.c.bf16 %v1094, %v1090
        %v1163 = vpack.c.bf16 %v1099, %v1095
        %v1164 = vpack.c.bf16 %v1100, %v1096
        %v1165 = vpack.c.bf16 %v1101, %v1097
        %v1166 = vpack.c.bf16 %v1102, %v1098
        %v1167 = vld [vmem:[#allocation7] sm:$0xf]
        %v1168 = vld [vmem:[#allocation7 + $0x4] sm:$0xf]
        %v1169 = vld [vmem:[#allocation7 + $0x8] sm:$0xf]
        %v1170 = vld [vmem:[#allocation7 + $0xc] sm:$0xf]
        %v1171 = vld [vmem:[#allocation7 + $0x10] sm:$0xf]
        %v1172 = vld [vmem:[#allocation7 + $0x14] sm:$0xf]
        %v1173 = vld [vmem:[#allocation7 + $0x18] sm:$0xf]
        %v1174 = vld [vmem:[#allocation7 + $0x1c] sm:$0xf]
        %v1175 = vld [vmem:[#allocation7 + $0x20] sm:$0xf]
        %v1176 = vld [vmem:[#allocation7 + $0x24] sm:$0xf]
        %v1177 = vld [vmem:[#allocation7 + $0x28] sm:$0xf]
        %v1178 = vld [vmem:[#allocation7 + $0x2c] sm:$0xf]
        %v1179 = vld [vmem:[#allocation7 + $0x30] sm:$0xf]
        %v1180 = vld [vmem:[#allocation7 + $0x34] sm:$0xf]
        %v1181 = vld [vmem:[#allocation7 + $0x38] sm:$0xf]
        %v1182 = vld [vmem:[#allocation7 + $0x3c] sm:$0xf]
        %v1183 = vld [vmem:[#allocation7 + $0x40] sm:$0xf]
        %v1184 = vld [vmem:[#allocation7 + $0x44] sm:$0xf]
        %v1185 = vld [vmem:[#allocation7 + $0x48] sm:$0xf]
        %v1186 = vld [vmem:[#allocation7 + $0x4c] sm:$0xf]
        %v1187 = vld [vmem:[#allocation7 + $0x50] sm:$0xf]
        %v1188 = vld [vmem:[#allocation7 + $0x54] sm:$0xf]
        %v1189 = vld [vmem:[#allocation7 + $0x58] sm:$0xf]
        %v1190 = vld [vmem:[#allocation7 + $0x5c] sm:$0xf]
        %v1191 = vld [vmem:[#allocation7 + $0x60] sm:$0xf]
        %v1192 = vld [vmem:[#allocation7 + $0x64] sm:$0xf]
        %v1193 = vld [vmem:[#allocation7 + $0x68] sm:$0xf]
        %v1194 = vld [vmem:[#allocation7 + $0x6c] sm:$0xf]
        %v1195 = vld [vmem:[#allocation7 + $0x70] sm:$0xf]
        %v1196 = vld [vmem:[#allocation7 + $0x74] sm:$0xf]
        %v1197 = vld [vmem:[#allocation7 + $0x78] sm:$0xf]
        %v1198 = vld [vmem:[#allocation7 + $0x7c] sm:$0xf]
        %v1199 = vld [vmem:[#allocation7 + $0x80] sm:$0xf]
        %v1200 = vld [vmem:[#allocation7 + $0x84] sm:$0xf]
        %v1201 = vld [vmem:[#allocation7 + $0x88] sm:$0xf]
        %v1202 = vld [vmem:[#allocation7 + $0x8c] sm:$0xf]
        %v1203 = vld [vmem:[#allocation7 + $0x90] sm:$0xf]
        %v1204 = vld [vmem:[#allocation7 + $0x94] sm:$0xf]
        %v1205 = vld [vmem:[#allocation7 + $0x98] sm:$0xf]
        %v1206 = vld [vmem:[#allocation7 + $0x9c] sm:$0xf]
        %v1207 = vld [vmem:[#allocation7 + $0xa0] sm:$0xf]
        %v1208 = vld [vmem:[#allocation7 + $0xa4] sm:$0xf]
        %v1209 = vld [vmem:[#allocation7 + $0xa8] sm:$0xf]
        %v1210 = vld [vmem:[#allocation7 + $0xac] sm:$0xf]
        %v1211 = vld [vmem:[#allocation7 + $0xb0] sm:$0xf]
        %v1212 = vld [vmem:[#allocation7 + $0xb4] sm:$0xf]
        %v1213 = vld [vmem:[#allocation7 + $0xb8] sm:$0xf]
        %v1214 = vld [vmem:[#allocation7 + $0xbc] sm:$0xf]
        %v1215 = vld [vmem:[#allocation7 + $0xc0] sm:$0xf]
        %v1216 = vld [vmem:[#allocation7 + $0xc4] sm:$0xf]
        %v1217 = vld [vmem:[#allocation7 + $0xc8] sm:$0xf]
        %v1218 = vld [vmem:[#allocation7 + $0xcc] sm:$0xf]
        %v1219 = vld [vmem:[#allocation7 + $0xd0] sm:$0xf]
        %v1220 = vld [vmem:[#allocation7 + $0xd4] sm:$0xf]
        %v1221 = vld [vmem:[#allocation7 + $0xd8] sm:$0xf]
        %v1222 = vld [vmem:[#allocation7 + $0xdc] sm:$0xf]
        %v1223 = vld [vmem:[#allocation7 + $0xe0] sm:$0xf]
        %v1224 = vld [vmem:[#allocation7 + $0xe4] sm:$0xf]
        %v1225 = vld [vmem:[#allocation7 + $0xe8] sm:$0xf]
        %v1226 = vld [vmem:[#allocation7 + $0xec] sm:$0xf]
        %v1227 = vld [vmem:[#allocation7 + $0xf0] sm:$0xf]
        %v1228 = vld [vmem:[#allocation7 + $0xf4] sm:$0xf]
        %v1229 = vld [vmem:[#allocation7 + $0xf8] sm:$0xf]
        %v1230 = vld [vmem:[#allocation7 + $0xfc] sm:$0xf]
        %v1295 = vunpack.c.l.b16 %v1167
        %v1296 = vunpack.c.l.b16 %v1168
        %v1297 = vunpack.c.l.b16 %v1169
        %v1298 = vunpack.c.l.b16 %v1170
        %v1299 = vunpack.c.l.b16 %v1171
        %v1300 = vunpack.c.l.b16 %v1172
        %v1301 = vunpack.c.l.b16 %v1173
        %v1302 = vunpack.c.l.b16 %v1174
        %v1303 = vunpack.c.l.b16 %v1175
        %v1304 = vunpack.c.l.b16 %v1176
        %v1305 = vunpack.c.l.b16 %v1177
        %v1306 = vunpack.c.l.b16 %v1178
        %v1307 = vunpack.c.l.b16 %v1179
        %v1308 = vunpack.c.l.b16 %v1180
        %v1309 = vunpack.c.l.b16 %v1181
        %v1310 = vunpack.c.l.b16 %v1182
        %v1311 = vunpack.c.l.b16 %v1183
        %v1312 = vunpack.c.l.b16 %v1184
        %v1313 = vunpack.c.l.b16 %v1185
        %v1314 = vunpack.c.l.b16 %v1186
        %v1315 = vunpack.c.l.b16 %v1187
        %v1316 = vunpack.c.l.b16 %v1188
        %v1317 = vunpack.c.l.b16 %v1189
        %v1318 = vunpack.c.l.b16 %v1190
        %v1319 = vunpack.c.l.b16 %v1191
        %v1320 = vunpack.c.l.b16 %v1192
        %v1321 = vunpack.c.l.b16 %v1193
        %v1322 = vunpack.c.l.b16 %v1194
        %v1323 = vunpack.c.l.b16 %v1195
        %v1324 = vunpack.c.l.b16 %v1196
        %v1325 = vunpack.c.l.b16 %v1197
        %v1326 = vunpack.c.l.b16 %v1198
        %v1327 = vunpack.c.l.b16 %v1199
        %v1328 = vunpack.c.l.b16 %v1200
        %v1329 = vunpack.c.l.b16 %v1201
        %v1330 = vunpack.c.l.b16 %v1202
        %v1331 = vunpack.c.l.b16 %v1203
        %v1332 = vunpack.c.l.b16 %v1204
        %v1333 = vunpack.c.l.b16 %v1205
        %v1334 = vunpack.c.l.b16 %v1206
        %v1335 = vunpack.c.l.b16 %v1207
        %v1336 = vunpack.c.l.b16 %v1208
        %v1337 = vunpack.c.l.b16 %v1209
        %v1338 = vunpack.c.l.b16 %v1210
        %v1339 = vunpack.c.l.b16 %v1211
        %v1340 = vunpack.c.l.b16 %v1212
        %v1341 = vunpack.c.l.b16 %v1213
        %v1342 = vunpack.c.l.b16 %v1214
        %v1343 = vunpack.c.l.b16 %v1215
        %v1344 = vunpack.c.l.b16 %v1216
        %v1345 = vunpack.c.l.b16 %v1217
        %v1346 = vunpack.c.l.b16 %v1218
        %v1347 = vunpack.c.l.b16 %v1219
        %v1348 = vunpack.c.l.b16 %v1220
        %v1349 = vunpack.c.l.b16 %v1221
        %v1350 = vunpack.c.l.b16 %v1222
        %v1351 = vunpack.c.l.b16 %v1223
        %v1352 = vunpack.c.l.b16 %v1224
        %v1353 = vunpack.c.l.b16 %v1225
        %v1354 = vunpack.c.l.b16 %v1226
        %v1355 = vunpack.c.l.b16 %v1227
        %v1356 = vunpack.c.l.b16 %v1228
        %v1357 = vunpack.c.l.b16 %v1229
        %v1358 = vunpack.c.l.b16 %v1230
        %v1359 = vpack.c.b16 %v1296, %v1295
        %v1360 = vpack.c.b16 %v1298, %v1297
        %v1361 = vpack.c.b16 %v1300, %v1299
        %v1362 = vpack.c.b16 %v1302, %v1301
        %v1363 = vpack.c.b16 %v1304, %v1303
        %v1364 = vpack.c.b16 %v1306, %v1305
        %v1365 = vpack.c.b16 %v1308, %v1307
        %v1366 = vpack.c.b16 %v1310, %v1309
        %v1367 = vpack.c.b16 %v1312, %v1311
        %v1368 = vpack.c.b16 %v1314, %v1313
        %v1369 = vpack.c.b16 %v1316, %v1315
        %v1370 = vpack.c.b16 %v1318, %v1317
        %v1371 = vpack.c.b16 %v1320, %v1319
        %v1372 = vpack.c.b16 %v1322, %v1321
        %v1373 = vpack.c.b16 %v1324, %v1323
        %v1374 = vpack.c.b16 %v1326, %v1325
        %v1375 = vpack.c.b16 %v1328, %v1327
        %v1376 = vpack.c.b16 %v1330, %v1329
        %v1377 = vpack.c.b16 %v1332, %v1331
        %v1378 = vpack.c.b16 %v1334, %v1333
        %v1379 = vpack.c.b16 %v1336, %v1335
        %v1380 = vpack.c.b16 %v1338, %v1337
        %v1381 = vpack.c.b16 %v1340, %v1339
        %v1382 = vpack.c.b16 %v1342, %v1341
        %v1383 = vpack.c.b16 %v1344, %v1343
        %v1384 = vpack.c.b16 %v1346, %v1345
        %v1385 = vpack.c.b16 %v1348, %v1347
        %v1386 = vpack.c.b16 %v1350, %v1349
        %v1387 = vpack.c.b16 %v1352, %v1351
        %v1388 = vpack.c.b16 %v1354, %v1353
        %v1389 = vpack.c.b16 %v1356, %v1355
        %v1390 = vpack.c.b16 %v1358, %v1357
        %1423 = vmatprep.subr.bf16.mxu0 0
        %1424 = vmatpush1.bf16.msra.mxu0 %v1359
        %1425 = vmatprep.subr.bf16.mxu0 0
        %1426 = vmatpush1.bf16.msra.mxu0 %v1360
        %1427 = vmatprep.subr.bf16.mxu0 0
        %1428 = vmatpush1.bf16.msra.mxu0 %v1361
        %1429 = vmatprep.subr.bf16.mxu0 0
        %1430 = vmatpush1.bf16.msra.mxu0 %v1362
        %1431 = vmatprep.subr.bf16.mxu0 0
        %1432 = vmatpush1.bf16.msra.mxu0 %v1363
        %1433 = vmatprep.subr.bf16.mxu0 0
        %1434 = vmatpush1.bf16.msra.mxu0 %v1364
        %1435 = vmatprep.subr.bf16.mxu0 0
        %1436 = vmatpush1.bf16.msra.mxu0 %v1365
        %1437 = vmatprep.subr.bf16.mxu0 0
        %1438 = vmatpush1.bf16.msra.mxu0 %v1366
        %1439 = vmatprep.subr.bf16.mxu0 0
        %1440 = vmatpush1.bf16.msra.mxu0 %v1367
        %1441 = vmatprep.subr.bf16.mxu0 0
        %1442 = vmatpush1.bf16.msra.mxu0 %v1368
        %1443 = vmatprep.subr.bf16.mxu0 0
        %1444 = vmatpush1.bf16.msra.mxu0 %v1369
        %1445 = vmatprep.subr.bf16.mxu0 0
        %1446 = vmatpush1.bf16.msra.mxu0 %v1370
        %1447 = vmatprep.subr.bf16.mxu0 0
        %1448 = vmatpush1.bf16.msra.mxu0 %v1371
        %1449 = vmatprep.subr.bf16.mxu0 0
        %1450 = vmatpush1.bf16.msra.mxu0 %v1372
        %1451 = vmatprep.subr.bf16.mxu0 0
        %1452 = vmatpush1.bf16.msra.mxu0 %v1373
        %1453 = vmatprep.subr.bf16.mxu0 0
        %1454 = vmatpush1.bf16.msra.mxu0 %v1374
        %1455 = vmatprep.mubr.bf16.mxu0 %v1104
        %1456 = vmatmul.mubr.bf16.gmra.mrb[0].mxu0 %v1103
        %v1457 = vpop.f32.mrb[0].mxu0
        %v1458 = vadd.f32 0.0, %v1457
        %v1459 = vpop.f32.mrb[0].mxu0
        %v1460 = vpop.f32.mrb[0].mxu0
        %v1461 = vadd.f32 0.0, %v1460
        %v1462 = vpop.f32.mrb[0].mxu0
        %1463 = vmatprep.mubr.bf16.mxu0 %v1108
        %1464 = vmatmul.mubr.bf16.gmra.mrb[0].mxu0 %v1107
        %v1465 = vpop.f32.mrb[0].mxu0
        %v1466 = vadd.f32 0.0, %v1465
        %v1467 = vpop.f32.mrb[0].mxu0
        %v1468 = vpop.f32.mrb[0].mxu0
        %v1469 = vadd.f32 0.0, %v1468
        %v1470 = vpop.f32.mrb[0].mxu0
        %1471 = vmatprep.mubr.bf16.mxu0 %v1112
        %1472 = vmatmul.mubr.bf16.gmra.mrb[0].mxu0 %v1111
        %v1473 = vpop.f32.mrb[0].mxu0
        %v1474 = vadd.f32 0.0, %v1473
        %v1475 = vpop.f32.mrb[0].mxu0
        %v1476 = vpop.f32.mrb[0].mxu0
        %v1477 = vadd.f32 0.0, %v1476
        %v1478 = vpop.f32.mrb[0].mxu0
        %1479 = vmatprep.mubr.bf16.mxu0 %v1116
        %1480 = vmatmul.mubr.bf16.gmra.mrb[0].mxu0 %v1115
        %v1481 = vpop.f32.mrb[0].mxu0
        %v1482 = vadd.f32 0.0, %v1481
        %v1483 = vpop.f32.mrb[0].mxu0
        %v1484 = vpop.f32.mrb[0].mxu0
        %v1485 = vadd.f32 0.0, %v1484
        %v1486 = vpop.f32.mrb[0].mxu0
        %1487 = vmatprep.mubr.bf16.mxu0 %v1120
        %1488 = vmatmul.mubr.bf16.gmra.mrb[0].mxu0 %v1119
        %v1489 = vpop.f32.mrb[0].mxu0
        %v1490 = vadd.f32 0.0, %v1489
        %v1491 = vpop.f32.mrb[0].mxu0
        %v1492 = vpop.f32.mrb[0].mxu0
        %v1493 = vadd.f32 0.0, %v1492
        %v1494 = vpop.f32.mrb[0].mxu0
        %1495 = vmatprep.mubr.bf16.mxu0 %v1124
        %1496 = vmatmul.mubr.bf16.gmra.mrb[0].mxu0 %v1123
        %v1497 = vpop.f32.mrb[0].mxu0
        %v1498 = vadd.f32 0.0, %v1497
        %v1499 = vpop.f32.mrb[0].mxu0
        %v1500 = vpop.f32.mrb[0].mxu0
        %v1501 = vadd.f32 0.0, %v1500
        %v1502 = vpop.f32.mrb[0].mxu0
        %1503 = vmatprep.mubr.bf16.mxu0 %v1128
        %1504 = vmatmul.mubr.bf16.gmra.mrb[0].mxu0 %v1127
        %v1505 = vpop.f32.mrb[0].mxu0
        %v1506 = vadd.f32 0.0, %v1505
        %v1507 = vpop.f32.mrb[0].mxu0
        %v1508 = vpop.f32.mrb[0].mxu0
        %v1509 = vadd.f32 0.0, %v1508
        %v1510 = vpop.f32.mrb[0].mxu0
        %1511 = vmatprep.mubr.bf16.mxu0 %v1132
        %1512 = vmatmul.mubr.bf16.gmra.mrb[0].mxu0 %v1131
        %v1513 = vpop.f32.mrb[0].mxu0
        %v1514 = vadd.f32 0.0, %v1513
        %v1515 = vpop.f32.mrb[0].mxu0
        %v1516 = vpop.f32.mrb[0].mxu0
        %v1517 = vadd.f32 0.0, %v1516
        %v1518 = vpop.f32.mrb[0].mxu0
        %1519 = vmatprep.mubr.bf16.mxu0 %v1136
        %1520 = vmatmul.mubr.bf16.gmra.mrb[0].mxu0 %v1135
        %v1521 = vpop.f32.mrb[0].mxu0
        %v1522 = vadd.f32 0.0, %v1521
        %v1523 = vpop.f32.mrb[0].mxu0
        %v1524 = vpop.f32.mrb[0].mxu0
        %v1525 = vadd.f32 0.0, %v1524
        %v1526 = vpop.f32.mrb[0].mxu0
        %1527 = vmatprep.mubr.bf16.mxu0 %v1140
        %1528 = vmatmul.mubr.bf16.gmra.mrb[0].mxu0 %v1139
        %v1529 = vpop.f32.mrb[0].mxu0
        %v1530 = vadd.f32 0.0, %v1529
        %v1531 = vpop.f32.mrb[0].mxu0
        %v1532 = vpop.f32.mrb[0].mxu0
        %v1533 = vadd.f32 0.0, %v1532
        %v1534 = vpop.f32.mrb[0].mxu0
        %1535 = vmatprep.mubr.bf16.mxu0 %v1144
        %1536 = vmatmul.mubr.bf16.gmra.mrb[0].mxu0 %v1143
        %v1537 = vpop.f32.mrb[0].mxu0
        %v1538 = vadd.f32 0.0, %v1537
        %v1539 = vpop.f32.mrb[0].mxu0
        %v1540 = vpop.f32.mrb[0].mxu0
        %v1541 = vadd.f32 0.0, %v1540
        %v1542 = vpop.f32.mrb[0].mxu0
        %1543 = vmatprep.mubr.bf16.mxu0 %v1148
        %1544 = vmatmul.mubr.bf16.gmra.mrb[0].mxu0 %v1147
        %v1545 = vpop.f32.mrb[0].mxu0
        %v1546 = vadd.f32 0.0, %v1545
        %v1547 = vpop.f32.mrb[0].mxu0
        %v1548 = vpop.f32.mrb[0].mxu0
        %v1549 = vadd.f32 0.0, %v1548
        %v1550 = vpop.f32.mrb[0].mxu0
        %1551 = vmatprep.mubr.bf16.mxu0 %v1152
        %1552 = vmatmul.mubr.bf16.gmra.mrb[0].mxu0 %v1151
        %v1553 = vpop.f32.mrb[0].mxu0
        %v1554 = vadd.f32 0.0, %v1553
        %v1555 = vpop.f32.mrb[0].mxu0
        %v1556 = vpop.f32.mrb[0].mxu0
        %v1557 = vadd.f32 0.0, %v1556
        %v1558 = vpop.f32.mrb[0].mxu0
        %1559 = vmatprep.mubr.bf16.mxu0 %v1156
        %1560 = vmatmul.mubr.bf16.gmra.mrb[0].mxu0 %v1155
        %v1561 = vpop.f32.mrb[0].mxu0
        %v1562 = vadd.f32 0.0, %v1561
        %v1563 = vpop.f32.mrb[0].mxu0
        %v1564 = vpop.f32.mrb[0].mxu0
        %v1565 = vadd.f32 0.0, %v1564
        %v1566 = vpop.f32.mrb[0].mxu0
        %1567 = vmatprep.mubr.bf16.mxu0 %v1160
        %1568 = vmatmul.mubr.bf16.gmra.mrb[0].mxu0 %v1159
        %v1569 = vpop.f32.mrb[0].mxu0
        %v1570 = vadd.f32 0.0, %v1569
        %v1571 = vpop.f32.mrb[0].mxu0
        %v1572 = vpop.f32.mrb[0].mxu0
        %v1573 = vadd.f32 0.0, %v1572
        %v1574 = vpop.f32.mrb[0].mxu0
        %1575 = vmatprep.mubr.bf16.mxu0 %v1164
        %1576 = vmatmul.mubr.bf16.gmra.mrb[0].mxu0 %v1163
        %v1577 = vpop.f32.mrb[0].mxu0
        %v1578 = vadd.f32 0.0, %v1577
        %v1579 = vpop.f32.mrb[0].mxu0
        %v1580 = vpop.f32.mrb[0].mxu0
        %v1581 = vadd.f32 0.0, %v1580
        %v1582 = vpop.f32.mrb[0].mxu0
        %1583 = vdwg.mxu0
        %1584 = vmatprep.subr.bf16.mxu0 0
        %1585 = vmatpush1.bf16.msra.mxu0 %v1375
        %1586 = vmatprep.subr.bf16.mxu0 0
        %1587 = vmatpush1.bf16.msra.mxu0 %v1376
        %1588 = vmatprep.subr.bf16.mxu0 0
        %1589 = vmatpush1.bf16.msra.mxu0 %v1377
        %1590 = vmatprep.subr.bf16.mxu0 0
        %1591 = vmatpush1.bf16.msra.mxu0 %v1378
        %1592 = vmatprep.subr.bf16.mxu0 0
        %1593 = vmatpush1.bf16.msra.mxu0 %v1379
        %1594 = vmatprep.subr.bf16.mxu0 0
        %1595 = vmatpush1.bf16.msra.mxu0 %v1380
        %1596 = vmatprep.subr.bf16.mxu0 0
        %1597 = vmatpush1.bf16.msra.mxu0 %v1381
        %1598 = vmatprep.subr.bf16.mxu0 0
        %1599 = vmatpush1.bf16.msra.mxu0 %v1382
        %1600 = vmatprep.subr.bf16.mxu0 0
        %1601 = vmatpush1.bf16.msra.mxu0 %v1383
        %1602 = vmatprep.subr.bf16.mxu0 0
        %1603 = vmatpush1.bf16.msra.mxu0 %v1384
        %1604 = vmatprep.subr.bf16.mxu0 0
        %1605 = vmatpush1.bf16.msra.mxu0 %v1385
        %1606 = vmatprep.subr.bf16.mxu0 0
        %1607 = vmatpush1.bf16.msra.mxu0 %v1386
        %1608 = vmatprep.subr.bf16.mxu0 0
        %1609 = vmatpush1.bf16.msra.mxu0 %v1387
        %1610 = vmatprep.subr.bf16.mxu0 0
        %1611 = vmatpush1.bf16.msra.mxu0 %v1388
        %1612 = vmatprep.subr.bf16.mxu0 0
        %1613 = vmatpush1.bf16.msra.mxu0 %v1389
        %1614 = vmatprep.subr.bf16.mxu0 0
        %1615 = vmatpush1.bf16.msra.mxu0 %v1390
        %1616 = vmatprep.mubr.bf16.mxu0 %v1106
        %1617 = vmatmul.mubr.bf16.gmra.mrb[0].mxu0 %v1105
        %v1618 = vpop.f32.mrb[0].mxu0
        %v1619 = vadd.f32 %v1458, %v1618
        %v1620 = vpop.f32.mrb[0].mxu0
        %v1621 = vpop.f32.mrb[0].mxu0
        %v1622 = vadd.f32 %v1461, %v1621
        %v1623 = vpop.f32.mrb[0].mxu0
        %1624 = vmatprep.mubr.bf16.mxu0 %v1110
        %1625 = vmatmul.mubr.bf16.gmra.mrb[0].mxu0 %v1109
        %v1626 = vpop.f32.mrb[0].mxu0
        %v1627 = vadd.f32 %v1466, %v1626
        %v1628 = vpop.f32.mrb[0].mxu0
        %v1629 = vpop.f32.mrb[0].mxu0
        %v1630 = vadd.f32 %v1469, %v1629
        %v1631 = vpop.f32.mrb[0].mxu0
        %1632 = vmatprep.mubr.bf16.mxu0 %v1114
        %1633 = vmatmul.mubr.bf16.gmra.mrb[0].mxu0 %v1113
        %v1634 = vpop.f32.mrb[0].mxu0
        %v1635 = vadd.f32 %v1474, %v1634
        %v1636 = vpop.f32.mrb[0].mxu0
        %v1637 = vpop.f32.mrb[0].mxu0
        %v1638 = vadd.f32 %v1477, %v1637
        %v1639 = vpop.f32.mrb[0].mxu0
        %1640 = vmatprep.mubr.bf16.mxu0 %v1118
        %1641 = vmatmul.mubr.bf16.gmra.mrb[0].mxu0 %v1117
        %v1642 = vpop.f32.mrb[0].mxu0
        %v1643 = vadd.f32 %v1482, %v1642
        %v1644 = vpop.f32.mrb[0].mxu0
        %v1645 = vpop.f32.mrb[0].mxu0
        %v1646 = vadd.f32 %v1485, %v1645
        %v1647 = vpop.f32.mrb[0].mxu0
        %1648 = vmatprep.mubr.bf16.mxu0 %v1122
        %1649 = vmatmul.mubr.bf16.gmra.mrb[0].mxu0 %v1121
        %v1650 = vpop.f32.mrb[0].mxu0
        %v1651 = vadd.f32 %v1490, %v1650
        %v1652 = vpop.f32.mrb[0].mxu0
        %v1653 = vpop.f32.mrb[0].mxu0
        %v1654 = vadd.f32 %v1493, %v1653
        %v1655 = vpop.f32.mrb[0].mxu0
        %1656 = vmatprep.mubr.bf16.mxu0 %v1126
        %1657 = vmatmul.mubr.bf16.gmra.mrb[0].mxu0 %v1125
        %v1658 = vpop.f32.mrb[0].mxu0
        %v1659 = vadd.f32 %v1498, %v1658
        %v1660 = vpop.f32.mrb[0].mxu0
        %v1661 = vpop.f32.mrb[0].mxu0
        %v1662 = vadd.f32 %v1501, %v1661
        %v1663 = vpop.f32.mrb[0].mxu0
        %1664 = vmatprep.mubr.bf16.mxu0 %v1130
        %1665 = vmatmul.mubr.bf16.gmra.mrb[0].mxu0 %v1129
        %v1666 = vpop.f32.mrb[0].mxu0
        %v1667 = vadd.f32 %v1506, %v1666
        %v1668 = vpop.f32.mrb[0].mxu0
        %v1669 = vpop.f32.mrb[0].mxu0
        %v1670 = vadd.f32 %v1509, %v1669
        %v1671 = vpop.f32.mrb[0].mxu0
        %1672 = vmatprep.mubr.bf16.mxu0 %v1134
        %1673 = vmatmul.mubr.bf16.gmra.mrb[0].mxu0 %v1133
        %v1674 = vpop.f32.mrb[0].mxu0
        %v1675 = vadd.f32 %v1514, %v1674
        %v1676 = vpop.f32.mrb[0].mxu0
        %v1677 = vpop.f32.mrb[0].mxu0
        %v1678 = vadd.f32 %v1517, %v1677
        %v1679 = vpop.f32.mrb[0].mxu0
        %1680 = vmatprep.mubr.bf16.mxu0 %v1138
        %1681 = vmatmul.mubr.bf16.gmra.mrb[0].mxu0 %v1137
        %v1682 = vpop.f32.mrb[0].mxu0
        %v1683 = vadd.f32 %v1522, %v1682
        %v1684 = vpop.f32.mrb[0].mxu0
        %v1685 = vpop.f32.mrb[0].mxu0
        %v1686 = vadd.f32 %v1525, %v1685
        %v1687 = vpop.f32.mrb[0].mxu0
        %1688 = vmatprep.mubr.bf16.mxu0 %v1142
        %1689 = vmatmul.mubr.bf16.gmra.mrb[0].mxu0 %v1141
        %v1690 = vpop.f32.mrb[0].mxu0
        %v1691 = vadd.f32 %v1530, %v1690
        %v1692 = vpop.f32.mrb[0].mxu0
        %v1693 = vpop.f32.mrb[0].mxu0
        %v1694 = vadd.f32 %v1533, %v1693
        %v1695 = vpop.f32.mrb[0].mxu0
        %1696 = vmatprep.mubr.bf16.mxu0 %v1146
        %1697 = vmatmul.mubr.bf16.gmra.mrb[0].mxu0 %v1145
        %v1698 = vpop.f32.mrb[0].mxu0
        %v1699 = vadd.f32 %v1538, %v1698
        %v1700 = vpop.f32.mrb[0].mxu0
        %v1701 = vpop.f32.mrb[0].mxu0
        %v1702 = vadd.f32 %v1541, %v1701
        %v1703 = vpop.f32.mrb[0].mxu0
        %1704 = vmatprep.mubr.bf16.mxu0 %v1150
        %1705 = vmatmul.mubr.bf16.gmra.mrb[0].mxu0 %v1149
        %v1706 = vpop.f32.mrb[0].mxu0
        %v1707 = vadd.f32 %v1546, %v1706
        %v1708 = vpop.f32.mrb[0].mxu0
        %v1709 = vpop.f32.mrb[0].mxu0
        %v1710 = vadd.f32 %v1549, %v1709
        %v1711 = vpop.f32.mrb[0].mxu0
        %1712 = vmatprep.mubr.bf16.mxu0 %v1154
        %1713 = vmatmul.mubr.bf16.gmra.mrb[0].mxu0 %v1153
        %v1714 = vpop.f32.mrb[0].mxu0
        %v1715 = vadd.f32 %v1554, %v1714
        %v1716 = vpop.f32.mrb[0].mxu0
        %v1717 = vpop.f32.mrb[0].mxu0
        %v1718 = vadd.f32 %v1557, %v1717
        %v1719 = vpop.f32.mrb[0].mxu0
        %1720 = vmatprep.mubr.bf16.mxu0 %v1158
        %1721 = vmatmul.mubr.bf16.gmra.mrb[0].mxu0 %v1157
        %v1722 = vpop.f32.mrb[0].mxu0
        %v1723 = vadd.f32 %v1562, %v1722
        %v1724 = vpop.f32.mrb[0].mxu0
        %v1725 = vpop.f32.mrb[0].mxu0
        %v1726 = vadd.f32 %v1565, %v1725
        %v1727 = vpop.f32.mrb[0].mxu0
        %1728 = vmatprep.mubr.bf16.mxu0 %v1162
        %1729 = vmatmul.mubr.bf16.gmra.mrb[0].mxu0 %v1161
        %v1730 = vpop.f32.mrb[0].mxu0
        %v1731 = vadd.f32 %v1570, %v1730
        %v1732 = vpop.f32.mrb[0].mxu0
        %v1733 = vpop.f32.mrb[0].mxu0
        %v1734 = vadd.f32 %v1573, %v1733
        %v1735 = vpop.f32.mrb[0].mxu0
        %1736 = vmatprep.mubr.bf16.mxu0 %v1166
        %1737 = vmatmul.mubr.bf16.gmra.mrb[0].mxu0 %v1165
        %v1738 = vpop.f32.mrb[0].mxu0
        %v1739 = vadd.f32 %v1578, %v1738
        %v1740 = vpop.f32.mrb[0].mxu0
        %v1741 = vpop.f32.mrb[0].mxu0
        %v1742 = vadd.f32 %v1581, %v1741
        %v1743 = vpop.f32.mrb[0].mxu0
        %1744 = vdwg.mxu0
        %1745 = vst [vmem:[%s217] sm:$0xff] %v1619
        %1746 = vst [vmem:[%s217 + $0x8] sm:$0xff] %v1622
        %1747 = vst [vmem:[%s217 + $0x10] sm:$0xff] %v1627
        %1748 = vst [vmem:[%s217 + $0x18] sm:$0xff] %v1630
        %1749 = vst [vmem:[%s217 + $0x20] sm:$0xff] %v1635
        %1750 = vst [vmem:[%s217 + $0x28] sm:$0xff] %v1638
        %1751 = vst [vmem:[%s217 + $0x30] sm:$0xff] %v1643
        %1752 = vst [vmem:[%s217 + $0x38] sm:$0xff] %v1646
        %1753 = vst [vmem:[%s217 + $0x40] sm:$0xff] %v1651
        %1754 = vst [vmem:[%s217 + $0x48] sm:$0xff] %v1654
        %1755 = vst [vmem:[%s217 + $0x50] sm:$0xff] %v1659
        %1756 = vst [vmem:[%s217 + $0x58] sm:$0xff] %v1662
        %1757 = vst [vmem:[%s217 + $0x60] sm:$0xff] %v1667
        %1758 = vst [vmem:[%s217 + $0x68] sm:$0xff] %v1670
        %1759 = vst [vmem:[%s217 + $0x70] sm:$0xff] %v1675
        %1760 = vst [vmem:[%s217 + $0x78] sm:$0xff] %v1678
        %1761 = vst [vmem:[%s217 + $0x80] sm:$0xff] %v1683
        %1762 = vst [vmem:[%s217 + $0x88] sm:$0xff] %v1686
        %1763 = vst [vmem:[%s217 + $0x90] sm:$0xff] %v1691
        %1764 = vst [vmem:[%s217 + $0x98] sm:$0xff] %v1694
        %1765 = vst [vmem:[%s217 + $0xa0] sm:$0xff] %v1699
        %1766 = vst [vmem:[%s217 + $0xa8] sm:$0xff] %v1702
        %1767 = vst [vmem:[%s217 + $0xb0] sm:$0xff] %v1707
        %1768 = vst [vmem:[%s217 + $0xb8] sm:$0xff] %v1710
        %1769 = vst [vmem:[%s217 + $0xc0] sm:$0xff] %v1715
        %1770 = vst [vmem:[%s217 + $0xc8] sm:$0xff] %v1718
        %1771 = vst [vmem:[%s217 + $0xd0] sm:$0xff] %v1723
        %1772 = vst [vmem:[%s217 + $0xd8] sm:$0xff] %v1726
        %1773 = vst [vmem:[%s217 + $0xe0] sm:$0xff] %v1731
        %1774 = vst [vmem:[%s217 + $0xe8] sm:$0xff] %v1734
        %1775 = vst [vmem:[%s217 + $0xf0] sm:$0xff] %v1739
        %1776 = vst [vmem:[%s217 + $0xf8] sm:$0xff] %v1742
        %s1777 = sand.u32 %s97, 1
        %s1778 = scalar_lea.sflag [#allocation4], %s1777
        %s1779 = sand.u32 %s97, 1
        %s1780 = smul.addr %s1779, 256
        %s1781 = scalar_lea.vmem [#allocation8], %s1780
        // Predicated region
        $region45: #{mlp_forward.1} parent=31 // pred_check
          %p1782 = pneg %p107
        $region46: #{mlp_forward.1} parent=31 // pred_check_branch
          %1784 = sbr.rel (%p1782) target = $region48
        $region47: #{mlp_forward.1} parent=31 // pred_region
          %s1785 = smul.u32 32, %s21
          %s1787 = ssub.s32 4096, 4096
          %1788 = vsyncadd %s1778, %s1787
          %s1789 = smul.addr %s1785, 128
          %s1790 = scalar_lea.hbm %s3, %s1789
          %s1791 = sshll.u32 %s1781, 4
          %s1792 = int_to_ptr.vmem [resolvable:$true] %s1791
          %1797 = dma.vmem_to_hbm [thread:$0]  %s1792, 4096, %s1790, %s1778, 128, 128, 8
        $region48: #{mlp_forward.1} parent=31 // pred_fallthru
          _
      $region32: #{mlp_forward.1} parent=5 // pred_fallthru
        _
      %p1798 = scmp.le.s32.totalorder 2, %s16
      // Predicated region
      $region49: #{mlp_forward.1} parent=5 // pred_check
        %p1799 = pneg %p1798
      $region50: #{mlp_forward.1} parent=5 // pred_check_branch
        %1801 = sbr.rel (%p1799) target = $region52
      $region51: #{mlp_forward.1} parent=5 // pred_region
        %s1802 = ssub.s32 %s16, 2
        // Predicated region
        $region53: #{mlp_forward.1} parent=51 // pred_check
          %p1803 = pneg %p113
        $region54: #{mlp_forward.1} parent=51 // pred_check_branch
          %1805 = sbr.rel (%p1803) target = $region56
        $region55: #{mlp_forward.1} parent=51 // pred_region
          %s1806 = sand.u32 %s98, 1
          %s1807 = scalar_lea.sflag [#allocation4], %s1806
          %s1808 = sand.u32 %s98, 1
          %s1809 = smul.addr %s1808, 256
          %s1810 = scalar_lea.vmem [#allocation8], %s1809
          %1811 = dma.done %s1807, 4096
        $region56: #{mlp_forward.1} parent=51 // pred_fallthru
          _
      $region52: #{mlp_forward.1} parent=5 // pred_fallthru
        _
    $region6: #{mlp_forward.1} parent=1 // loop_footer
      %s20 = sadd.s32 1, %s16
    $region7: #{mlp_forward.1} parent=1 // loop_footer_branch
      %15 = sbr.rel target = $region3
    $region8: #{mlp_forward.1} parent=1 // loop_exit
      _
    %1812 = vsyncpa [#allocation3], 1
    %s1813 = scalar_lea.sflag [#allocation3], 1
    %1814 = vsyncpa %s1813, 1
    %1815 = vsyncpa [#allocation6], 1
    %1816 = vsyncpa [#allocation4], 1
    %s1817 = scalar_lea.sflag [#allocation4], 1
    %1818 = vsyncpa %s1817, 1

</llo_original>
